<compile_context>
chip_gen: v6e
topology: v6e:2x2x1
jax: 0.10.0
libtpu: 0.0.40
codegen_flags: <defaults>
</compile_context>

<pallas_src>
import functools

import jax
import jax.numpy as jnp
from jax.experimental import pallas as pl
from jax.experimental.pallas import tpu as pltpu


# ---------------------------------------------------------------------------
# Kernel
# ---------------------------------------------------------------------------
def _ae_kernel(x_ref,
               w1_ref, b1_ref, w2_ref, b2_ref, w34_ref, b34_ref,
               w5_ref, b5_ref, w6_ref, b6_ref,
               o_ref):
    """Fused encoder/decoder MLP for one (batch_tile, F) activation tile.

    Weights + biases stay resident in VMEM for the whole call (~2.7 MiB bf16 /
    ~5.3 MiB f32 at F=1024); each grid step only streams one batch tile of
    activations in and out.  Matmuls feed the MXU in the weight dtype
    (bf16 by default) and accumulate in f32; all elementwise math is f32.
    """
    cd = w1_ref.dtype  # MXU input dtype (bfloat16 default, or float32)
    h = x_ref[...]

    # Encoder
    h = jnp.dot(h.astype(cd), w1_ref[...],
                preferred_element_type=jnp.float32) + b1_ref[...]
    h = jnp.maximum(h, 0.0)
    h = jnp.dot(h.astype(cd), w2_ref[...],
                preferred_element_type=jnp.float32) + b2_ref[...]
    h = jnp.maximum(h, 0.0)

    # Fused bottleneck: (256->2)(2->256) == one 256->256 matmul, then ReLU.
    h = jnp.dot(h.astype(cd), w34_ref[...],
                preferred_element_type=jnp.float32) + b34_ref[...]
    h = jnp.maximum(h, 0.0)

    # Decoder
    h = jnp.dot(h.astype(cd), w5_ref[...],
                preferred_element_type=jnp.float32) + b5_ref[...]
    h = jnp.maximum(h, 0.0)
    out = jnp.dot(h.astype(cd), w6_ref[...],
                  preferred_element_type=jnp.float32) + b6_ref[...]

    # sigmoid(x) = 0.5 * tanh(0.5 * x) + 0.5  -> single EUP push, exact.
    o_ref[...] = (0.5 * jnp.tanh(0.5 * out) + 0.5).astype(o_ref.dtype)


# ---------------------------------------------------------------------------
# Helpers
# ---------------------------------------------------------------------------
def _round_up(n, m):
    return ((n + m - 1) // m) * m


def _cdiv(a, b):
    return (a + b - 1) // b


def _weight_spec(shape, single_buffer):
    index_map = (lambda i, _s=len(shape): (0,) * _s)  # grid-invariant
    if single_buffer:
        return pl.BlockSpec(shape, index_map, pipeline_mode=pl.Buffered(1))
    return pl.BlockSpec(shape, index_map)


def _choose_bt(B, batch_tile):
    """Pick the batch tile (static, from shapes only)."""
    B8 = _round_up(B, 8)
    bt = max(8, (min(batch_tile, B8) // 8) * 8)
    steps = _cdiv(B8, bt)
    # Aim for >=2 grid steps (shards the "parallel" axis across v7x's 2 TCs),
    # but only when each resulting tile keeps >=256 rows (DMA near roofline).
    if steps == 1 and B8 >= 512:
        bt = _round_up(_cdiv(B8, 2), 8)
        steps = _cdiv(B8, bt)
    # Prefer an even number of steps for 2-core load balance.
    if steps > 1 and steps % 2 == 1:
        bt_even = max(8, _round_up(_cdiv(B8, steps + 1), 8))
        if _cdiv(B8, bt_even) % 2 == 0:
            bt = bt_even
    return bt


def _vmem_need(bt, F, in_itemsize, w_bytes):
    # in tile (double-buffered) + out tile f32 (double-buffered)
    io = 2 * bt * F * in_itemsize + 2 * bt * F * 4
    # f32 intermediates across all hidden widths plus the pre-sigmoid output
    inter = bt * (512 + 256 + 256 + 512 + max(F, 1024)) * 4
    # weights assumed double-buffered (worst case if Buffered(1) is rejected)
    return io + 2 * w_bytes + inter + (4 << 20)


# ---------------------------------------------------------------------------
# Wrapper
# ---------------------------------------------------------------------------
@functools.partial(
    jax.jit, static_argnames=("batch_tile", "use_bf16", "single_buffer_weights"))
def _forward_impl(x, params, *, batch_tile, use_bf16, single_buffer_weights):
    inp_shape = x.shape
    B = inp_shape[0]
    F = 1
    for d in inp_shape[1:]:
        F *= d

    (w1, b1), (w2, b2), (w3, b3), (w4, b4), (w5, b5), (w6, b6) = params

    # Exact algebraic fusion of the rank-2 bottleneck (no activation between
    # Linear(256,2) and Linear(2,256) in the PyTorch module).
    w34 = jnp.dot(w3, w4, preferred_element_type=jnp.float32)
    b34 = jnp.dot(b3, w4, preferred_element_type=jnp.float32) + b4

    cd = jnp.bfloat16 if use_bf16 else jnp.float32
    mats = [m.astype(cd) for m in (w1, w2, w34, w5, w6)]
    biases = [b.astype(jnp.float32) for b in (b1, b2, b34, b5, b6)]
    weight_args = (mats[0], biases[0], mats[1], biases[1], mats[2], biases[2],
                   mats[3], biases[3], mats[4], biases[4])
    w_bytes = sum(int(a.size) * jnp.dtype(a.dtype).itemsize for a in weight_args)

    # Activations: DMA in the MXU dtype (bf16 by default -> half the HBM
    # traffic on the input side and no in-kernel cast before the first matmul).
    x2d = x.reshape(B, F).astype(cd)

    # --- tile geometry (all static) -------------------------------------
    bt = _choose_bt(B, batch_tile)

    try:
        cap = int(pltpu.get_tpu_info().vmem_capacity_bytes)
    except Exception:
        cap = 64 << 20  # conservative: v7x per-core VMEM
    budget = int(0.75 * cap)

    in_item = jnp.dtype(cd).itemsize
    need = _vmem_need(bt, F, in_item, w_bytes)
    while need > budget and bt > 8:
        bt = max(8, ((bt // 2) // 8) * 8)  # shrink the tile, not the limit
        need = _vmem_need(bt, F, in_item, w_bytes)
    vmem_limit = int(min(max(need, 16 << 20), budget))

    Bp = _round_up(B, bt)
    if Bp != B:
        x2d = jnp.pad(x2d, ((0, Bp - B), (0, 0)))  # only the ragged last tile

    grid = (Bp // bt,)
    act_spec = pl.BlockSpec((bt, F), lambda i: (i, 0))
    weight_specs = [_weight_spec(a.shape, single_buffer_weights)
                    for a in weight_args]

    out2d = pl.pallas_call(
        _ae_kernel,
        out_shape=jax.ShapeDtypeStruct((Bp, F), jnp.float32),
        grid_spec=pltpu.PrefetchScalarGridSpec(
            num_scalar_prefetch=0,
            grid=grid,
            in_specs=[act_spec] + weight_specs,
            out_specs=pl.BlockSpec((bt, F), lambda i: (i, 0)),
        ),
        compiler_params=pltpu.CompilerParams(
            dimension_semantics=("parallel",),
            vmem_limit_bytes=vmem_limit,
        ),
    )(x2d, *weight_args)

    return out2d[:B].reshape(inp_shape)


def autoencoder_forward(x, params, *, batch_tile=512, use_bf16=True):
    """Runs Model.forward: flatten -> MLP autoencoder -> sigmoid -> reshape."""
    try:
        return _forward_impl(x, params, batch_tile=batch_tile, use_bf16=use_bf16,
                             single_buffer_weights=True)
    except Exception as e:
        msg = str(e)
        # Only fall back when the failure is actually about single-buffered
        # (pipeline_mode=Buffered) weight specs; re-raise anything else.
        if ("pipeline_mode" in msg) or ("Buffered" in msg):
            return _forward_impl(x, params, batch_tile=batch_tile,
                                 use_bf16=use_bf16,
                                 single_buffer_weights=False)
        raise


# ---------------------------------------------------------------------------
# Params / reference
# ---------------------------------------------------------------------------
def init_params(key, input_dim):
    """Deterministic init matching torch.nn.Linear shapes.

    Weights stored pre-transposed as (in, out) so the kernel does x @ W.
    Biases stored as (1, out) for broadcast inside the kernel.
    """
    dims = [input_dim, 512, 256, 2, 256, 512, input_dim]
    params = []
    for i in range(len(dims) - 1):
        fan_in, fan_out = dims[i], dims[i + 1]
        key, kw, kb = jax.random.split(key, 3)
        bound = 1.0 / jnp.sqrt(jnp.float32(fan_in))  # torch default uniform bound
        w = jax.random.uniform(kw, (fan_in, fan_out), jnp.float32, -bound, bound)
        b = jax.random.uniform(kb, (1, fan_out), jnp.float32, -bound, bound)
        params.append((w, b))
    return params


def _reference_forward(x, params):
    """Pure-JAX reference of the PyTorch forward (unfused, exact ordering)."""
    inp_shape = x.shape
    h = x.reshape(inp_shape[0], -1).astype(jnp.float32)
    (w1, b1), (w2, b2), (w3, b3), (w4, b4), (w5, b5), (w6, b6) = params
    h = jnp.maximum(h @ w1 + b1, 0.0)
    h = jnp.maximum(h @ w2 + b2, 0.0)
    h = h @ w3 + b3                      # Linear(256, 2)   -- no activation
    h = jnp.maximum(h @ w4 + b4, 0.0)    # Linear(2, 256) -> ReLU
    h = jnp.maximum(h @ w5 + b5, 0.0)
    h = jax.nn.sigmoid(h @ w6 + b6)
    return h.reshape(inp_shape)


# ---------------------------------------------------------------------------
# Demo / smoke test
# ---------------------------------------------------------------------------
if __name__ == "__main__":
    key = jax.random.PRNGKey(0)
    k_x, k_p = jax.random.split(key)

    # Small NCHW input: batch=2, channels=4, spatial=16x16  ->  F = 1024
    x = jax.random.normal(k_x, (2, 4, 16, 16), dtype=jnp.float32)
    params = init_params(k_p, input_dim=4 * 16 * 16)

    ref = _reference_forward(x, params)

    # Default path: bf16 MXU inputs, f32 accumulation (v5e/v6e/v7x fast path).
    out = jax.block_until_ready(autoencoder_forward(x, params))
    assert out.shape == x.shape
    assert jnp.allclose(out, ref, atol=5e-2, rtol=0.0), \
        float(jnp.max(jnp.abs(out - ref)))

    # f32 MXU path: near-exact parity with the PyTorch forward (tolerance
    # covers the exact-but-reassociated bottleneck fusion only).
    out_f32 = jax.block_until_ready(
        autoencoder_forward(x, params, use_bf16=False))
    assert jnp.allclose(out_f32, ref, atol=5e-3, rtol=0.0), \
        float(jnp.max(jnp.abs(out_f32 - ref)))

    print("KERNEL_OK")
</pallas_src>

<mosaic_0001>
module attributes {stable_mosaic.version = 11 : i64} {
  func.func @_ae_kernel(%arg0: i32, %arg1: memref<8x1024xbf16, #tpu.memory_space<vmem>>, %arg2: memref<1024x512xbf16, #tpu.memory_space<vmem>>, %arg3: memref<1x512xf32, #tpu.memory_space<vmem>>, %arg4: memref<512x256xbf16, #tpu.memory_space<vmem>>, %arg5: memref<1x256xf32, #tpu.memory_space<vmem>>, %arg6: memref<256x256xbf16, #tpu.memory_space<vmem>>, %arg7: memref<1x256xf32, #tpu.memory_space<vmem>>, %arg8: memref<256x512xbf16, #tpu.memory_space<vmem>>, %arg9: memref<1x512xf32, #tpu.memory_space<vmem>>, %arg10: memref<512x1024xbf16, #tpu.memory_space<vmem>>, %arg11: memref<1x1024xf32, #tpu.memory_space<vmem>>, %arg12: memref<8x1024xf32, #tpu.memory_space<vmem>>) attributes {dimension_semantics = [#tpu.dimension_semantics<parallel>], iteration_bounds = array<i64: 1>, scalar_prefetch = 0 : i64, scratch_operands = 0 : i64, tpu.core_type = #tpu.core_type<tc>, window_params = [{transform_indices = @transform_0, window_bounds = array<i64: 8, 1024>}, {pipeline_mode = #tpu.pipeline_mode<synchronous>, transform_indices = @transform_1, window_bounds = array<i64: 1024, 512>}, {pipeline_mode = #tpu.pipeline_mode<synchronous>, transform_indices = @transform_2, window_bounds = array<i64: 1, 512>}, {pipeline_mode = #tpu.pipeline_mode<synchronous>, transform_indices = @transform_3, window_bounds = array<i64: 512, 256>}, {pipeline_mode = #tpu.pipeline_mode<synchronous>, transform_indices = @transform_4, window_bounds = array<i64: 1, 256>}, {pipeline_mode = #tpu.pipeline_mode<synchronous>, transform_indices = @transform_5, window_bounds = array<i64: 256, 256>}, {pipeline_mode = #tpu.pipeline_mode<synchronous>, transform_indices = @transform_6, window_bounds = array<i64: 1, 256>}, {pipeline_mode = #tpu.pipeline_mode<synchronous>, transform_indices = @transform_7, window_bounds = array<i64: 256, 512>}, {pipeline_mode = #tpu.pipeline_mode<synchronous>, transform_indices = @transform_8, window_bounds = array<i64: 1, 512>}, {pipeline_mode = #tpu.pipeline_mode<synchronous>, transform_indices = @transform_9, window_bounds = array<i64: 512, 1024>}, {pipeline_mode = #tpu.pipeline_mode<synchronous>, transform_indices = @transform_10, window_bounds = array<i64: 1, 1024>}, {transform_indices = @transform_11, window_bounds = array<i64: 8, 1024>}]} {
    %c0 = arith.constant 0 : index
    %c0_0 = arith.constant 0 : index
    %0 = vector.load %arg1[%c0, %c0_0] : memref<8x1024xbf16, #tpu.memory_space<vmem>>, vector<8x1024xbf16>
    %c0_1 = arith.constant 0 : index
    %c0_2 = arith.constant 0 : index
    %1 = vector.load %arg2[%c0_1, %c0_2] : memref<1024x512xbf16, #tpu.memory_space<vmem>>, vector<1024x512xbf16>
    %cst = arith.constant dense<0.000000e+00> : vector<8x512xf32>
    %2 = tpu.matmul %0, %1, %cst {dimension_numbers = #tpu.dot_dimension_numbers<[1], [0], [0], [1], [0, 0, 1, 1], [], []>} : vector<8x1024xbf16>, vector<1024x512xbf16>, vector<8x512xf32> -> vector<8x512xf32>
    %c0_3 = arith.constant 0 : index
    %c0_4 = arith.constant 0 : index
    %3 = vector.load %arg3[%c0_3, %c0_4] : memref<1x512xf32, #tpu.memory_space<vmem>>, vector<1x512xf32>
    %4 = vector.broadcast %3 : vector<1x512xf32> to vector<8x512xf32>
    %5 = arith.addf %2, %4 : vector<8x512xf32>
    %cst_5 = arith.constant 0.000000e+00 : f32
    %6 = vector.broadcast %cst_5 : f32 to vector<8x512xf32>
    %7 = arith.maximumf %5, %6 : vector<8x512xf32>
    %8 = arith.truncf %7 : vector<8x512xf32> to vector<8x512xbf16>
    %c0_6 = arith.constant 0 : index
    %c0_7 = arith.constant 0 : index
    %9 = vector.load %arg4[%c0_6, %c0_7] : memref<512x256xbf16, #tpu.memory_space<vmem>>, vector<512x256xbf16>
    %cst_8 = arith.constant dense<0.000000e+00> : vector<8x256xf32>
    %10 = tpu.matmul %8, %9, %cst_8 {dimension_numbers = #tpu.dot_dimension_numbers<[1], [0], [0], [1], [0, 0, 1, 1], [], []>} : vector<8x512xbf16>, vector<512x256xbf16>, vector<8x256xf32> -> vector<8x256xf32>
    %c0_9 = arith.constant 0 : index
    %c0_10 = arith.constant 0 : index
    %11 = vector.load %arg5[%c0_9, %c0_10] : memref<1x256xf32, #tpu.memory_space<vmem>>, vector<1x256xf32>
    %12 = vector.broadcast %11 : vector<1x256xf32> to vector<8x256xf32>
    %13 = arith.addf %10, %12 : vector<8x256xf32>
    %cst_11 = arith.constant 0.000000e+00 : f32
    %14 = vector.broadcast %cst_11 : f32 to vector<8x256xf32>
    %15 = arith.maximumf %13, %14 : vector<8x256xf32>
    %16 = arith.truncf %15 : vector<8x256xf32> to vector<8x256xbf16>
    %c0_12 = arith.constant 0 : index
    %c0_13 = arith.constant 0 : index
    %17 = vector.load %arg6[%c0_12, %c0_13] : memref<256x256xbf16, #tpu.memory_space<vmem>>, vector<256x256xbf16>
    %cst_14 = arith.constant dense<0.000000e+00> : vector<8x256xf32>
    %18 = tpu.matmul %16, %17, %cst_14 {dimension_numbers = #tpu.dot_dimension_numbers<[1], [0], [0], [1], [0, 0, 1, 1], [], []>} : vector<8x256xbf16>, vector<256x256xbf16>, vector<8x256xf32> -> vector<8x256xf32>
    %c0_15 = arith.constant 0 : index
    %c0_16 = arith.constant 0 : index
    %19 = vector.load %arg7[%c0_15, %c0_16] : memref<1x256xf32, #tpu.memory_space<vmem>>, vector<1x256xf32>
    %20 = vector.broadcast %19 : vector<1x256xf32> to vector<8x256xf32>
    %21 = arith.addf %18, %20 : vector<8x256xf32>
    %cst_17 = arith.constant 0.000000e+00 : f32
    %22 = vector.broadcast %cst_17 : f32 to vector<8x256xf32>
    %23 = arith.maximumf %21, %22 : vector<8x256xf32>
    %24 = arith.truncf %23 : vector<8x256xf32> to vector<8x256xbf16>
    %c0_18 = arith.constant 0 : index
    %c0_19 = arith.constant 0 : index
    %25 = vector.load %arg8[%c0_18, %c0_19] : memref<256x512xbf16, #tpu.memory_space<vmem>>, vector<256x512xbf16>
    %cst_20 = arith.constant dense<0.000000e+00> : vector<8x512xf32>
    %26 = tpu.matmul %24, %25, %cst_20 {dimension_numbers = #tpu.dot_dimension_numbers<[1], [0], [0], [1], [0, 0, 1, 1], [], []>} : vector<8x256xbf16>, vector<256x512xbf16>, vector<8x512xf32> -> vector<8x512xf32>
    %c0_21 = arith.constant 0 : index
    %c0_22 = arith.constant 0 : index
    %27 = vector.load %arg9[%c0_21, %c0_22] : memref<1x512xf32, #tpu.memory_space<vmem>>, vector<1x512xf32>
    %28 = vector.broadcast %27 : vector<1x512xf32> to vector<8x512xf32>
    %29 = arith.addf %26, %28 : vector<8x512xf32>
    %cst_23 = arith.constant 0.000000e+00 : f32
    %30 = vector.broadcast %cst_23 : f32 to vector<8x512xf32>
    %31 = arith.maximumf %29, %30 : vector<8x512xf32>
    %32 = arith.truncf %31 : vector<8x512xf32> to vector<8x512xbf16>
    %c0_24 = arith.constant 0 : index
    %c0_25 = arith.constant 0 : index
    %33 = vector.load %arg10[%c0_24, %c0_25] : memref<512x1024xbf16, #tpu.memory_space<vmem>>, vector<512x1024xbf16>
    %cst_26 = arith.constant dense<0.000000e+00> : vector<8x1024xf32>
    %34 = tpu.matmul %32, %33, %cst_26 {dimension_numbers = #tpu.dot_dimension_numbers<[1], [0], [0], [1], [0, 0, 1, 1], [], []>} : vector<8x512xbf16>, vector<512x1024xbf16>, vector<8x1024xf32> -> vector<8x1024xf32>
    %c0_27 = arith.constant 0 : index
    %c0_28 = arith.constant 0 : index
    %35 = vector.load %arg11[%c0_27, %c0_28] : memref<1x1024xf32, #tpu.memory_space<vmem>>, vector<1x1024xf32>
    %36 = vector.broadcast %35 : vector<1x1024xf32> to vector<8x1024xf32>
    %37 = arith.addf %34, %36 : vector<8x1024xf32>
    %cst_29 = arith.constant 5.000000e-01 : f32
    %38 = vector.broadcast %cst_29 : f32 to vector<8x1024xf32>
    %39 = arith.mulf %38, %37 : vector<8x1024xf32>
    %40 = math.tanh %39 : vector<8x1024xf32>
    %cst_30 = arith.constant 5.000000e-01 : f32
    %41 = vector.broadcast %cst_30 : f32 to vector<8x1024xf32>
    %42 = arith.mulf %41, %40 : vector<8x1024xf32>
    %cst_31 = arith.constant 5.000000e-01 : f32
    %43 = vector.broadcast %cst_31 : f32 to vector<8x1024xf32>
    %44 = arith.addf %42, %43 : vector<8x1024xf32>
    %c0_32 = arith.constant 0 : index
    %c0_33 = arith.constant 0 : index
    %45 = vector.load %arg12[%c0_32, %c0_33] : memref<8x1024xf32, #tpu.memory_space<vmem>>, vector<8x1024xf32>
    tpu.vector_store %arg12[%c0_32, %c0_33], %44 {strides = array<i32>} : memref<8x1024xf32, #tpu.memory_space<vmem>>, vector<8x1024xf32>,
    return
  }
  func.func @transform_0(%arg0: i32) -> (i32, i32) {
    %c0_i32 = arith.constant 0 : i32
    %c0_i32_0 = arith.constant 0 : i32
    return %arg0, %c0_i32 : i32, i32
  }
  func.func @transform_1(%arg0: i32) -> (i32, i32) {
    %c0_i32 = arith.constant 0 : i32
    %c0_i32_0 = arith.constant 0 : i32
    %c0_i32_1 = arith.constant 0 : i32
    return %c0_i32, %c0_i32_0 : i32, i32
  }
  func.func @transform_2(%arg0: i32) -> (i32, i32) {
    %c0_i32 = arith.constant 0 : i32
    %c0_i32_0 = arith.constant 0 : i32
    %c0_i32_1 = arith.constant 0 : i32
    return %c0_i32, %c0_i32_0 : i32, i32
  }
  func.func @transform_3(%arg0: i32) -> (i32, i32) {
    %c0_i32 = arith.constant 0 : i32
    %c0_i32_0 = arith.constant 0 : i32
    %c0_i32_1 = arith.constant 0 : i32
    return %c0_i32, %c0_i32_0 : i32, i32
  }
  func.func @transform_4(%arg0: i32) -> (i32, i32) {
    %c0_i32 = arith.constant 0 : i32
    %c0_i32_0 = arith.constant 0 : i32
    %c0_i32_1 = arith.constant 0 : i32
    return %c0_i32, %c0_i32_0 : i32, i32
  }
  func.func @transform_5(%arg0: i32) -> (i32, i32) {
    %c0_i32 = arith.constant 0 : i32
    %c0_i32_0 = arith.constant 0 : i32
    %c0_i32_1 = arith.constant 0 : i32
    return %c0_i32, %c0_i32_0 : i32, i32
  }
  func.func @transform_6(%arg0: i32) -> (i32, i32) {
    %c0_i32 = arith.constant 0 : i32
    %c0_i32_0 = arith.constant 0 : i32
    %c0_i32_1 = arith.constant 0 : i32
    return %c0_i32, %c0_i32_0 : i32, i32
  }
  func.func @transform_7(%arg0: i32) -> (i32, i32) {
    %c0_i32 = arith.constant 0 : i32
    %c0_i32_0 = arith.constant 0 : i32
    %c0_i32_1 = arith.constant 0 : i32
    return %c0_i32, %c0_i32_0 : i32, i32
  }
  func.func @transform_8(%arg0: i32) -> (i32, i32) {
    %c0_i32 = arith.constant 0 : i32
    %c0_i32_0 = arith.constant 0 : i32
    %c0_i32_1 = arith.constant 0 : i32
    return %c0_i32, %c0_i32_0 : i32, i32
  }
  func.func @transform_9(%arg0: i32) -> (i32, i32) {
    %c0_i32 = arith.constant 0 : i32
    %c0_i32_0 = arith.constant 0 : i32
    %c0_i32_1 = arith.constant 0 : i32
    return %c0_i32, %c0_i32_0 : i32, i32
  }
  func.func @transform_10(%arg0: i32) -> (i32, i32) {
    %c0_i32 = arith.constant 0 : i32
    %c0_i32_0 = arith.constant 0 : i32
    %c0_i32_1 = arith.constant 0 : i32
    return %c0_i32, %c0_i32_0 : i32, i32
  }
  func.func @transform_11(%arg0: i32) -> (i32, i32) {
    %c0_i32 = arith.constant 0 : i32
    %c0_i32_0 = arith.constant 0 : i32
    return %arg0, %c0_i32 : i32, i32
  }
}

</mosaic_0001>

<llo_original>
// kernel: _forward_impl.1
$region0: #{_forward_impl.1}
  #allocation0 [shape = 'u32[]', space=smem, size = 0x4, offset = 0x4, fixed_abs, tag = 'smem constant byte address 0x4 - core index']
  #allocation1 [shape = 'u32[144,128]{1,0:T(1,128)}', space=vmem, size = 0x12000, scoped, tag = 'internal scratch']
  %s0 = inlined_call_operand.vmem [shape: bf16[8,1024], index: 0, kind: input, shape index: {}]
  %s1 = inlined_call_operand.vmem [shape: bf16[1024,512], index: 1, kind: input, shape index: {}]
  %s2 = inlined_call_operand.vmem [shape: f32[1,512], index: 2, kind: input, shape index: {}]
  %s3 = inlined_call_operand.vmem [shape: bf16[512,256], index: 3, kind: input, shape index: {}]
  %s4 = inlined_call_operand.vmem [shape: f32[1,256], index: 4, kind: input, shape index: {}]
  %s5 = inlined_call_operand.vmem [shape: bf16[256,256], index: 5, kind: input, shape index: {}]
  %s6 = inlined_call_operand.vmem [shape: f32[1,256], index: 6, kind: input, shape index: {}]
  %s7 = inlined_call_operand.vmem [shape: bf16[256,512], index: 7, kind: input, shape index: {}]
  %s8 = inlined_call_operand.vmem [shape: f32[1,512], index: 8, kind: input, shape index: {}]
  %s9 = inlined_call_operand.vmem [shape: bf16[512,1024], index: 9, kind: input, shape index: {}]
  %s10 = inlined_call_operand.vmem [shape: f32[1,1024], index: 10, kind: input, shape index: {}]
  %s11 = inlined_call_operand.vmem [shape: f32[8,1024], index: 11, kind: output, shape index: {}]
  %s12 = sld [smem:[#allocation0]]
  $region54: #{_forward_impl.1} parent=0
    _
  %s14 = ssub.s32 1, %s12
  %s15 = scalar_select 0, %s14, %s12
  // Predicated region
  $region2: #{_forward_impl.1} parent=0 // pred_check
    _
  $region3: #{_forward_impl.1} parent=0 // pred_check_branch
    %17 = sbr.rel (0) target = $region5
  $region4: #{_forward_impl.1} parent=0 // pred_region
    _
  $region5: #{_forward_impl.1} parent=0 // pred_fallthru
    _
  // Predicated region
  $region6: #{_forward_impl.1} parent=0 // pred_check
    _
  $region7: #{_forward_impl.1} parent=0 // pred_check_branch
    %19 = sbr.rel (0) target = $region9
  $region8: #{_forward_impl.1} parent=0 // pred_region
    _
  $region9: #{_forward_impl.1} parent=0 // pred_fallthru
    _
  // Predicated region
  $region10: #{_forward_impl.1} parent=0 // pred_check
    _
  $region11: #{_forward_impl.1} parent=0 // pred_check_branch
    %21 = sbr.rel (0) target = $region13
  $region12: #{_forward_impl.1} parent=0 // pred_region
    _
  $region13: #{_forward_impl.1} parent=0 // pred_fallthru
    _
  // Predicated region
  $region14: #{_forward_impl.1} parent=0 // pred_check
    _
  $region15: #{_forward_impl.1} parent=0 // pred_check_branch
    %23 = sbr.rel (0) target = $region17
  $region16: #{_forward_impl.1} parent=0 // pred_region
    _
  $region17: #{_forward_impl.1} parent=0 // pred_fallthru
    _
  // Predicated region
  $region18: #{_forward_impl.1} parent=0 // pred_check
    _
  $region19: #{_forward_impl.1} parent=0 // pred_check_branch
    %25 = sbr.rel (0) target = $region21
  $region20: #{_forward_impl.1} parent=0 // pred_region
    _
  $region21: #{_forward_impl.1} parent=0 // pred_fallthru
    _
  // Predicated region
  $region22: #{_forward_impl.1} parent=0 // pred_check
    _
  $region23: #{_forward_impl.1} parent=0 // pred_check_branch
    %27 = sbr.rel (0) target = $region25
  $region24: #{_forward_impl.1} parent=0 // pred_region
    _
  $region25: #{_forward_impl.1} parent=0 // pred_fallthru
    _
  // Predicated region
  $region26: #{_forward_impl.1} parent=0 // pred_check
    _
  $region27: #{_forward_impl.1} parent=0 // pred_check_branch
    %29 = sbr.rel (0) target = $region29
  $region28: #{_forward_impl.1} parent=0 // pred_region
    _
  $region29: #{_forward_impl.1} parent=0 // pred_fallthru
    _
  // Predicated region
  $region30: #{_forward_impl.1} parent=0 // pred_check
    _
  $region31: #{_forward_impl.1} parent=0 // pred_check_branch
    %31 = sbr.rel (0) target = $region33
  $region32: #{_forward_impl.1} parent=0 // pred_region
    _
  $region33: #{_forward_impl.1} parent=0 // pred_fallthru
    _
  // Predicated region
  $region34: #{_forward_impl.1} parent=0 // pred_check
    _
  $region35: #{_forward_impl.1} parent=0 // pred_check_branch
    %33 = sbr.rel (0) target = $region37
  $region36: #{_forward_impl.1} parent=0 // pred_region
    _
  $region37: #{_forward_impl.1} parent=0 // pred_fallthru
    _
  // Predicated region
  $region38: #{_forward_impl.1} parent=0 // pred_check
    _
  $region39: #{_forward_impl.1} parent=0 // pred_check_branch
    %35 = sbr.rel (0) target = $region41
  $region40: #{_forward_impl.1} parent=0 // pred_region
    _
  $region41: #{_forward_impl.1} parent=0 // pred_fallthru
    _
  // Predicated region
  $region42: #{_forward_impl.1} parent=0 // pred_check
    _
  $region43: #{_forward_impl.1} parent=0 // pred_check_branch
    %37 = sbr.rel (0) target = $region45
  $region44: #{_forward_impl.1} parent=0 // pred_region
    _
  $region45: #{_forward_impl.1} parent=0 // pred_fallthru
    _
  %v38 = vld [vmem:[%s0] sm:$0xff]
  %v39 = vld [vmem:[%s0 + $0x8] sm:$0xff]
  %v40 = vld [vmem:[%s0 + $0x10] sm:$0xff]
  %v41 = vld [vmem:[%s0 + $0x18] sm:$0xff]
  %v42 = vld [vmem:[%s1] sm:$0xff]
  %v43 = vld [vmem:[%s1 + $0x8] sm:$0xff]
  %v44 = vld [vmem:[%s1 + $0x10] sm:$0xff]
  %v45 = vld [vmem:[%s1 + $0x18] sm:$0xff]
  %v46 = vld [vmem:[%s1 + $0x20] sm:$0xff]
  %v47 = vld [vmem:[%s1 + $0x28] sm:$0xff]
  %v48 = vld [vmem:[%s1 + $0x30] sm:$0xff]
  %v49 = vld [vmem:[%s1 + $0x38] sm:$0xff]
  %v50 = vld [vmem:[%s1 + $0x40] sm:$0xff]
  %v51 = vld [vmem:[%s1 + $0x48] sm:$0xff]
  %v52 = vld [vmem:[%s1 + $0x50] sm:$0xff]
  %v53 = vld [vmem:[%s1 + $0x58] sm:$0xff]
  %v54 = vld [vmem:[%s1 + $0x60] sm:$0xff]
  %v55 = vld [vmem:[%s1 + $0x68] sm:$0xff]
  %v56 = vld [vmem:[%s1 + $0x70] sm:$0xff]
  %v57 = vld [vmem:[%s1 + $0x78] sm:$0xff]
  %v58 = vld [vmem:[%s1 + $0x80] sm:$0xff]
  %v59 = vld [vmem:[%s1 + $0x88] sm:$0xff]
  %v60 = vld [vmem:[%s1 + $0x90] sm:$0xff]
  %v61 = vld [vmem:[%s1 + $0x98] sm:$0xff]
  %v62 = vld [vmem:[%s1 + $0xa0] sm:$0xff]
  %v63 = vld [vmem:[%s1 + $0xa8] sm:$0xff]
  %v64 = vld [vmem:[%s1 + $0xb0] sm:$0xff]
  %v65 = vld [vmem:[%s1 + $0xb8] sm:$0xff]
  %v66 = vld [vmem:[%s1 + $0xc0] sm:$0xff]
  %v67 = vld [vmem:[%s1 + $0xc8] sm:$0xff]
  %v68 = vld [vmem:[%s1 + $0xd0] sm:$0xff]
  %v69 = vld [vmem:[%s1 + $0xd8] sm:$0xff]
  %v70 = vld [vmem:[%s1 + $0xe0] sm:$0xff]
  %v71 = vld [vmem:[%s1 + $0xe8] sm:$0xff]
  %v72 = vld [vmem:[%s1 + $0xf0] sm:$0xff]
  %v73 = vld [vmem:[%s1 + $0xf8] sm:$0xff]
  %v74 = vld [vmem:[%s1 + $0x100] sm:$0xff]
  %v75 = vld [vmem:[%s1 + $0x108] sm:$0xff]
  %v76 = vld [vmem:[%s1 + $0x110] sm:$0xff]
  %v77 = vld [vmem:[%s1 + $0x118] sm:$0xff]
  %v78 = vld [vmem:[%s1 + $0x120] sm:$0xff]
  %v79 = vld [vmem:[%s1 + $0x128] sm:$0xff]
  %v80 = vld [vmem:[%s1 + $0x130] sm:$0xff]
  %v81 = vld [vmem:[%s1 + $0x138] sm:$0xff]
  %v82 = vld [vmem:[%s1 + $0x140] sm:$0xff]
  %v83 = vld [vmem:[%s1 + $0x148] sm:$0xff]
  %v84 = vld [vmem:[%s1 + $0x150] sm:$0xff]
  %v85 = vld [vmem:[%s1 + $0x158] sm:$0xff]
  %v86 = vld [vmem:[%s1 + $0x160] sm:$0xff]
  %v87 = vld [vmem:[%s1 + $0x168] sm:$0xff]
  %v88 = vld [vmem:[%s1 + $0x170] sm:$0xff]
  %v89 = vld [vmem:[%s1 + $0x178] sm:$0xff]
  %v90 = vld [vmem:[%s1 + $0x180] sm:$0xff]
  %v91 = vld [vmem:[%s1 + $0x188] sm:$0xff]
  %v92 = vld [vmem:[%s1 + $0x190] sm:$0xff]
  %v93 = vld [vmem:[%s1 + $0x198] sm:$0xff]
  %v94 = vld [vmem:[%s1 + $0x1a0] sm:$0xff]
  %v95 = vld [vmem:[%s1 + $0x1a8] sm:$0xff]
  %v96 = vld [vmem:[%s1 + $0x1b0] sm:$0xff]
  %v97 = vld [vmem:[%s1 + $0x1b8] sm:$0xff]
  %v98 = vld [vmem:[%s1 + $0x1c0] sm:$0xff]
  %v99 = vld [vmem:[%s1 + $0x1c8] sm:$0xff]
  %v100 = vld [vmem:[%s1 + $0x1d0] sm:$0xff]
  %v101 = vld [vmem:[%s1 + $0x1d8] sm:$0xff]
  %v102 = vld [vmem:[%s1 + $0x1e0] sm:$0xff]
  %v103 = vld [vmem:[%s1 + $0x1e8] sm:$0xff]
  %v104 = vld [vmem:[%s1 + $0x1f0] sm:$0xff]
  %v105 = vld [vmem:[%s1 + $0x1f8] sm:$0xff]
  %v106 = vld [vmem:[%s1 + $0x200] sm:$0xff]
  %v107 = vld [vmem:[%s1 + $0x208] sm:$0xff]
  %v108 = vld [vmem:[%s1 + $0x210] sm:$0xff]
  %v109 = vld [vmem:[%s1 + $0x218] sm:$0xff]
  %v110 = vld [vmem:[%s1 + $0x220] sm:$0xff]
  %v111 = vld [vmem:[%s1 + $0x228] sm:$0xff]
  %v112 = vld [vmem:[%s1 + $0x230] sm:$0xff]
  %v113 = vld [vmem:[%s1 + $0x238] sm:$0xff]
  %v114 = vld [vmem:[%s1 + $0x240] sm:$0xff]
  %v115 = vld [vmem:[%s1 + $0x248] sm:$0xff]
  %v116 = vld [vmem:[%s1 + $0x250] sm:$0xff]
  %v117 = vld [vmem:[%s1 + $0x258] sm:$0xff]
  %v118 = vld [vmem:[%s1 + $0x260] sm:$0xff]
  %v119 = vld [vmem:[%s1 + $0x268] sm:$0xff]
  %v120 = vld [vmem:[%s1 + $0x270] sm:$0xff]
  %v121 = vld [vmem:[%s1 + $0x278] sm:$0xff]
  %v122 = vld [vmem:[%s1 + $0x280] sm:$0xff]
  %v123 = vld [vmem:[%s1 + $0x288] sm:$0xff]
  %v124 = vld [vmem:[%s1 + $0x290] sm:$0xff]
  %v125 = vld [vmem:[%s1 + $0x298] sm:$0xff]
  %v126 = vld [vmem:[%s1 + $0x2a0] sm:$0xff]
  %v127 = vld [vmem:[%s1 + $0x2a8] sm:$0xff]
  %v128 = vld [vmem:[%s1 + $0x2b0] sm:$0xff]
  %v129 = vld [vmem:[%s1 + $0x2b8] sm:$0xff]
  %v130 = vld [vmem:[%s1 + $0x2c0] sm:$0xff]
  %v131 = vld [vmem:[%s1 + $0x2c8] sm:$0xff]
  %v132 = vld [vmem:[%s1 + $0x2d0] sm:$0xff]
  %v133 = vld [vmem:[%s1 + $0x2d8] sm:$0xff]
  %v134 = vld [vmem:[%s1 + $0x2e0] sm:$0xff]
  %v135 = vld [vmem:[%s1 + $0x2e8] sm:$0xff]
  %v136 = vld [vmem:[%s1 + $0x2f0] sm:$0xff]
  %v137 = vld [vmem:[%s1 + $0x2f8] sm:$0xff]
  %v138 = vld [vmem:[%s1 + $0x300] sm:$0xff]
  %v139 = vld [vmem:[%s1 + $0x308] sm:$0xff]
  %v140 = vld [vmem:[%s1 + $0x310] sm:$0xff]
  %v141 = vld [vmem:[%s1 + $0x318] sm:$0xff]
  %v142 = vld [vmem:[%s1 + $0x320] sm:$0xff]
  %v143 = vld [vmem:[%s1 + $0x328] sm:$0xff]
  %v144 = vld [vmem:[%s1 + $0x330] sm:$0xff]
  %v145 = vld [vmem:[%s1 + $0x338] sm:$0xff]
  %v146 = vld [vmem:[%s1 + $0x340] sm:$0xff]
  %v147 = vld [vmem:[%s1 + $0x348] sm:$0xff]
  %v148 = vld [vmem:[%s1 + $0x350] sm:$0xff]
  %v149 = vld [vmem:[%s1 + $0x358] sm:$0xff]
  %v150 = vld [vmem:[%s1 + $0x360] sm:$0xff]
  %v151 = vld [vmem:[%s1 + $0x368] sm:$0xff]
  %v152 = vld [vmem:[%s1 + $0x370] sm:$0xff]
  %v153 = vld [vmem:[%s1 + $0x378] sm:$0xff]
  %v154 = vld [vmem:[%s1 + $0x380] sm:$0xff]
  %v155 = vld [vmem:[%s1 + $0x388] sm:$0xff]
  %v156 = vld [vmem:[%s1 + $0x390] sm:$0xff]
  %v157 = vld [vmem:[%s1 + $0x398] sm:$0xff]
  %v158 = vld [vmem:[%s1 + $0x3a0] sm:$0xff]
  %v159 = vld [vmem:[%s1 + $0x3a8] sm:$0xff]
  %v160 = vld [vmem:[%s1 + $0x3b0] sm:$0xff]
  %v161 = vld [vmem:[%s1 + $0x3b8] sm:$0xff]
  %v162 = vld [vmem:[%s1 + $0x3c0] sm:$0xff]
  %v163 = vld [vmem:[%s1 + $0x3c8] sm:$0xff]
  %v164 = vld [vmem:[%s1 + $0x3d0] sm:$0xff]
  %v165 = vld [vmem:[%s1 + $0x3d8] sm:$0xff]
  %v166 = vld [vmem:[%s1 + $0x3e0] sm:$0xff]
  %v167 = vld [vmem:[%s1 + $0x3e8] sm:$0xff]
  %v168 = vld [vmem:[%s1 + $0x3f0] sm:$0xff]
  %v169 = vld [vmem:[%s1 + $0x3f8] sm:$0xff]
  %v170 = vld [vmem:[%s1 + $0x400] sm:$0xff]
  %v171 = vld [vmem:[%s1 + $0x408] sm:$0xff]
  %v172 = vld [vmem:[%s1 + $0x410] sm:$0xff]
  %v173 = vld [vmem:[%s1 + $0x418] sm:$0xff]
  %v174 = vld [vmem:[%s1 + $0x420] sm:$0xff]
  %v175 = vld [vmem:[%s1 + $0x428] sm:$0xff]
  %v176 = vld [vmem:[%s1 + $0x430] sm:$0xff]
  %v177 = vld [vmem:[%s1 + $0x438] sm:$0xff]
  %v178 = vld [vmem:[%s1 + $0x440] sm:$0xff]
  %v179 = vld [vmem:[%s1 + $0x448] sm:$0xff]
  %v180 = vld [vmem:[%s1 + $0x450] sm:$0xff]
  %v181 = vld [vmem:[%s1 + $0x458] sm:$0xff]
  %v182 = vld [vmem:[%s1 + $0x460] sm:$0xff]
  %v183 = vld [vmem:[%s1 + $0x468] sm:$0xff]
  %v184 = vld [vmem:[%s1 + $0x470] sm:$0xff]
  %v185 = vld [vmem:[%s1 + $0x478] sm:$0xff]
  %v186 = vld [vmem:[%s1 + $0x480] sm:$0xff]
  %v187 = vld [vmem:[%s1 + $0x488] sm:$0xff]
  %v188 = vld [vmem:[%s1 + $0x490] sm:$0xff]
  %v189 = vld [vmem:[%s1 + $0x498] sm:$0xff]
  %v190 = vld [vmem:[%s1 + $0x4a0] sm:$0xff]
  %v191 = vld [vmem:[%s1 + $0x4a8] sm:$0xff]
  %v192 = vld [vmem:[%s1 + $0x4b0] sm:$0xff]
  %v193 = vld [vmem:[%s1 + $0x4b8] sm:$0xff]
  %v194 = vld [vmem:[%s1 + $0x4c0] sm:$0xff]
  %v195 = vld [vmem:[%s1 + $0x4c8] sm:$0xff]
  %v196 = vld [vmem:[%s1 + $0x4d0] sm:$0xff]
  %v197 = vld [vmem:[%s1 + $0x4d8] sm:$0xff]
  %v198 = vld [vmem:[%s1 + $0x4e0] sm:$0xff]
  %v199 = vld [vmem:[%s1 + $0x4e8] sm:$0xff]
  %v200 = vld [vmem:[%s1 + $0x4f0] sm:$0xff]
  %v201 = vld [vmem:[%s1 + $0x4f8] sm:$0xff]
  %v202 = vld [vmem:[%s1 + $0x500] sm:$0xff]
  %v203 = vld [vmem:[%s1 + $0x508] sm:$0xff]
  %v204 = vld [vmem:[%s1 + $0x510] sm:$0xff]
  %v205 = vld [vmem:[%s1 + $0x518] sm:$0xff]
  %v206 = vld [vmem:[%s1 + $0x520] sm:$0xff]
  %v207 = vld [vmem:[%s1 + $0x528] sm:$0xff]
  %v208 = vld [vmem:[%s1 + $0x530] sm:$0xff]
  %v209 = vld [vmem:[%s1 + $0x538] sm:$0xff]
  %v210 = vld [vmem:[%s1 + $0x540] sm:$0xff]
  %v211 = vld [vmem:[%s1 + $0x548] sm:$0xff]
  %v212 = vld [vmem:[%s1 + $0x550] sm:$0xff]
  %v213 = vld [vmem:[%s1 + $0x558] sm:$0xff]
  %v214 = vld [vmem:[%s1 + $0x560] sm:$0xff]
  %v215 = vld [vmem:[%s1 + $0x568] sm:$0xff]
  %v216 = vld [vmem:[%s1 + $0x570] sm:$0xff]
  %v217 = vld [vmem:[%s1 + $0x578] sm:$0xff]
  %v218 = vld [vmem:[%s1 + $0x580] sm:$0xff]
  %v219 = vld [vmem:[%s1 + $0x588] sm:$0xff]
  %v220 = vld [vmem:[%s1 + $0x590] sm:$0xff]
  %v221 = vld [vmem:[%s1 + $0x598] sm:$0xff]
  %v222 = vld [vmem:[%s1 + $0x5a0] sm:$0xff]
  %v223 = vld [vmem:[%s1 + $0x5a8] sm:$0xff]
  %v224 = vld [vmem:[%s1 + $0x5b0] sm:$0xff]
  %v225 = vld [vmem:[%s1 + $0x5b8] sm:$0xff]
  %v226 = vld [vmem:[%s1 + $0x5c0] sm:$0xff]
  %v227 = vld [vmem:[%s1 + $0x5c8] sm:$0xff]
  %v228 = vld [vmem:[%s1 + $0x5d0] sm:$0xff]
  %v229 = vld [vmem:[%s1 + $0x5d8] sm:$0xff]
  %v230 = vld [vmem:[%s1 + $0x5e0] sm:$0xff]
  %v231 = vld [vmem:[%s1 + $0x5e8] sm:$0xff]
  %v232 = vld [vmem:[%s1 + $0x5f0] sm:$0xff]
  %v233 = vld [vmem:[%s1 + $0x5f8] sm:$0xff]
  %v234 = vld [vmem:[%s1 + $0x600] sm:$0xff]
  %v235 = vld [vmem:[%s1 + $0x608] sm:$0xff]
  %v236 = vld [vmem:[%s1 + $0x610] sm:$0xff]
  %v237 = vld [vmem:[%s1 + $0x618] sm:$0xff]
  %v238 = vld [vmem:[%s1 + $0x620] sm:$0xff]
  %v239 = vld [vmem:[%s1 + $0x628] sm:$0xff]
  %v240 = vld [vmem:[%s1 + $0x630] sm:$0xff]
  %v241 = vld [vmem:[%s1 + $0x638] sm:$0xff]
  %v242 = vld [vmem:[%s1 + $0x640] sm:$0xff]
  %v243 = vld [vmem:[%s1 + $0x648] sm:$0xff]
  %v244 = vld [vmem:[%s1 + $0x650] sm:$0xff]
  %v245 = vld [vmem:[%s1 + $0x658] sm:$0xff]
  %v246 = vld [vmem:[%s1 + $0x660] sm:$0xff]
  %v247 = vld [vmem:[%s1 + $0x668] sm:$0xff]
  %v248 = vld [vmem:[%s1 + $0x670] sm:$0xff]
  %v249 = vld [vmem:[%s1 + $0x678] sm:$0xff]
  %v250 = vld [vmem:[%s1 + $0x680] sm:$0xff]
  %v251 = vld [vmem:[%s1 + $0x688] sm:$0xff]
  %v252 = vld [vmem:[%s1 + $0x690] sm:$0xff]
  %v253 = vld [vmem:[%s1 + $0x698] sm:$0xff]
  %v254 = vld [vmem:[%s1 + $0x6a0] sm:$0xff]
  %v255 = vld [vmem:[%s1 + $0x6a8] sm:$0xff]
  %v256 = vld [vmem:[%s1 + $0x6b0] sm:$0xff]
  %v257 = vld [vmem:[%s1 + $0x6b8] sm:$0xff]
  %v258 = vld [vmem:[%s1 + $0x6c0] sm:$0xff]
  %v259 = vld [vmem:[%s1 + $0x6c8] sm:$0xff]
  %v260 = vld [vmem:[%s1 + $0x6d0] sm:$0xff]
  %v261 = vld [vmem:[%s1 + $0x6d8] sm:$0xff]
  %v262 = vld [vmem:[%s1 + $0x6e0] sm:$0xff]
  %v263 = vld [vmem:[%s1 + $0x6e8] sm:$0xff]
  %v264 = vld [vmem:[%s1 + $0x6f0] sm:$0xff]
  %v265 = vld [vmem:[%s1 + $0x6f8] sm:$0xff]
  %v266 = vld [vmem:[%s1 + $0x700] sm:$0xff]
  %v267 = vld [vmem:[%s1 + $0x708] sm:$0xff]
  %v268 = vld [vmem:[%s1 + $0x710] sm:$0xff]
  %v269 = vld [vmem:[%s1 + $0x718] sm:$0xff]
  %v270 = vld [vmem:[%s1 + $0x720] sm:$0xff]
  %v271 = vld [vmem:[%s1 + $0x728] sm:$0xff]
  %v272 = vld [vmem:[%s1 + $0x730] sm:$0xff]
  %v273 = vld [vmem:[%s1 + $0x738] sm:$0xff]
  %v274 = vld [vmem:[%s1 + $0x740] sm:$0xff]
  %v275 = vld [vmem:[%s1 + $0x748] sm:$0xff]
  %v276 = vld [vmem:[%s1 + $0x750] sm:$0xff]
  %v277 = vld [vmem:[%s1 + $0x758] sm:$0xff]
  %v278 = vld [vmem:[%s1 + $0x760] sm:$0xff]
  %v279 = vld [vmem:[%s1 + $0x768] sm:$0xff]
  %v280 = vld [vmem:[%s1 + $0x770] sm:$0xff]
  %v281 = vld [vmem:[%s1 + $0x778] sm:$0xff]
  %v282 = vld [vmem:[%s1 + $0x780] sm:$0xff]
  %v283 = vld [vmem:[%s1 + $0x788] sm:$0xff]
  %v284 = vld [vmem:[%s1 + $0x790] sm:$0xff]
  %v285 = vld [vmem:[%s1 + $0x798] sm:$0xff]
  %v286 = vld [vmem:[%s1 + $0x7a0] sm:$0xff]
  %v287 = vld [vmem:[%s1 + $0x7a8] sm:$0xff]
  %v288 = vld [vmem:[%s1 + $0x7b0] sm:$0xff]
  %v289 = vld [vmem:[%s1 + $0x7b8] sm:$0xff]
  %v290 = vld [vmem:[%s1 + $0x7c0] sm:$0xff]
  %v291 = vld [vmem:[%s1 + $0x7c8] sm:$0xff]
  %v292 = vld [vmem:[%s1 + $0x7d0] sm:$0xff]
  %v293 = vld [vmem:[%s1 + $0x7d8] sm:$0xff]
  %v294 = vld [vmem:[%s1 + $0x7e0] sm:$0xff]
  %v295 = vld [vmem:[%s1 + $0x7e8] sm:$0xff]
  %v296 = vld [vmem:[%s1 + $0x7f0] sm:$0xff]
  %v297 = vld [vmem:[%s1 + $0x7f8] sm:$0xff]
  %v298 = vld [vmem:[%s2] sm:$0xf]
  %v300 = vlaneseq
  %v301 = vshrl.u32 %v300, 7
  %v302 = vsub.s32 0, %v301
  %v303 = vrot.slane %v298, %v302
  %v304 = vlaneseq
  %v305 = vshrl.u32 %v304, 7
  %v306 = vsub.s32 1, %v305
  %v307 = vrot.slane %v298, %v306
  %v308 = vlaneseq
  %v309 = vshrl.u32 %v308, 7
  %v310 = vsub.s32 2, %v309
  %v311 = vrot.slane %v298, %v310
  %v312 = vlaneseq
  %v313 = vshrl.u32 %v312, 7
  %v314 = vsub.s32 3, %v313
  %v315 = vrot.slane %v298, %v314
  %v324 = vunpack.c.l.b16 %v38
  %v325 = vunpack.c.h.b16 %v38
  %v326 = vunpack.c.l.b16 %v39
  %v327 = vunpack.c.h.b16 %v39
  %v328 = vunpack.c.l.b16 %v40
  %v329 = vunpack.c.h.b16 %v40
  %v330 = vunpack.c.l.b16 %v41
  %v331 = vunpack.c.h.b16 %v41
  %v332 = vpack.c.b16 %v324, %v324
  %v333 = vpack.c.b16 %v325, %v325
  %v334 = vpack.c.b16 %v326, %v326
  %v335 = vpack.c.b16 %v327, %v327
  %v336 = vpack.c.b16 %v328, %v328
  %v337 = vpack.c.b16 %v329, %v329
  %v338 = vpack.c.b16 %v330, %v330
  %v339 = vpack.c.b16 %v331, %v331
  %v604 = vunpack.c.l.b16 %v42
  %v605 = vunpack.c.h.b16 %v42
  %v606 = vunpack.c.l.b16 %v43
  %v607 = vunpack.c.h.b16 %v43
  %v608 = vunpack.c.l.b16 %v44
  %v609 = vunpack.c.h.b16 %v44
  %v610 = vunpack.c.l.b16 %v45
  %v611 = vunpack.c.h.b16 %v45
  %v612 = vunpack.c.l.b16 %v46
  %v613 = vunpack.c.h.b16 %v46
  %v614 = vunpack.c.l.b16 %v47
  %v615 = vunpack.c.h.b16 %v47
  %v616 = vunpack.c.l.b16 %v48
  %v617 = vunpack.c.h.b16 %v48
  %v618 = vunpack.c.l.b16 %v49
  %v619 = vunpack.c.h.b16 %v49
  %v620 = vunpack.c.l.b16 %v50
  %v621 = vunpack.c.h.b16 %v50
  %v622 = vunpack.c.l.b16 %v51
  %v623 = vunpack.c.h.b16 %v51
  %v624 = vunpack.c.l.b16 %v52
  %v625 = vunpack.c.h.b16 %v52
  %v626 = vunpack.c.l.b16 %v53
  %v627 = vunpack.c.h.b16 %v53
  %v628 = vunpack.c.l.b16 %v54
  %v629 = vunpack.c.h.b16 %v54
  %v630 = vunpack.c.l.b16 %v55
  %v631 = vunpack.c.h.b16 %v55
  %v632 = vunpack.c.l.b16 %v56
  %v633 = vunpack.c.h.b16 %v56
  %v634 = vunpack.c.l.b16 %v57
  %v635 = vunpack.c.h.b16 %v57
  %v636 = vunpack.c.l.b16 %v58
  %v637 = vunpack.c.h.b16 %v58
  %v638 = vunpack.c.l.b16 %v59
  %v639 = vunpack.c.h.b16 %v59
  %v640 = vunpack.c.l.b16 %v60
  %v641 = vunpack.c.h.b16 %v60
  %v642 = vunpack.c.l.b16 %v61
  %v643 = vunpack.c.h.b16 %v61
  %v644 = vunpack.c.l.b16 %v62
  %v645 = vunpack.c.h.b16 %v62
  %v646 = vunpack.c.l.b16 %v63
  %v647 = vunpack.c.h.b16 %v63
  %v648 = vunpack.c.l.b16 %v64
  %v649 = vunpack.c.h.b16 %v64
  %v650 = vunpack.c.l.b16 %v65
  %v651 = vunpack.c.h.b16 %v65
  %v652 = vunpack.c.l.b16 %v66
  %v653 = vunpack.c.h.b16 %v66
  %v654 = vunpack.c.l.b16 %v67
  %v655 = vunpack.c.h.b16 %v67
  %v656 = vunpack.c.l.b16 %v68
  %v657 = vunpack.c.h.b16 %v68
  %v658 = vunpack.c.l.b16 %v69
  %v659 = vunpack.c.h.b16 %v69
  %v660 = vunpack.c.l.b16 %v70
  %v661 = vunpack.c.h.b16 %v70
  %v662 = vunpack.c.l.b16 %v71
  %v663 = vunpack.c.h.b16 %v71
  %v664 = vunpack.c.l.b16 %v72
  %v665 = vunpack.c.h.b16 %v72
  %v666 = vunpack.c.l.b16 %v73
  %v667 = vunpack.c.h.b16 %v73
  %v668 = vunpack.c.l.b16 %v74
  %v669 = vunpack.c.h.b16 %v74
  %v670 = vunpack.c.l.b16 %v75
  %v671 = vunpack.c.h.b16 %v75
  %v672 = vunpack.c.l.b16 %v76
  %v673 = vunpack.c.h.b16 %v76
  %v674 = vunpack.c.l.b16 %v77
  %v675 = vunpack.c.h.b16 %v77
  %v676 = vunpack.c.l.b16 %v78
  %v677 = vunpack.c.h.b16 %v78
  %v678 = vunpack.c.l.b16 %v79
  %v679 = vunpack.c.h.b16 %v79
  %v680 = vunpack.c.l.b16 %v80
  %v681 = vunpack.c.h.b16 %v80
  %v682 = vunpack.c.l.b16 %v81
  %v683 = vunpack.c.h.b16 %v81
  %v684 = vunpack.c.l.b16 %v82
  %v685 = vunpack.c.h.b16 %v82
  %v686 = vunpack.c.l.b16 %v83
  %v687 = vunpack.c.h.b16 %v83
  %v688 = vunpack.c.l.b16 %v84
  %v689 = vunpack.c.h.b16 %v84
  %v690 = vunpack.c.l.b16 %v85
  %v691 = vunpack.c.h.b16 %v85
  %v692 = vunpack.c.l.b16 %v86
  %v693 = vunpack.c.h.b16 %v86
  %v694 = vunpack.c.l.b16 %v87
  %v695 = vunpack.c.h.b16 %v87
  %v696 = vunpack.c.l.b16 %v88
  %v697 = vunpack.c.h.b16 %v88
  %v698 = vunpack.c.l.b16 %v89
  %v699 = vunpack.c.h.b16 %v89
  %v700 = vunpack.c.l.b16 %v90
  %v701 = vunpack.c.h.b16 %v90
  %v702 = vunpack.c.l.b16 %v91
  %v703 = vunpack.c.h.b16 %v91
  %v704 = vunpack.c.l.b16 %v92
  %v705 = vunpack.c.h.b16 %v92
  %v706 = vunpack.c.l.b16 %v93
  %v707 = vunpack.c.h.b16 %v93
  %v708 = vunpack.c.l.b16 %v94
  %v709 = vunpack.c.h.b16 %v94
  %v710 = vunpack.c.l.b16 %v95
  %v711 = vunpack.c.h.b16 %v95
  %v712 = vunpack.c.l.b16 %v96
  %v713 = vunpack.c.h.b16 %v96
  %v714 = vunpack.c.l.b16 %v97
  %v715 = vunpack.c.h.b16 %v97
  %v716 = vunpack.c.l.b16 %v98
  %v717 = vunpack.c.h.b16 %v98
  %v718 = vunpack.c.l.b16 %v99
  %v719 = vunpack.c.h.b16 %v99
  %v720 = vunpack.c.l.b16 %v100
  %v721 = vunpack.c.h.b16 %v100
  %v722 = vunpack.c.l.b16 %v101
  %v723 = vunpack.c.h.b16 %v101
  %v724 = vunpack.c.l.b16 %v102
  %v725 = vunpack.c.h.b16 %v102
  %v726 = vunpack.c.l.b16 %v103
  %v727 = vunpack.c.h.b16 %v103
  %v728 = vunpack.c.l.b16 %v104
  %v729 = vunpack.c.h.b16 %v104
  %v730 = vunpack.c.l.b16 %v105
  %v731 = vunpack.c.h.b16 %v105
  %v732 = vunpack.c.l.b16 %v106
  %v733 = vunpack.c.h.b16 %v106
  %v734 = vunpack.c.l.b16 %v107
  %v735 = vunpack.c.h.b16 %v107
  %v736 = vunpack.c.l.b16 %v108
  %v737 = vunpack.c.h.b16 %v108
  %v738 = vunpack.c.l.b16 %v109
  %v739 = vunpack.c.h.b16 %v109
  %v740 = vunpack.c.l.b16 %v110
  %v741 = vunpack.c.h.b16 %v110
  %v742 = vunpack.c.l.b16 %v111
  %v743 = vunpack.c.h.b16 %v111
  %v744 = vunpack.c.l.b16 %v112
  %v745 = vunpack.c.h.b16 %v112
  %v746 = vunpack.c.l.b16 %v113
  %v747 = vunpack.c.h.b16 %v113
  %v748 = vunpack.c.l.b16 %v114
  %v749 = vunpack.c.h.b16 %v114
  %v750 = vunpack.c.l.b16 %v115
  %v751 = vunpack.c.h.b16 %v115
  %v752 = vunpack.c.l.b16 %v116
  %v753 = vunpack.c.h.b16 %v116
  %v754 = vunpack.c.l.b16 %v117
  %v755 = vunpack.c.h.b16 %v117
  %v756 = vunpack.c.l.b16 %v118
  %v757 = vunpack.c.h.b16 %v118
  %v758 = vunpack.c.l.b16 %v119
  %v759 = vunpack.c.h.b16 %v119
  %v760 = vunpack.c.l.b16 %v120
  %v761 = vunpack.c.h.b16 %v120
  %v762 = vunpack.c.l.b16 %v121
  %v763 = vunpack.c.h.b16 %v121
  %v764 = vunpack.c.l.b16 %v122
  %v765 = vunpack.c.h.b16 %v122
  %v766 = vunpack.c.l.b16 %v123
  %v767 = vunpack.c.h.b16 %v123
  %v768 = vunpack.c.l.b16 %v124
  %v769 = vunpack.c.h.b16 %v124
  %v770 = vunpack.c.l.b16 %v125
  %v771 = vunpack.c.h.b16 %v125
  %v772 = vunpack.c.l.b16 %v126
  %v773 = vunpack.c.h.b16 %v126
  %v774 = vunpack.c.l.b16 %v127
  %v775 = vunpack.c.h.b16 %v127
  %v776 = vunpack.c.l.b16 %v128
  %v777 = vunpack.c.h.b16 %v128
  %v778 = vunpack.c.l.b16 %v129
  %v779 = vunpack.c.h.b16 %v129
  %v780 = vunpack.c.l.b16 %v130
  %v781 = vunpack.c.h.b16 %v130
  %v782 = vunpack.c.l.b16 %v131
  %v783 = vunpack.c.h.b16 %v131
  %v784 = vunpack.c.l.b16 %v132
  %v785 = vunpack.c.h.b16 %v132
  %v786 = vunpack.c.l.b16 %v133
  %v787 = vunpack.c.h.b16 %v133
  %v788 = vunpack.c.l.b16 %v134
  %v789 = vunpack.c.h.b16 %v134
  %v790 = vunpack.c.l.b16 %v135
  %v791 = vunpack.c.h.b16 %v135
  %v792 = vunpack.c.l.b16 %v136
  %v793 = vunpack.c.h.b16 %v136
  %v794 = vunpack.c.l.b16 %v137
  %v795 = vunpack.c.h.b16 %v137
  %v796 = vunpack.c.l.b16 %v138
  %v797 = vunpack.c.h.b16 %v138
  %v798 = vunpack.c.l.b16 %v139
  %v799 = vunpack.c.h.b16 %v139
  %v800 = vunpack.c.l.b16 %v140
  %v801 = vunpack.c.h.b16 %v140
  %v802 = vunpack.c.l.b16 %v141
  %v803 = vunpack.c.h.b16 %v141
  %v804 = vunpack.c.l.b16 %v142
  %v805 = vunpack.c.h.b16 %v142
  %v806 = vunpack.c.l.b16 %v143
  %v807 = vunpack.c.h.b16 %v143
  %v808 = vunpack.c.l.b16 %v144
  %v809 = vunpack.c.h.b16 %v144
  %v810 = vunpack.c.l.b16 %v145
  %v811 = vunpack.c.h.b16 %v145
  %v812 = vunpack.c.l.b16 %v146
  %v813 = vunpack.c.h.b16 %v146
  %v814 = vunpack.c.l.b16 %v147
  %v815 = vunpack.c.h.b16 %v147
  %v816 = vunpack.c.l.b16 %v148
  %v817 = vunpack.c.h.b16 %v148
  %v818 = vunpack.c.l.b16 %v149
  %v819 = vunpack.c.h.b16 %v149
  %v820 = vunpack.c.l.b16 %v150
  %v821 = vunpack.c.h.b16 %v150
  %v822 = vunpack.c.l.b16 %v151
  %v823 = vunpack.c.h.b16 %v151
  %v824 = vunpack.c.l.b16 %v152
  %v825 = vunpack.c.h.b16 %v152
  %v826 = vunpack.c.l.b16 %v153
  %v827 = vunpack.c.h.b16 %v153
  %v828 = vunpack.c.l.b16 %v154
  %v829 = vunpack.c.h.b16 %v154
  %v830 = vunpack.c.l.b16 %v155
  %v831 = vunpack.c.h.b16 %v155
  %v832 = vunpack.c.l.b16 %v156
  %v833 = vunpack.c.h.b16 %v156
  %v834 = vunpack.c.l.b16 %v157
  %v835 = vunpack.c.h.b16 %v157
  %v836 = vunpack.c.l.b16 %v158
  %v837 = vunpack.c.h.b16 %v158
  %v838 = vunpack.c.l.b16 %v159
  %v839 = vunpack.c.h.b16 %v159
  %v840 = vunpack.c.l.b16 %v160
  %v841 = vunpack.c.h.b16 %v160
  %v842 = vunpack.c.l.b16 %v161
  %v843 = vunpack.c.h.b16 %v161
  %v844 = vunpack.c.l.b16 %v162
  %v845 = vunpack.c.h.b16 %v162
  %v846 = vunpack.c.l.b16 %v163
  %v847 = vunpack.c.h.b16 %v163
  %v848 = vunpack.c.l.b16 %v164
  %v849 = vunpack.c.h.b16 %v164
  %v850 = vunpack.c.l.b16 %v165
  %v851 = vunpack.c.h.b16 %v165
  %v852 = vunpack.c.l.b16 %v166
  %v853 = vunpack.c.h.b16 %v166
  %v854 = vunpack.c.l.b16 %v167
  %v855 = vunpack.c.h.b16 %v167
  %v856 = vunpack.c.l.b16 %v168
  %v857 = vunpack.c.h.b16 %v168
  %v858 = vunpack.c.l.b16 %v169
  %v859 = vunpack.c.h.b16 %v169
  %v860 = vunpack.c.l.b16 %v170
  %v861 = vunpack.c.h.b16 %v170
  %v862 = vunpack.c.l.b16 %v171
  %v863 = vunpack.c.h.b16 %v171
  %v864 = vunpack.c.l.b16 %v172
  %v865 = vunpack.c.h.b16 %v172
  %v866 = vunpack.c.l.b16 %v173
  %v867 = vunpack.c.h.b16 %v173
  %v868 = vunpack.c.l.b16 %v174
  %v869 = vunpack.c.h.b16 %v174
  %v870 = vunpack.c.l.b16 %v175
  %v871 = vunpack.c.h.b16 %v175
  %v872 = vunpack.c.l.b16 %v176
  %v873 = vunpack.c.h.b16 %v176
  %v874 = vunpack.c.l.b16 %v177
  %v875 = vunpack.c.h.b16 %v177
  %v876 = vunpack.c.l.b16 %v178
  %v877 = vunpack.c.h.b16 %v178
  %v878 = vunpack.c.l.b16 %v179
  %v879 = vunpack.c.h.b16 %v179
  %v880 = vunpack.c.l.b16 %v180
  %v881 = vunpack.c.h.b16 %v180
  %v882 = vunpack.c.l.b16 %v181
  %v883 = vunpack.c.h.b16 %v181
  %v884 = vunpack.c.l.b16 %v182
  %v885 = vunpack.c.h.b16 %v182
  %v886 = vunpack.c.l.b16 %v183
  %v887 = vunpack.c.h.b16 %v183
  %v888 = vunpack.c.l.b16 %v184
  %v889 = vunpack.c.h.b16 %v184
  %v890 = vunpack.c.l.b16 %v185
  %v891 = vunpack.c.h.b16 %v185
  %v892 = vunpack.c.l.b16 %v186
  %v893 = vunpack.c.h.b16 %v186
  %v894 = vunpack.c.l.b16 %v187
  %v895 = vunpack.c.h.b16 %v187
  %v896 = vunpack.c.l.b16 %v188
  %v897 = vunpack.c.h.b16 %v188
  %v898 = vunpack.c.l.b16 %v189
  %v899 = vunpack.c.h.b16 %v189
  %v900 = vunpack.c.l.b16 %v190
  %v901 = vunpack.c.h.b16 %v190
  %v902 = vunpack.c.l.b16 %v191
  %v903 = vunpack.c.h.b16 %v191
  %v904 = vunpack.c.l.b16 %v192
  %v905 = vunpack.c.h.b16 %v192
  %v906 = vunpack.c.l.b16 %v193
  %v907 = vunpack.c.h.b16 %v193
  %v908 = vunpack.c.l.b16 %v194
  %v909 = vunpack.c.h.b16 %v194
  %v910 = vunpack.c.l.b16 %v195
  %v911 = vunpack.c.h.b16 %v195
  %v912 = vunpack.c.l.b16 %v196
  %v913 = vunpack.c.h.b16 %v196
  %v914 = vunpack.c.l.b16 %v197
  %v915 = vunpack.c.h.b16 %v197
  %v916 = vunpack.c.l.b16 %v198
  %v917 = vunpack.c.h.b16 %v198
  %v918 = vunpack.c.l.b16 %v199
  %v919 = vunpack.c.h.b16 %v199
  %v920 = vunpack.c.l.b16 %v200
  %v921 = vunpack.c.h.b16 %v200
  %v922 = vunpack.c.l.b16 %v201
  %v923 = vunpack.c.h.b16 %v201
  %v924 = vunpack.c.l.b16 %v202
  %v925 = vunpack.c.h.b16 %v202
  %v926 = vunpack.c.l.b16 %v203
  %v927 = vunpack.c.h.b16 %v203
  %v928 = vunpack.c.l.b16 %v204
  %v929 = vunpack.c.h.b16 %v204
  %v930 = vunpack.c.l.b16 %v205
  %v931 = vunpack.c.h.b16 %v205
  %v932 = vunpack.c.l.b16 %v206
  %v933 = vunpack.c.h.b16 %v206
  %v934 = vunpack.c.l.b16 %v207
  %v935 = vunpack.c.h.b16 %v207
  %v936 = vunpack.c.l.b16 %v208
  %v937 = vunpack.c.h.b16 %v208
  %v938 = vunpack.c.l.b16 %v209
  %v939 = vunpack.c.h.b16 %v209
  %v940 = vunpack.c.l.b16 %v210
  %v941 = vunpack.c.h.b16 %v210
  %v942 = vunpack.c.l.b16 %v211
  %v943 = vunpack.c.h.b16 %v211
  %v944 = vunpack.c.l.b16 %v212
  %v945 = vunpack.c.h.b16 %v212
  %v946 = vunpack.c.l.b16 %v213
  %v947 = vunpack.c.h.b16 %v213
  %v948 = vunpack.c.l.b16 %v214
  %v949 = vunpack.c.h.b16 %v214
  %v950 = vunpack.c.l.b16 %v215
  %v951 = vunpack.c.h.b16 %v215
  %v952 = vunpack.c.l.b16 %v216
  %v953 = vunpack.c.h.b16 %v216
  %v954 = vunpack.c.l.b16 %v217
  %v955 = vunpack.c.h.b16 %v217
  %v956 = vunpack.c.l.b16 %v218
  %v957 = vunpack.c.h.b16 %v218
  %v958 = vunpack.c.l.b16 %v219
  %v959 = vunpack.c.h.b16 %v219
  %v960 = vunpack.c.l.b16 %v220
  %v961 = vunpack.c.h.b16 %v220
  %v962 = vunpack.c.l.b16 %v221
  %v963 = vunpack.c.h.b16 %v221
  %v964 = vunpack.c.l.b16 %v222
  %v965 = vunpack.c.h.b16 %v222
  %v966 = vunpack.c.l.b16 %v223
  %v967 = vunpack.c.h.b16 %v223
  %v968 = vunpack.c.l.b16 %v224
  %v969 = vunpack.c.h.b16 %v224
  %v970 = vunpack.c.l.b16 %v225
  %v971 = vunpack.c.h.b16 %v225
  %v972 = vunpack.c.l.b16 %v226
  %v973 = vunpack.c.h.b16 %v226
  %v974 = vunpack.c.l.b16 %v227
  %v975 = vunpack.c.h.b16 %v227
  %v976 = vunpack.c.l.b16 %v228
  %v977 = vunpack.c.h.b16 %v228
  %v978 = vunpack.c.l.b16 %v229
  %v979 = vunpack.c.h.b16 %v229
  %v980 = vunpack.c.l.b16 %v230
  %v981 = vunpack.c.h.b16 %v230
  %v982 = vunpack.c.l.b16 %v231
  %v983 = vunpack.c.h.b16 %v231
  %v984 = vunpack.c.l.b16 %v232
  %v985 = vunpack.c.h.b16 %v232
  %v986 = vunpack.c.l.b16 %v233
  %v987 = vunpack.c.h.b16 %v233
  %v988 = vunpack.c.l.b16 %v234
  %v989 = vunpack.c.h.b16 %v234
  %v990 = vunpack.c.l.b16 %v235
  %v991 = vunpack.c.h.b16 %v235
  %v992 = vunpack.c.l.b16 %v236
  %v993 = vunpack.c.h.b16 %v236
  %v994 = vunpack.c.l.b16 %v237
  %v995 = vunpack.c.h.b16 %v237
  %v996 = vunpack.c.l.b16 %v238
  %v997 = vunpack.c.h.b16 %v238
  %v998 = vunpack.c.l.b16 %v239
  %v999 = vunpack.c.h.b16 %v239
  %v1000 = vunpack.c.l.b16 %v240
  %v1001 = vunpack.c.h.b16 %v240
  %v1002 = vunpack.c.l.b16 %v241
  %v1003 = vunpack.c.h.b16 %v241
  %v1004 = vunpack.c.l.b16 %v242
  %v1005 = vunpack.c.h.b16 %v242
  %v1006 = vunpack.c.l.b16 %v243
  %v1007 = vunpack.c.h.b16 %v243
  %v1008 = vunpack.c.l.b16 %v244
  %v1009 = vunpack.c.h.b16 %v244
  %v1010 = vunpack.c.l.b16 %v245
  %v1011 = vunpack.c.h.b16 %v245
  %v1012 = vunpack.c.l.b16 %v246
  %v1013 = vunpack.c.h.b16 %v246
  %v1014 = vunpack.c.l.b16 %v247
  %v1015 = vunpack.c.h.b16 %v247
  %v1016 = vunpack.c.l.b16 %v248
  %v1017 = vunpack.c.h.b16 %v248
  %v1018 = vunpack.c.l.b16 %v249
  %v1019 = vunpack.c.h.b16 %v249
  %v1020 = vunpack.c.l.b16 %v250
  %v1021 = vunpack.c.h.b16 %v250
  %v1022 = vunpack.c.l.b16 %v251
  %v1023 = vunpack.c.h.b16 %v251
  %v1024 = vunpack.c.l.b16 %v252
  %v1025 = vunpack.c.h.b16 %v252
  %v1026 = vunpack.c.l.b16 %v253
  %v1027 = vunpack.c.h.b16 %v253
  %v1028 = vunpack.c.l.b16 %v254
  %v1029 = vunpack.c.h.b16 %v254
  %v1030 = vunpack.c.l.b16 %v255
  %v1031 = vunpack.c.h.b16 %v255
  %v1032 = vunpack.c.l.b16 %v256
  %v1033 = vunpack.c.h.b16 %v256
  %v1034 = vunpack.c.l.b16 %v257
  %v1035 = vunpack.c.h.b16 %v257
  %v1036 = vunpack.c.l.b16 %v258
  %v1037 = vunpack.c.h.b16 %v258
  %v1038 = vunpack.c.l.b16 %v259
  %v1039 = vunpack.c.h.b16 %v259
  %v1040 = vunpack.c.l.b16 %v260
  %v1041 = vunpack.c.h.b16 %v260
  %v1042 = vunpack.c.l.b16 %v261
  %v1043 = vunpack.c.h.b16 %v261
  %v1044 = vunpack.c.l.b16 %v262
  %v1045 = vunpack.c.h.b16 %v262
  %v1046 = vunpack.c.l.b16 %v263
  %v1047 = vunpack.c.h.b16 %v263
  %v1048 = vunpack.c.l.b16 %v264
  %v1049 = vunpack.c.h.b16 %v264
  %v1050 = vunpack.c.l.b16 %v265
  %v1051 = vunpack.c.h.b16 %v265
  %v1052 = vunpack.c.l.b16 %v266
  %v1053 = vunpack.c.h.b16 %v266
  %v1054 = vunpack.c.l.b16 %v267
  %v1055 = vunpack.c.h.b16 %v267
  %v1056 = vunpack.c.l.b16 %v268
  %v1057 = vunpack.c.h.b16 %v268
  %v1058 = vunpack.c.l.b16 %v269
  %v1059 = vunpack.c.h.b16 %v269
  %v1060 = vunpack.c.l.b16 %v270
  %v1061 = vunpack.c.h.b16 %v270
  %v1062 = vunpack.c.l.b16 %v271
  %v1063 = vunpack.c.h.b16 %v271
  %v1064 = vunpack.c.l.b16 %v272
  %v1065 = vunpack.c.h.b16 %v272
  %v1066 = vunpack.c.l.b16 %v273
  %v1067 = vunpack.c.h.b16 %v273
  %v1068 = vunpack.c.l.b16 %v274
  %v1069 = vunpack.c.h.b16 %v274
  %v1070 = vunpack.c.l.b16 %v275
  %v1071 = vunpack.c.h.b16 %v275
  %v1072 = vunpack.c.l.b16 %v276
  %v1073 = vunpack.c.h.b16 %v276
  %v1074 = vunpack.c.l.b16 %v277
  %v1075 = vunpack.c.h.b16 %v277
  %v1076 = vunpack.c.l.b16 %v278
  %v1077 = vunpack.c.h.b16 %v278
  %v1078 = vunpack.c.l.b16 %v279
  %v1079 = vunpack.c.h.b16 %v279
  %v1080 = vunpack.c.l.b16 %v280
  %v1081 = vunpack.c.h.b16 %v280
  %v1082 = vunpack.c.l.b16 %v281
  %v1083 = vunpack.c.h.b16 %v281
  %v1084 = vunpack.c.l.b16 %v282
  %v1085 = vunpack.c.h.b16 %v282
  %v1086 = vunpack.c.l.b16 %v283
  %v1087 = vunpack.c.h.b16 %v283
  %v1088 = vunpack.c.l.b16 %v284
  %v1089 = vunpack.c.h.b16 %v284
  %v1090 = vunpack.c.l.b16 %v285
  %v1091 = vunpack.c.h.b16 %v285
  %v1092 = vunpack.c.l.b16 %v286
  %v1093 = vunpack.c.h.b16 %v286
  %v1094 = vunpack.c.l.b16 %v287
  %v1095 = vunpack.c.h.b16 %v287
  %v1096 = vunpack.c.l.b16 %v288
  %v1097 = vunpack.c.h.b16 %v288
  %v1098 = vunpack.c.l.b16 %v289
  %v1099 = vunpack.c.h.b16 %v289
  %v1100 = vunpack.c.l.b16 %v290
  %v1101 = vunpack.c.h.b16 %v290
  %v1102 = vunpack.c.l.b16 %v291
  %v1103 = vunpack.c.h.b16 %v291
  %v1104 = vunpack.c.l.b16 %v292
  %v1105 = vunpack.c.h.b16 %v292
  %v1106 = vunpack.c.l.b16 %v293
  %v1107 = vunpack.c.h.b16 %v293
  %v1108 = vunpack.c.l.b16 %v294
  %v1109 = vunpack.c.h.b16 %v294
  %v1110 = vunpack.c.l.b16 %v295
  %v1111 = vunpack.c.h.b16 %v295
  %v1112 = vunpack.c.l.b16 %v296
  %v1113 = vunpack.c.h.b16 %v296
  %v1114 = vunpack.c.l.b16 %v297
  %v1115 = vunpack.c.h.b16 %v297
  %v1116 = vpack.c.b16 %v608, %v604
  %v1117 = vpack.c.b16 %v609, %v605
  %v1118 = vpack.c.b16 %v610, %v606
  %v1119 = vpack.c.b16 %v611, %v607
  %v1120 = vpack.c.b16 %v616, %v612
  %v1121 = vpack.c.b16 %v617, %v613
  %v1122 = vpack.c.b16 %v618, %v614
  %v1123 = vpack.c.b16 %v619, %v615
  %v1124 = vpack.c.b16 %v624, %v620
  %v1125 = vpack.c.b16 %v625, %v621
  %v1126 = vpack.c.b16 %v626, %v622
  %v1127 = vpack.c.b16 %v627, %v623
  %v1128 = vpack.c.b16 %v632, %v628
  %v1129 = vpack.c.b16 %v633, %v629
  %v1130 = vpack.c.b16 %v634, %v630
  %v1131 = vpack.c.b16 %v635, %v631
  %v1132 = vpack.c.b16 %v640, %v636
  %v1133 = vpack.c.b16 %v641, %v637
  %v1134 = vpack.c.b16 %v642, %v638
  %v1135 = vpack.c.b16 %v643, %v639
  %v1136 = vpack.c.b16 %v648, %v644
  %v1137 = vpack.c.b16 %v649, %v645
  %v1138 = vpack.c.b16 %v650, %v646
  %v1139 = vpack.c.b16 %v651, %v647
  %v1140 = vpack.c.b16 %v656, %v652
  %v1141 = vpack.c.b16 %v657, %v653
  %v1142 = vpack.c.b16 %v658, %v654
  %v1143 = vpack.c.b16 %v659, %v655
  %v1144 = vpack.c.b16 %v664, %v660
  %v1145 = vpack.c.b16 %v665, %v661
  %v1146 = vpack.c.b16 %v666, %v662
  %v1147 = vpack.c.b16 %v667, %v663
  %v1148 = vpack.c.b16 %v672, %v668
  %v1149 = vpack.c.b16 %v673, %v669
  %v1150 = vpack.c.b16 %v674, %v670
  %v1151 = vpack.c.b16 %v675, %v671
  %v1152 = vpack.c.b16 %v680, %v676
  %v1153 = vpack.c.b16 %v681, %v677
  %v1154 = vpack.c.b16 %v682, %v678
  %v1155 = vpack.c.b16 %v683, %v679
  %v1156 = vpack.c.b16 %v688, %v684
  %v1157 = vpack.c.b16 %v689, %v685
  %v1158 = vpack.c.b16 %v690, %v686
  %v1159 = vpack.c.b16 %v691, %v687
  %v1160 = vpack.c.b16 %v696, %v692
  %v1161 = vpack.c.b16 %v697, %v693
  %v1162 = vpack.c.b16 %v698, %v694
  %v1163 = vpack.c.b16 %v699, %v695
  %v1164 = vpack.c.b16 %v704, %v700
  %v1165 = vpack.c.b16 %v705, %v701
  %v1166 = vpack.c.b16 %v706, %v702
  %v1167 = vpack.c.b16 %v707, %v703
  %v1168 = vpack.c.b16 %v712, %v708
  %v1169 = vpack.c.b16 %v713, %v709
  %v1170 = vpack.c.b16 %v714, %v710
  %v1171 = vpack.c.b16 %v715, %v711
  %v1172 = vpack.c.b16 %v720, %v716
  %v1173 = vpack.c.b16 %v721, %v717
  %v1174 = vpack.c.b16 %v722, %v718
  %v1175 = vpack.c.b16 %v723, %v719
  %v1176 = vpack.c.b16 %v728, %v724
  %v1177 = vpack.c.b16 %v729, %v725
  %v1178 = vpack.c.b16 %v730, %v726
  %v1179 = vpack.c.b16 %v731, %v727
  %v1180 = vpack.c.b16 %v736, %v732
  %v1181 = vpack.c.b16 %v737, %v733
  %v1182 = vpack.c.b16 %v738, %v734
  %v1183 = vpack.c.b16 %v739, %v735
  %v1184 = vpack.c.b16 %v744, %v740
  %v1185 = vpack.c.b16 %v745, %v741
  %v1186 = vpack.c.b16 %v746, %v742
  %v1187 = vpack.c.b16 %v747, %v743
  %v1188 = vpack.c.b16 %v752, %v748
  %v1189 = vpack.c.b16 %v753, %v749
  %v1190 = vpack.c.b16 %v754, %v750
  %v1191 = vpack.c.b16 %v755, %v751
  %v1192 = vpack.c.b16 %v760, %v756
  %v1193 = vpack.c.b16 %v761, %v757
  %v1194 = vpack.c.b16 %v762, %v758
  %v1195 = vpack.c.b16 %v763, %v759
  %v1196 = vpack.c.b16 %v768, %v764
  %v1197 = vpack.c.b16 %v769, %v765
  %v1198 = vpack.c.b16 %v770, %v766
  %v1199 = vpack.c.b16 %v771, %v767
  %v1200 = vpack.c.b16 %v776, %v772
  %v1201 = vpack.c.b16 %v777, %v773
  %v1202 = vpack.c.b16 %v778, %v774
  %v1203 = vpack.c.b16 %v779, %v775
  %v1204 = vpack.c.b16 %v784, %v780
  %v1205 = vpack.c.b16 %v785, %v781
  %v1206 = vpack.c.b16 %v786, %v782
  %v1207 = vpack.c.b16 %v787, %v783
  %v1208 = vpack.c.b16 %v792, %v788
  %v1209 = vpack.c.b16 %v793, %v789
  %v1210 = vpack.c.b16 %v794, %v790
  %v1211 = vpack.c.b16 %v795, %v791
  %v1212 = vpack.c.b16 %v800, %v796
  %v1213 = vpack.c.b16 %v801, %v797
  %v1214 = vpack.c.b16 %v802, %v798
  %v1215 = vpack.c.b16 %v803, %v799
  %v1216 = vpack.c.b16 %v808, %v804
  %v1217 = vpack.c.b16 %v809, %v805
  %v1218 = vpack.c.b16 %v810, %v806
  %v1219 = vpack.c.b16 %v811, %v807
  %v1220 = vpack.c.b16 %v816, %v812
  %v1221 = vpack.c.b16 %v817, %v813
  %v1222 = vpack.c.b16 %v818, %v814
  %v1223 = vpack.c.b16 %v819, %v815
  %v1224 = vpack.c.b16 %v824, %v820
  %v1225 = vpack.c.b16 %v825, %v821
  %v1226 = vpack.c.b16 %v826, %v822
  %v1227 = vpack.c.b16 %v827, %v823
  %v1228 = vpack.c.b16 %v832, %v828
  %v1229 = vpack.c.b16 %v833, %v829
  %v1230 = vpack.c.b16 %v834, %v830
  %v1231 = vpack.c.b16 %v835, %v831
  %v1232 = vpack.c.b16 %v840, %v836
  %v1233 = vpack.c.b16 %v841, %v837
  %v1234 = vpack.c.b16 %v842, %v838
  %v1235 = vpack.c.b16 %v843, %v839
  %v1236 = vpack.c.b16 %v848, %v844
  %v1237 = vpack.c.b16 %v849, %v845
  %v1238 = vpack.c.b16 %v850, %v846
  %v1239 = vpack.c.b16 %v851, %v847
  %v1240 = vpack.c.b16 %v856, %v852
  %v1241 = vpack.c.b16 %v857, %v853
  %v1242 = vpack.c.b16 %v858, %v854
  %v1243 = vpack.c.b16 %v859, %v855
  %v1244 = vpack.c.b16 %v864, %v860
  %v1245 = vpack.c.b16 %v865, %v861
  %v1246 = vpack.c.b16 %v866, %v862
  %v1247 = vpack.c.b16 %v867, %v863
  %v1248 = vpack.c.b16 %v872, %v868
  %v1249 = vpack.c.b16 %v873, %v869
  %v1250 = vpack.c.b16 %v874, %v870
  %v1251 = vpack.c.b16 %v875, %v871
  %v1252 = vpack.c.b16 %v880, %v876
  %v1253 = vpack.c.b16 %v881, %v877
  %v1254 = vpack.c.b16 %v882, %v878
  %v1255 = vpack.c.b16 %v883, %v879
  %v1256 = vpack.c.b16 %v888, %v884
  %v1257 = vpack.c.b16 %v889, %v885
  %v1258 = vpack.c.b16 %v890, %v886
  %v1259 = vpack.c.b16 %v891, %v887
  %v1260 = vpack.c.b16 %v896, %v892
  %v1261 = vpack.c.b16 %v897, %v893
  %v1262 = vpack.c.b16 %v898, %v894
  %v1263 = vpack.c.b16 %v899, %v895
  %v1264 = vpack.c.b16 %v904, %v900
  %v1265 = vpack.c.b16 %v905, %v901
  %v1266 = vpack.c.b16 %v906, %v902
  %v1267 = vpack.c.b16 %v907, %v903
  %v1268 = vpack.c.b16 %v912, %v908
  %v1269 = vpack.c.b16 %v913, %v909
  %v1270 = vpack.c.b16 %v914, %v910
  %v1271 = vpack.c.b16 %v915, %v911
  %v1272 = vpack.c.b16 %v920, %v916
  %v1273 = vpack.c.b16 %v921, %v917
  %v1274 = vpack.c.b16 %v922, %v918
  %v1275 = vpack.c.b16 %v923, %v919
  %v1276 = vpack.c.b16 %v928, %v924
  %v1277 = vpack.c.b16 %v929, %v925
  %v1278 = vpack.c.b16 %v930, %v926
  %v1279 = vpack.c.b16 %v931, %v927
  %v1280 = vpack.c.b16 %v936, %v932
  %v1281 = vpack.c.b16 %v937, %v933
  %v1282 = vpack.c.b16 %v938, %v934
  %v1283 = vpack.c.b16 %v939, %v935
  %v1284 = vpack.c.b16 %v944, %v940
  %v1285 = vpack.c.b16 %v945, %v941
  %v1286 = vpack.c.b16 %v946, %v942
  %v1287 = vpack.c.b16 %v947, %v943
  %v1288 = vpack.c.b16 %v952, %v948
  %v1289 = vpack.c.b16 %v953, %v949
  %v1290 = vpack.c.b16 %v954, %v950
  %v1291 = vpack.c.b16 %v955, %v951
  %v1292 = vpack.c.b16 %v960, %v956
  %v1293 = vpack.c.b16 %v961, %v957
  %v1294 = vpack.c.b16 %v962, %v958
  %v1295 = vpack.c.b16 %v963, %v959
  %v1296 = vpack.c.b16 %v968, %v964
  %v1297 = vpack.c.b16 %v969, %v965
  %v1298 = vpack.c.b16 %v970, %v966
  %v1299 = vpack.c.b16 %v971, %v967
  %v1300 = vpack.c.b16 %v976, %v972
  %v1301 = vpack.c.b16 %v977, %v973
  %v1302 = vpack.c.b16 %v978, %v974
  %v1303 = vpack.c.b16 %v979, %v975
  %v1304 = vpack.c.b16 %v984, %v980
  %v1305 = vpack.c.b16 %v985, %v981
  %v1306 = vpack.c.b16 %v986, %v982
  %v1307 = vpack.c.b16 %v987, %v983
  %v1308 = vpack.c.b16 %v992, %v988
  %v1309 = vpack.c.b16 %v993, %v989
  %v1310 = vpack.c.b16 %v994, %v990
  %v1311 = vpack.c.b16 %v995, %v991
  %v1312 = vpack.c.b16 %v1000, %v996
  %v1313 = vpack.c.b16 %v1001, %v997
  %v1314 = vpack.c.b16 %v1002, %v998
  %v1315 = vpack.c.b16 %v1003, %v999
  %v1316 = vpack.c.b16 %v1008, %v1004
  %v1317 = vpack.c.b16 %v1009, %v1005
  %v1318 = vpack.c.b16 %v1010, %v1006
  %v1319 = vpack.c.b16 %v1011, %v1007
  %v1320 = vpack.c.b16 %v1016, %v1012
  %v1321 = vpack.c.b16 %v1017, %v1013
  %v1322 = vpack.c.b16 %v1018, %v1014
  %v1323 = vpack.c.b16 %v1019, %v1015
  %v1324 = vpack.c.b16 %v1024, %v1020
  %v1325 = vpack.c.b16 %v1025, %v1021
  %v1326 = vpack.c.b16 %v1026, %v1022
  %v1327 = vpack.c.b16 %v1027, %v1023
  %v1328 = vpack.c.b16 %v1032, %v1028
  %v1329 = vpack.c.b16 %v1033, %v1029
  %v1330 = vpack.c.b16 %v1034, %v1030
  %v1331 = vpack.c.b16 %v1035, %v1031
  %v1332 = vpack.c.b16 %v1040, %v1036
  %v1333 = vpack.c.b16 %v1041, %v1037
  %v1334 = vpack.c.b16 %v1042, %v1038
  %v1335 = vpack.c.b16 %v1043, %v1039
  %v1336 = vpack.c.b16 %v1048, %v1044
  %v1337 = vpack.c.b16 %v1049, %v1045
  %v1338 = vpack.c.b16 %v1050, %v1046
  %v1339 = vpack.c.b16 %v1051, %v1047
  %v1340 = vpack.c.b16 %v1056, %v1052
  %v1341 = vpack.c.b16 %v1057, %v1053
  %v1342 = vpack.c.b16 %v1058, %v1054
  %v1343 = vpack.c.b16 %v1059, %v1055
  %v1344 = vpack.c.b16 %v1064, %v1060
  %v1345 = vpack.c.b16 %v1065, %v1061
  %v1346 = vpack.c.b16 %v1066, %v1062
  %v1347 = vpack.c.b16 %v1067, %v1063
  %v1348 = vpack.c.b16 %v1072, %v1068
  %v1349 = vpack.c.b16 %v1073, %v1069
  %v1350 = vpack.c.b16 %v1074, %v1070
  %v1351 = vpack.c.b16 %v1075, %v1071
  %v1352 = vpack.c.b16 %v1080, %v1076
  %v1353 = vpack.c.b16 %v1081, %v1077
  %v1354 = vpack.c.b16 %v1082, %v1078
  %v1355 = vpack.c.b16 %v1083, %v1079
  %v1356 = vpack.c.b16 %v1088, %v1084
  %v1357 = vpack.c.b16 %v1089, %v1085
  %v1358 = vpack.c.b16 %v1090, %v1086
  %v1359 = vpack.c.b16 %v1091, %v1087
  %v1360 = vpack.c.b16 %v1096, %v1092
  %v1361 = vpack.c.b16 %v1097, %v1093
  %v1362 = vpack.c.b16 %v1098, %v1094
  %v1363 = vpack.c.b16 %v1099, %v1095
  %v1364 = vpack.c.b16 %v1104, %v1100
  %v1365 = vpack.c.b16 %v1105, %v1101
  %v1366 = vpack.c.b16 %v1106, %v1102
  %v1367 = vpack.c.b16 %v1107, %v1103
  %v1368 = vpack.c.b16 %v1112, %v1108
  %v1369 = vpack.c.b16 %v1113, %v1109
  %v1370 = vpack.c.b16 %v1114, %v1110
  %v1371 = vpack.c.b16 %v1115, %v1111
  %1628 = vmatprep.subr.bf16.mxu0 %v1145
  %1629 = vmatpush1.bf16.msra.mxu0 %v1144
  %1630 = vmatprep.subr.bf16.mxu0 %v1141
  %1631 = vmatpush1.bf16.msra.mxu0 %v1140
  %1632 = vmatprep.subr.bf16.mxu0 %v1137
  %1633 = vmatpush1.bf16.msra.mxu0 %v1136
  %1634 = vmatprep.subr.bf16.mxu0 %v1133
  %1635 = vmatpush1.bf16.msra.mxu0 %v1132
  %1636 = vmatprep.subr.bf16.mxu0 %v1129
  %1637 = vmatpush1.bf16.msra.mxu0 %v1128
  %1638 = vmatprep.subr.bf16.mxu0 %v1125
  %1639 = vmatpush1.bf16.msra.mxu0 %v1124
  %1640 = vmatprep.subr.bf16.mxu0 %v1121
  %1641 = vmatpush1.bf16.msra.mxu0 %v1120
  %1642 = vmatprep.subr.bf16.mxu0 %v1117
  %1643 = vmatpush1.bf16.msra.mxu0 %v1116
  %1644 = vmatprep.subr.bf16.mxu0 %v1177
  %1645 = vmatpush2.bf16.msra.mxu0 %v1176
  %1646 = vmatprep.subr.bf16.mxu0 %v1173
  %1647 = vmatpush2.bf16.msra.mxu0 %v1172
  %1648 = vmatprep.subr.bf16.mxu0 %v1169
  %1649 = vmatpush2.bf16.msra.mxu0 %v1168
  %1650 = vmatprep.subr.bf16.mxu0 %v1165
  %1651 = vmatpush2.bf16.msra.mxu0 %v1164
  %1652 = vmatprep.subr.bf16.mxu0 %v1161
  %1653 = vmatpush2.bf16.msra.mxu0 %v1160
  %1654 = vmatprep.subr.bf16.mxu0 %v1157
  %1655 = vmatpush2.bf16.msra.mxu0 %v1156
  %1656 = vmatprep.subr.bf16.mxu0 %v1153
  %1657 = vmatpush2.bf16.msra.mxu0 %v1152
  %1658 = vmatprep.subr.bf16.mxu0 %v1149
  %1659 = vmatpush2.bf16.msra.mxu0 %v1148
  %1660 = vmatprep.mubr.bf16.mxu0 %v333
  %1661 = vmatmul.mubr.bf16.gmra.mxu0 %v332
  %v1662 = vpop.f32.mrf.mxu0
  %v1663 = vadd.f32 %v303, %v1662
  %v1664 = vpop.f32.mrf.mxu0
  %v1665 = vadd.f32 %v307, %v1664
  %v1666 = vpop.f32.mrf.mxu0
  %v1667 = vpop.f32.mrf.mxu0
  %1668 = vdwg.mxu0
  %1669 = vmatprep.subr.bf16.mxu0 %v1209
  %1670 = vmatpush1.bf16.msra.mxu0 %v1208
  %1671 = vmatprep.subr.bf16.mxu0 %v1205
  %1672 = vmatpush1.bf16.msra.mxu0 %v1204
  %1673 = vmatprep.subr.bf16.mxu0 %v1201
  %1674 = vmatpush1.bf16.msra.mxu0 %v1200
  %1675 = vmatprep.subr.bf16.mxu0 %v1197
  %1676 = vmatpush1.bf16.msra.mxu0 %v1196
  %1677 = vmatprep.subr.bf16.mxu0 %v1193
  %1678 = vmatpush1.bf16.msra.mxu0 %v1192
  %1679 = vmatprep.subr.bf16.mxu0 %v1189
  %1680 = vmatpush1.bf16.msra.mxu0 %v1188
  %1681 = vmatprep.subr.bf16.mxu0 %v1185
  %1682 = vmatpush1.bf16.msra.mxu0 %v1184
  %1683 = vmatprep.subr.bf16.mxu0 %v1181
  %1684 = vmatpush1.bf16.msra.mxu0 %v1180
  %1685 = vmatprep.subr.bf16.mxu0 %v1241
  %1686 = vmatpush2.bf16.msra.mxu0 %v1240
  %1687 = vmatprep.subr.bf16.mxu0 %v1237
  %1688 = vmatpush2.bf16.msra.mxu0 %v1236
  %1689 = vmatprep.subr.bf16.mxu0 %v1233
  %1690 = vmatpush2.bf16.msra.mxu0 %v1232
  %1691 = vmatprep.subr.bf16.mxu0 %v1229
  %1692 = vmatpush2.bf16.msra.mxu0 %v1228
  %1693 = vmatprep.subr.bf16.mxu0 %v1225
  %1694 = vmatpush2.bf16.msra.mxu0 %v1224
  %1695 = vmatprep.subr.bf16.mxu0 %v1221
  %1696 = vmatpush2.bf16.msra.mxu0 %v1220
  %1697 = vmatprep.subr.bf16.mxu0 %v1217
  %1698 = vmatpush2.bf16.msra.mxu0 %v1216
  %1699 = vmatprep.subr.bf16.mxu0 %v1213
  %1700 = vmatpush2.bf16.msra.mxu0 %v1212
  %1701 = vmatprep.mubr.bf16.mxu0 %v335
  %1702 = vmatmul.mubr.bf16.gmra.mxu0 %v334
  %v1703 = vpop.f32.mrf.mxu0
  %v1704 = vadd.f32 %v1663, %v1703
  %v1705 = vpop.f32.mrf.mxu0
  %v1706 = vadd.f32 %v1665, %v1705
  %v1707 = vpop.f32.mrf.mxu0
  %v1708 = vpop.f32.mrf.mxu0
  %1709 = vdwg.mxu0
  %1710 = vmatprep.subr.bf16.mxu0 %v1273
  %1711 = vmatpush1.bf16.msra.mxu0 %v1272
  %1712 = vmatprep.subr.bf16.mxu0 %v1269
  %1713 = vmatpush1.bf16.msra.mxu0 %v1268
  %1714 = vmatprep.subr.bf16.mxu0 %v1265
  %1715 = vmatpush1.bf16.msra.mxu0 %v1264
  %1716 = vmatprep.subr.bf16.mxu0 %v1261
  %1717 = vmatpush1.bf16.msra.mxu0 %v1260
  %1718 = vmatprep.subr.bf16.mxu0 %v1257
  %1719 = vmatpush1.bf16.msra.mxu0 %v1256
  %1720 = vmatprep.subr.bf16.mxu0 %v1253
  %1721 = vmatpush1.bf16.msra.mxu0 %v1252
  %1722 = vmatprep.subr.bf16.mxu0 %v1249
  %1723 = vmatpush1.bf16.msra.mxu0 %v1248
  %1724 = vmatprep.subr.bf16.mxu0 %v1245
  %1725 = vmatpush1.bf16.msra.mxu0 %v1244
  %1726 = vmatprep.subr.bf16.mxu0 %v1305
  %1727 = vmatpush2.bf16.msra.mxu0 %v1304
  %1728 = vmatprep.subr.bf16.mxu0 %v1301
  %1729 = vmatpush2.bf16.msra.mxu0 %v1300
  %1730 = vmatprep.subr.bf16.mxu0 %v1297
  %1731 = vmatpush2.bf16.msra.mxu0 %v1296
  %1732 = vmatprep.subr.bf16.mxu0 %v1293
  %1733 = vmatpush2.bf16.msra.mxu0 %v1292
  %1734 = vmatprep.subr.bf16.mxu0 %v1289
  %1735 = vmatpush2.bf16.msra.mxu0 %v1288
  %1736 = vmatprep.subr.bf16.mxu0 %v1285
  %1737 = vmatpush2.bf16.msra.mxu0 %v1284
  %1738 = vmatprep.subr.bf16.mxu0 %v1281
  %1739 = vmatpush2.bf16.msra.mxu0 %v1280
  %1740 = vmatprep.subr.bf16.mxu0 %v1277
  %1741 = vmatpush2.bf16.msra.mxu0 %v1276
  %1742 = vmatprep.mubr.bf16.mxu0 %v337
  %1743 = vmatmul.mubr.bf16.gmra.mxu0 %v336
  %v1744 = vpop.f32.mrf.mxu0
  %v1745 = vadd.f32 %v1704, %v1744
  %v1746 = vpop.f32.mrf.mxu0
  %v1747 = vadd.f32 %v1706, %v1746
  %v1748 = vpop.f32.mrf.mxu0
  %v1749 = vpop.f32.mrf.mxu0
  %1750 = vdwg.mxu0
  %1751 = vmatprep.subr.bf16.mxu0 %v1337
  %1752 = vmatpush1.bf16.msra.mxu0 %v1336
  %1753 = vmatprep.subr.bf16.mxu0 %v1333
  %1754 = vmatpush1.bf16.msra.mxu0 %v1332
  %1755 = vmatprep.subr.bf16.mxu0 %v1329
  %1756 = vmatpush1.bf16.msra.mxu0 %v1328
  %1757 = vmatprep.subr.bf16.mxu0 %v1325
  %1758 = vmatpush1.bf16.msra.mxu0 %v1324
  %1759 = vmatprep.subr.bf16.mxu0 %v1321
  %1760 = vmatpush1.bf16.msra.mxu0 %v1320
  %1761 = vmatprep.subr.bf16.mxu0 %v1317
  %1762 = vmatpush1.bf16.msra.mxu0 %v1316
  %1763 = vmatprep.subr.bf16.mxu0 %v1313
  %1764 = vmatpush1.bf16.msra.mxu0 %v1312
  %1765 = vmatprep.subr.bf16.mxu0 %v1309
  %1766 = vmatpush1.bf16.msra.mxu0 %v1308
  %1767 = vmatprep.subr.bf16.mxu0 %v1369
  %1768 = vmatpush2.bf16.msra.mxu0 %v1368
  %1769 = vmatprep.subr.bf16.mxu0 %v1365
  %1770 = vmatpush2.bf16.msra.mxu0 %v1364
  %1771 = vmatprep.subr.bf16.mxu0 %v1361
  %1772 = vmatpush2.bf16.msra.mxu0 %v1360
  %1773 = vmatprep.subr.bf16.mxu0 %v1357
  %1774 = vmatpush2.bf16.msra.mxu0 %v1356
  %1775 = vmatprep.subr.bf16.mxu0 %v1353
  %1776 = vmatpush2.bf16.msra.mxu0 %v1352
  %1777 = vmatprep.subr.bf16.mxu0 %v1349
  %1778 = vmatpush2.bf16.msra.mxu0 %v1348
  %1779 = vmatprep.subr.bf16.mxu0 %v1345
  %1780 = vmatpush2.bf16.msra.mxu0 %v1344
  %1781 = vmatprep.subr.bf16.mxu0 %v1341
  %1782 = vmatpush2.bf16.msra.mxu0 %v1340
  %1783 = vmatprep.mubr.bf16.mxu0 %v339
  %1784 = vmatmul.mubr.bf16.gmra.mxu0 %v338
  %v1785 = vpop.f32.mrf.mxu0
  %v1786 = vadd.f32 %v1745, %v1785
  %v1787 = vpop.f32.mrf.mxu0
  %v1788 = vadd.f32 %v1747, %v1787
  %v1789 = vpop.f32.mrf.mxu0
  %v1790 = vpop.f32.mrf.mxu0
  %1791 = vdwg.mxu0
  %1792 = vmatprep.subr.bf16.mxu0 %v1147
  %1793 = vmatpush1.bf16.msra.mxu0 %v1146
  %1794 = vmatprep.subr.bf16.mxu0 %v1143
  %1795 = vmatpush1.bf16.msra.mxu0 %v1142
  %1796 = vmatprep.subr.bf16.mxu0 %v1139
  %1797 = vmatpush1.bf16.msra.mxu0 %v1138
  %1798 = vmatprep.subr.bf16.mxu0 %v1135
  %1799 = vmatpush1.bf16.msra.mxu0 %v1134
  %1800 = vmatprep.subr.bf16.mxu0 %v1131
  %1801 = vmatpush1.bf16.msra.mxu0 %v1130
  %1802 = vmatprep.subr.bf16.mxu0 %v1127
  %1803 = vmatpush1.bf16.msra.mxu0 %v1126
  %1804 = vmatprep.subr.bf16.mxu0 %v1123
  %1805 = vmatpush1.bf16.msra.mxu0 %v1122
  %1806 = vmatprep.subr.bf16.mxu0 %v1119
  %1807 = vmatpush1.bf16.msra.mxu0 %v1118
  %1808 = vmatprep.subr.bf16.mxu0 %v1179
  %1809 = vmatpush2.bf16.msra.mxu0 %v1178
  %1810 = vmatprep.subr.bf16.mxu0 %v1175
  %1811 = vmatpush2.bf16.msra.mxu0 %v1174
  %1812 = vmatprep.subr.bf16.mxu0 %v1171
  %1813 = vmatpush2.bf16.msra.mxu0 %v1170
  %1814 = vmatprep.subr.bf16.mxu0 %v1167
  %1815 = vmatpush2.bf16.msra.mxu0 %v1166
  %1816 = vmatprep.subr.bf16.mxu0 %v1163
  %1817 = vmatpush2.bf16.msra.mxu0 %v1162
  %1818 = vmatprep.subr.bf16.mxu0 %v1159
  %1819 = vmatpush2.bf16.msra.mxu0 %v1158
  %1820 = vmatprep.subr.bf16.mxu0 %v1155
  %1821 = vmatpush2.bf16.msra.mxu0 %v1154
  %1822 = vmatprep.subr.bf16.mxu0 %v1151
  %1823 = vmatpush2.bf16.msra.mxu0 %v1150
  %1824 = vmatprep.mubr.bf16.mxu0 %v333
  %1825 = vmatmul.mubr.bf16.gmra.mxu0 %v332
  %v1826 = vpop.f32.mrf.mxu0
  %v1827 = vadd.f32 %v311, %v1826
  %v1828 = vpop.f32.mrf.mxu0
  %v1829 = vadd.f32 %v315, %v1828
  %v1830 = vpop.f32.mrf.mxu0
  %v1831 = vpop.f32.mrf.mxu0
  %1832 = vdwg.mxu0
  %1833 = vmatprep.subr.bf16.mxu0 %v1211
  %1834 = vmatpush1.bf16.msra.mxu0 %v1210
  %1835 = vmatprep.subr.bf16.mxu0 %v1207
  %1836 = vmatpush1.bf16.msra.mxu0 %v1206
  %1837 = vmatprep.subr.bf16.mxu0 %v1203
  %1838 = vmatpush1.bf16.msra.mxu0 %v1202
  %1839 = vmatprep.subr.bf16.mxu0 %v1199
  %1840 = vmatpush1.bf16.msra.mxu0 %v1198
  %1841 = vmatprep.subr.bf16.mxu0 %v1195
  %1842 = vmatpush1.bf16.msra.mxu0 %v1194
  %1843 = vmatprep.subr.bf16.mxu0 %v1191
  %1844 = vmatpush1.bf16.msra.mxu0 %v1190
  %1845 = vmatprep.subr.bf16.mxu0 %v1187
  %1846 = vmatpush1.bf16.msra.mxu0 %v1186
  %1847 = vmatprep.subr.bf16.mxu0 %v1183
  %1848 = vmatpush1.bf16.msra.mxu0 %v1182
  %1849 = vmatprep.subr.bf16.mxu0 %v1243
  %1850 = vmatpush2.bf16.msra.mxu0 %v1242
  %1851 = vmatprep.subr.bf16.mxu0 %v1239
  %1852 = vmatpush2.bf16.msra.mxu0 %v1238
  %1853 = vmatprep.subr.bf16.mxu0 %v1235
  %1854 = vmatpush2.bf16.msra.mxu0 %v1234
  %1855 = vmatprep.subr.bf16.mxu0 %v1231
  %1856 = vmatpush2.bf16.msra.mxu0 %v1230
  %1857 = vmatprep.subr.bf16.mxu0 %v1227
  %1858 = vmatpush2.bf16.msra.mxu0 %v1226
  %1859 = vmatprep.subr.bf16.mxu0 %v1223
  %1860 = vmatpush2.bf16.msra.mxu0 %v1222
  %1861 = vmatprep.subr.bf16.mxu0 %v1219
  %1862 = vmatpush2.bf16.msra.mxu0 %v1218
  %1863 = vmatprep.subr.bf16.mxu0 %v1215
  %1864 = vmatpush2.bf16.msra.mxu0 %v1214
  %1865 = vmatprep.mubr.bf16.mxu0 %v335
  %1866 = vmatmul.mubr.bf16.gmra.mxu0 %v334
  %v1867 = vpop.f32.mrf.mxu0
  %v1868 = vadd.f32 %v1827, %v1867
  %v1869 = vpop.f32.mrf.mxu0
  %v1870 = vadd.f32 %v1829, %v1869
  %v1871 = vpop.f32.mrf.mxu0
  %v1872 = vpop.f32.mrf.mxu0
  %1873 = vdwg.mxu0
  %1874 = vmatprep.subr.bf16.mxu0 %v1275
  %1875 = vmatpush1.bf16.msra.mxu0 %v1274
  %1876 = vmatprep.subr.bf16.mxu0 %v1271
  %1877 = vmatpush1.bf16.msra.mxu0 %v1270
  %1878 = vmatprep.subr.bf16.mxu0 %v1267
  %1879 = vmatpush1.bf16.msra.mxu0 %v1266
  %1880 = vmatprep.subr.bf16.mxu0 %v1263
  %1881 = vmatpush1.bf16.msra.mxu0 %v1262
  %1882 = vmatprep.subr.bf16.mxu0 %v1259
  %1883 = vmatpush1.bf16.msra.mxu0 %v1258
  %1884 = vmatprep.subr.bf16.mxu0 %v1255
  %1885 = vmatpush1.bf16.msra.mxu0 %v1254
  %1886 = vmatprep.subr.bf16.mxu0 %v1251
  %1887 = vmatpush1.bf16.msra.mxu0 %v1250
  %1888 = vmatprep.subr.bf16.mxu0 %v1247
  %1889 = vmatpush1.bf16.msra.mxu0 %v1246
  %1890 = vmatprep.subr.bf16.mxu0 %v1307
  %1891 = vmatpush2.bf16.msra.mxu0 %v1306
  %1892 = vmatprep.subr.bf16.mxu0 %v1303
  %1893 = vmatpush2.bf16.msra.mxu0 %v1302
  %1894 = vmatprep.subr.bf16.mxu0 %v1299
  %1895 = vmatpush2.bf16.msra.mxu0 %v1298
  %1896 = vmatprep.subr.bf16.mxu0 %v1295
  %1897 = vmatpush2.bf16.msra.mxu0 %v1294
  %1898 = vmatprep.subr.bf16.mxu0 %v1291
  %1899 = vmatpush2.bf16.msra.mxu0 %v1290
  %1900 = vmatprep.subr.bf16.mxu0 %v1287
  %1901 = vmatpush2.bf16.msra.mxu0 %v1286
  %1902 = vmatprep.subr.bf16.mxu0 %v1283
  %1903 = vmatpush2.bf16.msra.mxu0 %v1282
  %1904 = vmatprep.subr.bf16.mxu0 %v1279
  %1905 = vmatpush2.bf16.msra.mxu0 %v1278
  %1906 = vmatprep.mubr.bf16.mxu0 %v337
  %1907 = vmatmul.mubr.bf16.gmra.mxu0 %v336
  %v1908 = vpop.f32.mrf.mxu0
  %v1909 = vadd.f32 %v1868, %v1908
  %v1910 = vpop.f32.mrf.mxu0
  %v1911 = vadd.f32 %v1870, %v1910
  %v1912 = vpop.f32.mrf.mxu0
  %v1913 = vpop.f32.mrf.mxu0
  %1914 = vdwg.mxu0
  %1915 = vmatprep.subr.bf16.mxu0 %v1339
  %1916 = vmatpush1.bf16.msra.mxu0 %v1338
  %1917 = vmatprep.subr.bf16.mxu0 %v1335
  %1918 = vmatpush1.bf16.msra.mxu0 %v1334
  %1919 = vmatprep.subr.bf16.mxu0 %v1331
  %1920 = vmatpush1.bf16.msra.mxu0 %v1330
  %1921 = vmatprep.subr.bf16.mxu0 %v1327
  %1922 = vmatpush1.bf16.msra.mxu0 %v1326
  %1923 = vmatprep.subr.bf16.mxu0 %v1323
  %1924 = vmatpush1.bf16.msra.mxu0 %v1322
  %1925 = vmatprep.subr.bf16.mxu0 %v1319
  %1926 = vmatpush1.bf16.msra.mxu0 %v1318
  %1927 = vmatprep.subr.bf16.mxu0 %v1315
  %1928 = vmatpush1.bf16.msra.mxu0 %v1314
  %1929 = vmatprep.subr.bf16.mxu0 %v1311
  %1930 = vmatpush1.bf16.msra.mxu0 %v1310
  %1931 = vmatprep.subr.bf16.mxu0 %v1371
  %1932 = vmatpush2.bf16.msra.mxu0 %v1370
  %1933 = vmatprep.subr.bf16.mxu0 %v1367
  %1934 = vmatpush2.bf16.msra.mxu0 %v1366
  %1935 = vmatprep.subr.bf16.mxu0 %v1363
  %1936 = vmatpush2.bf16.msra.mxu0 %v1362
  %1937 = vmatprep.subr.bf16.mxu0 %v1359
  %1938 = vmatpush2.bf16.msra.mxu0 %v1358
  %1939 = vmatprep.subr.bf16.mxu0 %v1355
  %1940 = vmatpush2.bf16.msra.mxu0 %v1354
  %1941 = vmatprep.subr.bf16.mxu0 %v1351
  %1942 = vmatpush2.bf16.msra.mxu0 %v1350
  %1943 = vmatprep.subr.bf16.mxu0 %v1347
  %1944 = vmatpush2.bf16.msra.mxu0 %v1346
  %1945 = vmatprep.subr.bf16.mxu0 %v1343
  %1946 = vmatpush2.bf16.msra.mxu0 %v1342
  %1947 = vmatprep.mubr.bf16.mxu0 %v339
  %1948 = vmatmul.mubr.bf16.gmra.mxu0 %v338
  %v1949 = vpop.f32.mrf.mxu0
  %v1950 = vadd.f32 %v1909, %v1949
  %v1951 = vpop.f32.mrf.mxu0
  %v1952 = vadd.f32 %v1911, %v1951
  %v1953 = vpop.f32.mrf.mxu0
  %v1954 = vpop.f32.mrf.mxu0
  %1955 = vdwg.mxu0
  %v1956 = vmax.f32 %v1786, 0.0
  %v1957 = vmax.f32 %v1788, 0.0
  %v1958 = vmax.f32 %v1950, 0.0
  %v1959 = vmax.f32 %v1952, 0.0
  %v1960 = vpack.c.bf16 %v1956, %v1956
  %v1961 = vpack.c.bf16 %v1957, %v1957
  %v1962 = vpack.c.bf16 %v1958, %v1958
  %v1963 = vpack.c.bf16 %v1959, %v1959
  %v1964 = vld [vmem:[%s3] sm:$0xff]
  %v1965 = vld [vmem:[%s3 + $0x8] sm:$0xff]
  %v1966 = vld [vmem:[%s3 + $0x10] sm:$0xff]
  %v1967 = vld [vmem:[%s3 + $0x18] sm:$0xff]
  %v1968 = vld [vmem:[%s3 + $0x20] sm:$0xff]
  %v1969 = vld [vmem:[%s3 + $0x28] sm:$0xff]
  %v1970 = vld [vmem:[%s3 + $0x30] sm:$0xff]
  %v1971 = vld [vmem:[%s3 + $0x38] sm:$0xff]
  %v1972 = vld [vmem:[%s3 + $0x40] sm:$0xff]
  %v1973 = vld [vmem:[%s3 + $0x48] sm:$0xff]
  %v1974 = vld [vmem:[%s3 + $0x50] sm:$0xff]
  %v1975 = vld [vmem:[%s3 + $0x58] sm:$0xff]
  %v1976 = vld [vmem:[%s3 + $0x60] sm:$0xff]
  %v1977 = vld [vmem:[%s3 + $0x68] sm:$0xff]
  %v1978 = vld [vmem:[%s3 + $0x70] sm:$0xff]
  %v1979 = vld [vmem:[%s3 + $0x78] sm:$0xff]
  %v1980 = vld [vmem:[%s3 + $0x80] sm:$0xff]
  %v1981 = vld [vmem:[%s3 + $0x88] sm:$0xff]
  %v1982 = vld [vmem:[%s3 + $0x90] sm:$0xff]
  %v1983 = vld [vmem:[%s3 + $0x98] sm:$0xff]
  %v1984 = vld [vmem:[%s3 + $0xa0] sm:$0xff]
  %v1985 = vld [vmem:[%s3 + $0xa8] sm:$0xff]
  %v1986 = vld [vmem:[%s3 + $0xb0] sm:$0xff]
  %v1987 = vld [vmem:[%s3 + $0xb8] sm:$0xff]
  %v1988 = vld [vmem:[%s3 + $0xc0] sm:$0xff]
  %v1989 = vld [vmem:[%s3 + $0xc8] sm:$0xff]
  %v1990 = vld [vmem:[%s3 + $0xd0] sm:$0xff]
  %v1991 = vld [vmem:[%s3 + $0xd8] sm:$0xff]
  %v1992 = vld [vmem:[%s3 + $0xe0] sm:$0xff]
  %v1993 = vld [vmem:[%s3 + $0xe8] sm:$0xff]
  %v1994 = vld [vmem:[%s3 + $0xf0] sm:$0xff]
  %v1995 = vld [vmem:[%s3 + $0xf8] sm:$0xff]
  %v1996 = vld [vmem:[%s3 + $0x100] sm:$0xff]
  %v1997 = vld [vmem:[%s3 + $0x108] sm:$0xff]
  %v1998 = vld [vmem:[%s3 + $0x110] sm:$0xff]
  %v1999 = vld [vmem:[%s3 + $0x118] sm:$0xff]
  %v2000 = vld [vmem:[%s3 + $0x120] sm:$0xff]
  %v2001 = vld [vmem:[%s3 + $0x128] sm:$0xff]
  %v2002 = vld [vmem:[%s3 + $0x130] sm:$0xff]
  %v2003 = vld [vmem:[%s3 + $0x138] sm:$0xff]
  %v2004 = vld [vmem:[%s3 + $0x140] sm:$0xff]
  %v2005 = vld [vmem:[%s3 + $0x148] sm:$0xff]
  %v2006 = vld [vmem:[%s3 + $0x150] sm:$0xff]
  %v2007 = vld [vmem:[%s3 + $0x158] sm:$0xff]
  %v2008 = vld [vmem:[%s3 + $0x160] sm:$0xff]
  %v2009 = vld [vmem:[%s3 + $0x168] sm:$0xff]
  %v2010 = vld [vmem:[%s3 + $0x170] sm:$0xff]
  %v2011 = vld [vmem:[%s3 + $0x178] sm:$0xff]
  %v2012 = vld [vmem:[%s3 + $0x180] sm:$0xff]
  %v2013 = vld [vmem:[%s3 + $0x188] sm:$0xff]
  %v2014 = vld [vmem:[%s3 + $0x190] sm:$0xff]
  %v2015 = vld [vmem:[%s3 + $0x198] sm:$0xff]
  %v2016 = vld [vmem:[%s3 + $0x1a0] sm:$0xff]
  %v2017 = vld [vmem:[%s3 + $0x1a8] sm:$0xff]
  %v2018 = vld [vmem:[%s3 + $0x1b0] sm:$0xff]
  %v2019 = vld [vmem:[%s3 + $0x1b8] sm:$0xff]
  %v2020 = vld [vmem:[%s3 + $0x1c0] sm:$0xff]
  %v2021 = vld [vmem:[%s3 + $0x1c8] sm:$0xff]
  %v2022 = vld [vmem:[%s3 + $0x1d0] sm:$0xff]
  %v2023 = vld [vmem:[%s3 + $0x1d8] sm:$0xff]
  %v2024 = vld [vmem:[%s3 + $0x1e0] sm:$0xff]
  %v2025 = vld [vmem:[%s3 + $0x1e8] sm:$0xff]
  %v2026 = vld [vmem:[%s3 + $0x1f0] sm:$0xff]
  %v2027 = vld [vmem:[%s3 + $0x1f8] sm:$0xff]
  %v2028 = vld [vmem:[%s4] sm:$0x3]
  %v2030 = vlaneseq
  %v2031 = vshrl.u32 %v2030, 7
  %v2032 = vsub.s32 0, %v2031
  %v2033 = vrot.slane %v2028, %v2032
  %v2034 = vlaneseq
  %v2035 = vshrl.u32 %v2034, 7
  %v2036 = vsub.s32 1, %v2035
  %v2037 = vrot.slane %v2028, %v2036
  %v2104 = vunpack.c.l.b16 %v1964
  %v2105 = vunpack.c.h.b16 %v1964
  %v2106 = vunpack.c.l.b16 %v1965
  %v2107 = vunpack.c.h.b16 %v1965
  %v2108 = vunpack.c.l.b16 %v1966
  %v2109 = vunpack.c.h.b16 %v1966
  %v2110 = vunpack.c.l.b16 %v1967
  %v2111 = vunpack.c.h.b16 %v1967
  %v2112 = vunpack.c.l.b16 %v1968
  %v2113 = vunpack.c.h.b16 %v1968
  %v2114 = vunpack.c.l.b16 %v1969
  %v2115 = vunpack.c.h.b16 %v1969
  %v2116 = vunpack.c.l.b16 %v1970
  %v2117 = vunpack.c.h.b16 %v1970
  %v2118 = vunpack.c.l.b16 %v1971
  %v2119 = vunpack.c.h.b16 %v1971
  %v2120 = vunpack.c.l.b16 %v1972
  %v2121 = vunpack.c.h.b16 %v1972
  %v2122 = vunpack.c.l.b16 %v1973
  %v2123 = vunpack.c.h.b16 %v1973
  %v2124 = vunpack.c.l.b16 %v1974
  %v2125 = vunpack.c.h.b16 %v1974
  %v2126 = vunpack.c.l.b16 %v1975
  %v2127 = vunpack.c.h.b16 %v1975
  %v2128 = vunpack.c.l.b16 %v1976
  %v2129 = vunpack.c.h.b16 %v1976
  %v2130 = vunpack.c.l.b16 %v1977
  %v2131 = vunpack.c.h.b16 %v1977
  %v2132 = vunpack.c.l.b16 %v1978
  %v2133 = vunpack.c.h.b16 %v1978
  %v2134 = vunpack.c.l.b16 %v1979
  %v2135 = vunpack.c.h.b16 %v1979
  %v2136 = vunpack.c.l.b16 %v1980
  %v2137 = vunpack.c.h.b16 %v1980
  %v2138 = vunpack.c.l.b16 %v1981
  %v2139 = vunpack.c.h.b16 %v1981
  %v2140 = vunpack.c.l.b16 %v1982
  %v2141 = vunpack.c.h.b16 %v1982
  %v2142 = vunpack.c.l.b16 %v1983
  %v2143 = vunpack.c.h.b16 %v1983
  %v2144 = vunpack.c.l.b16 %v1984
  %v2145 = vunpack.c.h.b16 %v1984
  %v2146 = vunpack.c.l.b16 %v1985
  %v2147 = vunpack.c.h.b16 %v1985
  %v2148 = vunpack.c.l.b16 %v1986
  %v2149 = vunpack.c.h.b16 %v1986
  %v2150 = vunpack.c.l.b16 %v1987
  %v2151 = vunpack.c.h.b16 %v1987
  %v2152 = vunpack.c.l.b16 %v1988
  %v2153 = vunpack.c.h.b16 %v1988
  %v2154 = vunpack.c.l.b16 %v1989
  %v2155 = vunpack.c.h.b16 %v1989
  %v2156 = vunpack.c.l.b16 %v1990
  %v2157 = vunpack.c.h.b16 %v1990
  %v2158 = vunpack.c.l.b16 %v1991
  %v2159 = vunpack.c.h.b16 %v1991
  %v2160 = vunpack.c.l.b16 %v1992
  %v2161 = vunpack.c.h.b16 %v1992
  %v2162 = vunpack.c.l.b16 %v1993
  %v2163 = vunpack.c.h.b16 %v1993
  %v2164 = vunpack.c.l.b16 %v1994
  %v2165 = vunpack.c.h.b16 %v1994
  %v2166 = vunpack.c.l.b16 %v1995
  %v2167 = vunpack.c.h.b16 %v1995
  %v2168 = vunpack.c.l.b16 %v1996
  %v2169 = vunpack.c.h.b16 %v1996
  %v2170 = vunpack.c.l.b16 %v1997
  %v2171 = vunpack.c.h.b16 %v1997
  %v2172 = vunpack.c.l.b16 %v1998
  %v2173 = vunpack.c.h.b16 %v1998
  %v2174 = vunpack.c.l.b16 %v1999
  %v2175 = vunpack.c.h.b16 %v1999
  %v2176 = vunpack.c.l.b16 %v2000
  %v2177 = vunpack.c.h.b16 %v2000
  %v2178 = vunpack.c.l.b16 %v2001
  %v2179 = vunpack.c.h.b16 %v2001
  %v2180 = vunpack.c.l.b16 %v2002
  %v2181 = vunpack.c.h.b16 %v2002
  %v2182 = vunpack.c.l.b16 %v2003
  %v2183 = vunpack.c.h.b16 %v2003
  %v2184 = vunpack.c.l.b16 %v2004
  %v2185 = vunpack.c.h.b16 %v2004
  %v2186 = vunpack.c.l.b16 %v2005
  %v2187 = vunpack.c.h.b16 %v2005
  %v2188 = vunpack.c.l.b16 %v2006
  %v2189 = vunpack.c.h.b16 %v2006
  %v2190 = vunpack.c.l.b16 %v2007
  %v2191 = vunpack.c.h.b16 %v2007
  %v2192 = vunpack.c.l.b16 %v2008
  %v2193 = vunpack.c.h.b16 %v2008
  %v2194 = vunpack.c.l.b16 %v2009
  %v2195 = vunpack.c.h.b16 %v2009
  %v2196 = vunpack.c.l.b16 %v2010
  %v2197 = vunpack.c.h.b16 %v2010
  %v2198 = vunpack.c.l.b16 %v2011
  %v2199 = vunpack.c.h.b16 %v2011
  %v2200 = vunpack.c.l.b16 %v2012
  %v2201 = vunpack.c.h.b16 %v2012
  %v2202 = vunpack.c.l.b16 %v2013
  %v2203 = vunpack.c.h.b16 %v2013
  %v2204 = vunpack.c.l.b16 %v2014
  %v2205 = vunpack.c.h.b16 %v2014
  %v2206 = vunpack.c.l.b16 %v2015
  %v2207 = vunpack.c.h.b16 %v2015
  %v2208 = vunpack.c.l.b16 %v2016
  %v2209 = vunpack.c.h.b16 %v2016
  %v2210 = vunpack.c.l.b16 %v2017
  %v2211 = vunpack.c.h.b16 %v2017
  %v2212 = vunpack.c.l.b16 %v2018
  %v2213 = vunpack.c.h.b16 %v2018
  %v2214 = vunpack.c.l.b16 %v2019
  %v2215 = vunpack.c.h.b16 %v2019
  %v2216 = vunpack.c.l.b16 %v2020
  %v2217 = vunpack.c.h.b16 %v2020
  %v2218 = vunpack.c.l.b16 %v2021
  %v2219 = vunpack.c.h.b16 %v2021
  %v2220 = vunpack.c.l.b16 %v2022
  %v2221 = vunpack.c.h.b16 %v2022
  %v2222 = vunpack.c.l.b16 %v2023
  %v2223 = vunpack.c.h.b16 %v2023
  %v2224 = vunpack.c.l.b16 %v2024
  %v2225 = vunpack.c.h.b16 %v2024
  %v2226 = vunpack.c.l.b16 %v2025
  %v2227 = vunpack.c.h.b16 %v2025
  %v2228 = vunpack.c.l.b16 %v2026
  %v2229 = vunpack.c.h.b16 %v2026
  %v2230 = vunpack.c.l.b16 %v2027
  %v2231 = vunpack.c.h.b16 %v2027
  %v2232 = vpack.c.b16 %v2106, %v2104
  %v2233 = vpack.c.b16 %v2107, %v2105
  %v2234 = vpack.c.b16 %v2110, %v2108
  %v2235 = vpack.c.b16 %v2111, %v2109
  %v2236 = vpack.c.b16 %v2114, %v2112
  %v2237 = vpack.c.b16 %v2115, %v2113
  %v2238 = vpack.c.b16 %v2118, %v2116
  %v2239 = vpack.c.b16 %v2119, %v2117
  %v2240 = vpack.c.b16 %v2122, %v2120
  %v2241 = vpack.c.b16 %v2123, %v2121
  %v2242 = vpack.c.b16 %v2126, %v2124
  %v2243 = vpack.c.b16 %v2127, %v2125
  %v2244 = vpack.c.b16 %v2130, %v2128
  %v2245 = vpack.c.b16 %v2131, %v2129
  %v2246 = vpack.c.b16 %v2134, %v2132
  %v2247 = vpack.c.b16 %v2135, %v2133
  %v2248 = vpack.c.b16 %v2138, %v2136
  %v2249 = vpack.c.b16 %v2139, %v2137
  %v2250 = vpack.c.b16 %v2142, %v2140
  %v2251 = vpack.c.b16 %v2143, %v2141
  %v2252 = vpack.c.b16 %v2146, %v2144
  %v2253 = vpack.c.b16 %v2147, %v2145
  %v2254 = vpack.c.b16 %v2150, %v2148
  %v2255 = vpack.c.b16 %v2151, %v2149
  %v2256 = vpack.c.b16 %v2154, %v2152
  %v2257 = vpack.c.b16 %v2155, %v2153
  %v2258 = vpack.c.b16 %v2158, %v2156
  %v2259 = vpack.c.b16 %v2159, %v2157
  %v2260 = vpack.c.b16 %v2162, %v2160
  %v2261 = vpack.c.b16 %v2163, %v2161
  %v2262 = vpack.c.b16 %v2166, %v2164
  %v2263 = vpack.c.b16 %v2167, %v2165
  %v2264 = vpack.c.b16 %v2170, %v2168
  %v2265 = vpack.c.b16 %v2171, %v2169
  %v2266 = vpack.c.b16 %v2174, %v2172
  %v2267 = vpack.c.b16 %v2175, %v2173
  %v2268 = vpack.c.b16 %v2178, %v2176
  %v2269 = vpack.c.b16 %v2179, %v2177
  %v2270 = vpack.c.b16 %v2182, %v2180
  %v2271 = vpack.c.b16 %v2183, %v2181
  %v2272 = vpack.c.b16 %v2186, %v2184
  %v2273 = vpack.c.b16 %v2187, %v2185
  %v2274 = vpack.c.b16 %v2190, %v2188
  %v2275 = vpack.c.b16 %v2191, %v2189
  %v2276 = vpack.c.b16 %v2194, %v2192
  %v2277 = vpack.c.b16 %v2195, %v2193
  %v2278 = vpack.c.b16 %v2198, %v2196
  %v2279 = vpack.c.b16 %v2199, %v2197
  %v2280 = vpack.c.b16 %v2202, %v2200
  %v2281 = vpack.c.b16 %v2203, %v2201
  %v2282 = vpack.c.b16 %v2206, %v2204
  %v2283 = vpack.c.b16 %v2207, %v2205
  %v2284 = vpack.c.b16 %v2210, %v2208
  %v2285 = vpack.c.b16 %v2211, %v2209
  %v2286 = vpack.c.b16 %v2214, %v2212
  %v2287 = vpack.c.b16 %v2215, %v2213
  %v2288 = vpack.c.b16 %v2218, %v2216
  %v2289 = vpack.c.b16 %v2219, %v2217
  %v2290 = vpack.c.b16 %v2222, %v2220
  %v2291 = vpack.c.b16 %v2223, %v2221
  %v2292 = vpack.c.b16 %v2226, %v2224
  %v2293 = vpack.c.b16 %v2227, %v2225
  %v2294 = vpack.c.b16 %v2230, %v2228
  %v2295 = vpack.c.b16 %v2231, %v2229
  %2360 = vmatprep.subr.bf16.mxu0 %v2247
  %2361 = vmatpush1.bf16.msra.mxu0 %v2246
  %2362 = vmatprep.subr.bf16.mxu0 %v2245
  %2363 = vmatpush1.bf16.msra.mxu0 %v2244
  %2364 = vmatprep.subr.bf16.mxu0 %v2243
  %2365 = vmatpush1.bf16.msra.mxu0 %v2242
  %2366 = vmatprep.subr.bf16.mxu0 %v2241
  %2367 = vmatpush1.bf16.msra.mxu0 %v2240
  %2368 = vmatprep.subr.bf16.mxu0 %v2239
  %2369 = vmatpush1.bf16.msra.mxu0 %v2238
  %2370 = vmatprep.subr.bf16.mxu0 %v2237
  %2371 = vmatpush1.bf16.msra.mxu0 %v2236
  %2372 = vmatprep.subr.bf16.mxu0 %v2235
  %2373 = vmatpush1.bf16.msra.mxu0 %v2234
  %2374 = vmatprep.subr.bf16.mxu0 %v2233
  %2375 = vmatpush1.bf16.msra.mxu0 %v2232
  %2376 = vmatprep.subr.bf16.mxu0 %v2263
  %2377 = vmatpush2.bf16.msra.mxu0 %v2262
  %2378 = vmatprep.subr.bf16.mxu0 %v2261
  %2379 = vmatpush2.bf16.msra.mxu0 %v2260
  %2380 = vmatprep.subr.bf16.mxu0 %v2259
  %2381 = vmatpush2.bf16.msra.mxu0 %v2258
  %2382 = vmatprep.subr.bf16.mxu0 %v2257
  %2383 = vmatpush2.bf16.msra.mxu0 %v2256
  %2384 = vmatprep.subr.bf16.mxu0 %v2255
  %2385 = vmatpush2.bf16.msra.mxu0 %v2254
  %2386 = vmatprep.subr.bf16.mxu0 %v2253
  %2387 = vmatpush2.bf16.msra.mxu0 %v2252
  %2388 = vmatprep.subr.bf16.mxu0 %v2251
  %2389 = vmatpush2.bf16.msra.mxu0 %v2250
  %2390 = vmatprep.subr.bf16.mxu0 %v2249
  %2391 = vmatpush2.bf16.msra.mxu0 %v2248
  %2392 = vmatprep.mubr.bf16.mxu0 %v1961
  %2393 = vmatmul.mubr.bf16.gmra.mxu0 %v1960
  %v2394 = vpop.f32.mrf.mxu0
  %v2395 = vadd.f32 %v2033, %v2394
  %v2396 = vpop.f32.mrf.mxu0
  %v2397 = vadd.f32 %v2037, %v2396
  %v2398 = vpop.f32.mrf.mxu0
  %v2399 = vpop.f32.mrf.mxu0
  %2400 = vdwg.mxu0
  %2401 = vmatprep.subr.bf16.mxu0 %v2279
  %2402 = vmatpush1.bf16.msra.mxu0 %v2278
  %2403 = vmatprep.subr.bf16.mxu0 %v2277
  %2404 = vmatpush1.bf16.msra.mxu0 %v2276
  %2405 = vmatprep.subr.bf16.mxu0 %v2275
  %2406 = vmatpush1.bf16.msra.mxu0 %v2274
  %2407 = vmatprep.subr.bf16.mxu0 %v2273
  %2408 = vmatpush1.bf16.msra.mxu0 %v2272
  %2409 = vmatprep.subr.bf16.mxu0 %v2271
  %2410 = vmatpush1.bf16.msra.mxu0 %v2270
  %2411 = vmatprep.subr.bf16.mxu0 %v2269
  %2412 = vmatpush1.bf16.msra.mxu0 %v2268
  %2413 = vmatprep.subr.bf16.mxu0 %v2267
  %2414 = vmatpush1.bf16.msra.mxu0 %v2266
  %2415 = vmatprep.subr.bf16.mxu0 %v2265
  %2416 = vmatpush1.bf16.msra.mxu0 %v2264
  %2417 = vmatprep.subr.bf16.mxu0 %v2295
  %2418 = vmatpush2.bf16.msra.mxu0 %v2294
  %2419 = vmatprep.subr.bf16.mxu0 %v2293
  %2420 = vmatpush2.bf16.msra.mxu0 %v2292
  %2421 = vmatprep.subr.bf16.mxu0 %v2291
  %2422 = vmatpush2.bf16.msra.mxu0 %v2290
  %2423 = vmatprep.subr.bf16.mxu0 %v2289
  %2424 = vmatpush2.bf16.msra.mxu0 %v2288
  %2425 = vmatprep.subr.bf16.mxu0 %v2287
  %2426 = vmatpush2.bf16.msra.mxu0 %v2286
  %2427 = vmatprep.subr.bf16.mxu0 %v2285
  %2428 = vmatpush2.bf16.msra.mxu0 %v2284
  %2429 = vmatprep.subr.bf16.mxu0 %v2283
  %2430 = vmatpush2.bf16.msra.mxu0 %v2282
  %2431 = vmatprep.subr.bf16.mxu0 %v2281
  %2432 = vmatpush2.bf16.msra.mxu0 %v2280
  %2433 = vmatprep.mubr.bf16.mxu0 %v1963
  %2434 = vmatmul.mubr.bf16.gmra.mxu0 %v1962
  %v2435 = vpop.f32.mrf.mxu0
  %v2436 = vadd.f32 %v2395, %v2435
  %v2437 = vpop.f32.mrf.mxu0
  %v2438 = vadd.f32 %v2397, %v2437
  %v2439 = vpop.f32.mrf.mxu0
  %v2440 = vpop.f32.mrf.mxu0
  %2441 = vdwg.mxu0
  %v2442 = vmax.f32 %v2436, 0.0
  %v2443 = vmax.f32 %v2438, 0.0
  %v2444 = vpack.c.bf16 %v2442, %v2442
  %v2445 = vpack.c.bf16 %v2443, %v2443
  %v2446 = vld [vmem:[%s5] sm:$0xff]
  %v2447 = vld [vmem:[%s5 + $0x8] sm:$0xff]
  %v2448 = vld [vmem:[%s5 + $0x10] sm:$0xff]
  %v2449 = vld [vmem:[%s5 + $0x18] sm:$0xff]
  %v2450 = vld [vmem:[%s5 + $0x20] sm:$0xff]
  %v2451 = vld [vmem:[%s5 + $0x28] sm:$0xff]
  %v2452 = vld [vmem:[%s5 + $0x30] sm:$0xff]
  %v2453 = vld [vmem:[%s5 + $0x38] sm:$0xff]
  %v2454 = vld [vmem:[%s5 + $0x40] sm:$0xff]
  %v2455 = vld [vmem:[%s5 + $0x48] sm:$0xff]
  %v2456 = vld [vmem:[%s5 + $0x50] sm:$0xff]
  %v2457 = vld [vmem:[%s5 + $0x58] sm:$0xff]
  %v2458 = vld [vmem:[%s5 + $0x60] sm:$0xff]
  %v2459 = vld [vmem:[%s5 + $0x68] sm:$0xff]
  %v2460 = vld [vmem:[%s5 + $0x70] sm:$0xff]
  %v2461 = vld [vmem:[%s5 + $0x78] sm:$0xff]
  %v2462 = vld [vmem:[%s5 + $0x80] sm:$0xff]
  %v2463 = vld [vmem:[%s5 + $0x88] sm:$0xff]
  %v2464 = vld [vmem:[%s5 + $0x90] sm:$0xff]
  %v2465 = vld [vmem:[%s5 + $0x98] sm:$0xff]
  %v2466 = vld [vmem:[%s5 + $0xa0] sm:$0xff]
  %v2467 = vld [vmem:[%s5 + $0xa8] sm:$0xff]
  %v2468 = vld [vmem:[%s5 + $0xb0] sm:$0xff]
  %v2469 = vld [vmem:[%s5 + $0xb8] sm:$0xff]
  %v2470 = vld [vmem:[%s5 + $0xc0] sm:$0xff]
  %v2471 = vld [vmem:[%s5 + $0xc8] sm:$0xff]
  %v2472 = vld [vmem:[%s5 + $0xd0] sm:$0xff]
  %v2473 = vld [vmem:[%s5 + $0xd8] sm:$0xff]
  %v2474 = vld [vmem:[%s5 + $0xe0] sm:$0xff]
  %v2475 = vld [vmem:[%s5 + $0xe8] sm:$0xff]
  %v2476 = vld [vmem:[%s5 + $0xf0] sm:$0xff]
  %v2477 = vld [vmem:[%s5 + $0xf8] sm:$0xff]
  %v2478 = vld [vmem:[%s6] sm:$0x3]
  %v2480 = vlaneseq
  %v2481 = vshrl.u32 %v2480, 7
  %v2482 = vsub.s32 0, %v2481
  %v2483 = vrot.slane %v2478, %v2482
  %v2484 = vlaneseq
  %v2485 = vshrl.u32 %v2484, 7
  %v2486 = vsub.s32 1, %v2485
  %v2487 = vrot.slane %v2478, %v2486
  %v2522 = vunpack.c.l.b16 %v2446
  %v2523 = vunpack.c.h.b16 %v2446
  %v2524 = vunpack.c.l.b16 %v2447
  %v2525 = vunpack.c.h.b16 %v2447
  %v2526 = vunpack.c.l.b16 %v2448
  %v2527 = vunpack.c.h.b16 %v2448
  %v2528 = vunpack.c.l.b16 %v2449
  %v2529 = vunpack.c.h.b16 %v2449
  %v2530 = vunpack.c.l.b16 %v2450
  %v2531 = vunpack.c.h.b16 %v2450
  %v2532 = vunpack.c.l.b16 %v2451
  %v2533 = vunpack.c.h.b16 %v2451
  %v2534 = vunpack.c.l.b16 %v2452
  %v2535 = vunpack.c.h.b16 %v2452
  %v2536 = vunpack.c.l.b16 %v2453
  %v2537 = vunpack.c.h.b16 %v2453
  %v2538 = vunpack.c.l.b16 %v2454
  %v2539 = vunpack.c.h.b16 %v2454
  %v2540 = vunpack.c.l.b16 %v2455
  %v2541 = vunpack.c.h.b16 %v2455
  %v2542 = vunpack.c.l.b16 %v2456
  %v2543 = vunpack.c.h.b16 %v2456
  %v2544 = vunpack.c.l.b16 %v2457
  %v2545 = vunpack.c.h.b16 %v2457
  %v2546 = vunpack.c.l.b16 %v2458
  %v2547 = vunpack.c.h.b16 %v2458
  %v2548 = vunpack.c.l.b16 %v2459
  %v2549 = vunpack.c.h.b16 %v2459
  %v2550 = vunpack.c.l.b16 %v2460
  %v2551 = vunpack.c.h.b16 %v2460
  %v2552 = vunpack.c.l.b16 %v2461
  %v2553 = vunpack.c.h.b16 %v2461
  %v2554 = vunpack.c.l.b16 %v2462
  %v2555 = vunpack.c.h.b16 %v2462
  %v2556 = vunpack.c.l.b16 %v2463
  %v2557 = vunpack.c.h.b16 %v2463
  %v2558 = vunpack.c.l.b16 %v2464
  %v2559 = vunpack.c.h.b16 %v2464
  %v2560 = vunpack.c.l.b16 %v2465
  %v2561 = vunpack.c.h.b16 %v2465
  %v2562 = vunpack.c.l.b16 %v2466
  %v2563 = vunpack.c.h.b16 %v2466
  %v2564 = vunpack.c.l.b16 %v2467
  %v2565 = vunpack.c.h.b16 %v2467
  %v2566 = vunpack.c.l.b16 %v2468
  %v2567 = vunpack.c.h.b16 %v2468
  %v2568 = vunpack.c.l.b16 %v2469
  %v2569 = vunpack.c.h.b16 %v2469
  %v2570 = vunpack.c.l.b16 %v2470
  %v2571 = vunpack.c.h.b16 %v2470
  %v2572 = vunpack.c.l.b16 %v2471
  %v2573 = vunpack.c.h.b16 %v2471
  %v2574 = vunpack.c.l.b16 %v2472
  %v2575 = vunpack.c.h.b16 %v2472
  %v2576 = vunpack.c.l.b16 %v2473
  %v2577 = vunpack.c.h.b16 %v2473
  %v2578 = vunpack.c.l.b16 %v2474
  %v2579 = vunpack.c.h.b16 %v2474
  %v2580 = vunpack.c.l.b16 %v2475
  %v2581 = vunpack.c.h.b16 %v2475
  %v2582 = vunpack.c.l.b16 %v2476
  %v2583 = vunpack.c.h.b16 %v2476
  %v2584 = vunpack.c.l.b16 %v2477
  %v2585 = vunpack.c.h.b16 %v2477
  %v2586 = vpack.c.b16 %v2524, %v2522
  %v2587 = vpack.c.b16 %v2525, %v2523
  %v2588 = vpack.c.b16 %v2528, %v2526
  %v2589 = vpack.c.b16 %v2529, %v2527
  %v2590 = vpack.c.b16 %v2532, %v2530
  %v2591 = vpack.c.b16 %v2533, %v2531
  %v2592 = vpack.c.b16 %v2536, %v2534
  %v2593 = vpack.c.b16 %v2537, %v2535
  %v2594 = vpack.c.b16 %v2540, %v2538
  %v2595 = vpack.c.b16 %v2541, %v2539
  %v2596 = vpack.c.b16 %v2544, %v2542
  %v2597 = vpack.c.b16 %v2545, %v2543
  %v2598 = vpack.c.b16 %v2548, %v2546
  %v2599 = vpack.c.b16 %v2549, %v2547
  %v2600 = vpack.c.b16 %v2552, %v2550
  %v2601 = vpack.c.b16 %v2553, %v2551
  %v2602 = vpack.c.b16 %v2556, %v2554
  %v2603 = vpack.c.b16 %v2557, %v2555
  %v2604 = vpack.c.b16 %v2560, %v2558
  %v2605 = vpack.c.b16 %v2561, %v2559
  %v2606 = vpack.c.b16 %v2564, %v2562
  %v2607 = vpack.c.b16 %v2565, %v2563
  %v2608 = vpack.c.b16 %v2568, %v2566
  %v2609 = vpack.c.b16 %v2569, %v2567
  %v2610 = vpack.c.b16 %v2572, %v2570
  %v2611 = vpack.c.b16 %v2573, %v2571
  %v2612 = vpack.c.b16 %v2576, %v2574
  %v2613 = vpack.c.b16 %v2577, %v2575
  %v2614 = vpack.c.b16 %v2580, %v2578
  %v2615 = vpack.c.b16 %v2581, %v2579
  %v2616 = vpack.c.b16 %v2584, %v2582
  %v2617 = vpack.c.b16 %v2585, %v2583
  %2650 = vmatprep.subr.bf16.mxu0 %v2601
  %2651 = vmatpush1.bf16.msra.mxu0 %v2600
  %2652 = vmatprep.subr.bf16.mxu0 %v2599
  %2653 = vmatpush1.bf16.msra.mxu0 %v2598
  %2654 = vmatprep.subr.bf16.mxu0 %v2597
  %2655 = vmatpush1.bf16.msra.mxu0 %v2596
  %2656 = vmatprep.subr.bf16.mxu0 %v2595
  %2657 = vmatpush1.bf16.msra.mxu0 %v2594
  %2658 = vmatprep.subr.bf16.mxu0 %v2593
  %2659 = vmatpush1.bf16.msra.mxu0 %v2592
  %2660 = vmatprep.subr.bf16.mxu0 %v2591
  %2661 = vmatpush1.bf16.msra.mxu0 %v2590
  %2662 = vmatprep.subr.bf16.mxu0 %v2589
  %2663 = vmatpush1.bf16.msra.mxu0 %v2588
  %2664 = vmatprep.subr.bf16.mxu0 %v2587
  %2665 = vmatpush1.bf16.msra.mxu0 %v2586
  %2666 = vmatprep.subr.bf16.mxu0 %v2617
  %2667 = vmatpush2.bf16.msra.mxu0 %v2616
  %2668 = vmatprep.subr.bf16.mxu0 %v2615
  %2669 = vmatpush2.bf16.msra.mxu0 %v2614
  %2670 = vmatprep.subr.bf16.mxu0 %v2613
  %2671 = vmatpush2.bf16.msra.mxu0 %v2612
  %2672 = vmatprep.subr.bf16.mxu0 %v2611
  %2673 = vmatpush2.bf16.msra.mxu0 %v2610
  %2674 = vmatprep.subr.bf16.mxu0 %v2609
  %2675 = vmatpush2.bf16.msra.mxu0 %v2608
  %2676 = vmatprep.subr.bf16.mxu0 %v2607
  %2677 = vmatpush2.bf16.msra.mxu0 %v2606
  %2678 = vmatprep.subr.bf16.mxu0 %v2605
  %2679 = vmatpush2.bf16.msra.mxu0 %v2604
  %2680 = vmatprep.subr.bf16.mxu0 %v2603
  %2681 = vmatpush2.bf16.msra.mxu0 %v2602
  %2682 = vmatprep.mubr.bf16.mxu0 %v2445
  %2683 = vmatmul.mubr.bf16.gmra.mxu0 %v2444
  %v2684 = vpop.f32.mrf.mxu0
  %v2685 = vadd.f32 %v2483, %v2684
  %v2686 = vpop.f32.mrf.mxu0
  %v2687 = vadd.f32 %v2487, %v2686
  %v2688 = vpop.f32.mrf.mxu0
  %v2689 = vpop.f32.mrf.mxu0
  %2690 = vdwg.mxu0
  %v2691 = vmax.f32 %v2685, 0.0
  %v2692 = vmax.f32 %v2687, 0.0
  %v2693 = vpack.c.bf16 %v2691, %v2691
  %v2694 = vpack.c.bf16 %v2692, %v2692
  %v2695 = vld [vmem:[%s7] sm:$0xff]
  %v2696 = vld [vmem:[%s7 + $0x8] sm:$0xff]
  %v2697 = vld [vmem:[%s7 + $0x10] sm:$0xff]
  %v2698 = vld [vmem:[%s7 + $0x18] sm:$0xff]
  %v2699 = vld [vmem:[%s7 + $0x20] sm:$0xff]
  %v2700 = vld [vmem:[%s7 + $0x28] sm:$0xff]
  %v2701 = vld [vmem:[%s7 + $0x30] sm:$0xff]
  %v2702 = vld [vmem:[%s7 + $0x38] sm:$0xff]
  %v2703 = vld [vmem:[%s7 + $0x40] sm:$0xff]
  %v2704 = vld [vmem:[%s7 + $0x48] sm:$0xff]
  %v2705 = vld [vmem:[%s7 + $0x50] sm:$0xff]
  %v2706 = vld [vmem:[%s7 + $0x58] sm:$0xff]
  %v2707 = vld [vmem:[%s7 + $0x60] sm:$0xff]
  %v2708 = vld [vmem:[%s7 + $0x68] sm:$0xff]
  %v2709 = vld [vmem:[%s7 + $0x70] sm:$0xff]
  %v2710 = vld [vmem:[%s7 + $0x78] sm:$0xff]
  %v2711 = vld [vmem:[%s7 + $0x80] sm:$0xff]
  %v2712 = vld [vmem:[%s7 + $0x88] sm:$0xff]
  %v2713 = vld [vmem:[%s7 + $0x90] sm:$0xff]
  %v2714 = vld [vmem:[%s7 + $0x98] sm:$0xff]
  %v2715 = vld [vmem:[%s7 + $0xa0] sm:$0xff]
  %v2716 = vld [vmem:[%s7 + $0xa8] sm:$0xff]
  %v2717 = vld [vmem:[%s7 + $0xb0] sm:$0xff]
  %v2718 = vld [vmem:[%s7 + $0xb8] sm:$0xff]
  %v2719 = vld [vmem:[%s7 + $0xc0] sm:$0xff]
  %v2720 = vld [vmem:[%s7 + $0xc8] sm:$0xff]
  %v2721 = vld [vmem:[%s7 + $0xd0] sm:$0xff]
  %v2722 = vld [vmem:[%s7 + $0xd8] sm:$0xff]
  %v2723 = vld [vmem:[%s7 + $0xe0] sm:$0xff]
  %v2724 = vld [vmem:[%s7 + $0xe8] sm:$0xff]
  %v2725 = vld [vmem:[%s7 + $0xf0] sm:$0xff]
  %v2726 = vld [vmem:[%s7 + $0xf8] sm:$0xff]
  %v2727 = vld [vmem:[%s7 + $0x100] sm:$0xff]
  %v2728 = vld [vmem:[%s7 + $0x108] sm:$0xff]
  %v2729 = vld [vmem:[%s7 + $0x110] sm:$0xff]
  %v2730 = vld [vmem:[%s7 + $0x118] sm:$0xff]
  %v2731 = vld [vmem:[%s7 + $0x120] sm:$0xff]
  %v2732 = vld [vmem:[%s7 + $0x128] sm:$0xff]
  %v2733 = vld [vmem:[%s7 + $0x130] sm:$0xff]
  %v2734 = vld [vmem:[%s7 + $0x138] sm:$0xff]
  %v2735 = vld [vmem:[%s7 + $0x140] sm:$0xff]
  %v2736 = vld [vmem:[%s7 + $0x148] sm:$0xff]
  %v2737 = vld [vmem:[%s7 + $0x150] sm:$0xff]
  %v2738 = vld [vmem:[%s7 + $0x158] sm:$0xff]
  %v2739 = vld [vmem:[%s7 + $0x160] sm:$0xff]
  %v2740 = vld [vmem:[%s7 + $0x168] sm:$0xff]
  %v2741 = vld [vmem:[%s7 + $0x170] sm:$0xff]
  %v2742 = vld [vmem:[%s7 + $0x178] sm:$0xff]
  %v2743 = vld [vmem:[%s7 + $0x180] sm:$0xff]
  %v2744 = vld [vmem:[%s7 + $0x188] sm:$0xff]
  %v2745 = vld [vmem:[%s7 + $0x190] sm:$0xff]
  %v2746 = vld [vmem:[%s7 + $0x198] sm:$0xff]
  %v2747 = vld [vmem:[%s7 + $0x1a0] sm:$0xff]
  %v2748 = vld [vmem:[%s7 + $0x1a8] sm:$0xff]
  %v2749 = vld [vmem:[%s7 + $0x1b0] sm:$0xff]
  %v2750 = vld [vmem:[%s7 + $0x1b8] sm:$0xff]
  %v2751 = vld [vmem:[%s7 + $0x1c0] sm:$0xff]
  %v2752 = vld [vmem:[%s7 + $0x1c8] sm:$0xff]
  %v2753 = vld [vmem:[%s7 + $0x1d0] sm:$0xff]
  %v2754 = vld [vmem:[%s7 + $0x1d8] sm:$0xff]
  %v2755 = vld [vmem:[%s7 + $0x1e0] sm:$0xff]
  %v2756 = vld [vmem:[%s7 + $0x1e8] sm:$0xff]
  %v2757 = vld [vmem:[%s7 + $0x1f0] sm:$0xff]
  %v2758 = vld [vmem:[%s7 + $0x1f8] sm:$0xff]
  %v2759 = vld [vmem:[%s8] sm:$0xf]
  %v2761 = vlaneseq
  %v2762 = vshrl.u32 %v2761, 7
  %v2763 = vsub.s32 0, %v2762
  %v2764 = vrot.slane %v2759, %v2763
  %v2765 = vlaneseq
  %v2766 = vshrl.u32 %v2765, 7
  %v2767 = vsub.s32 1, %v2766
  %v2768 = vrot.slane %v2759, %v2767
  %v2769 = vlaneseq
  %v2770 = vshrl.u32 %v2769, 7
  %v2771 = vsub.s32 2, %v2770
  %v2772 = vrot.slane %v2759, %v2771
  %v2773 = vlaneseq
  %v2774 = vshrl.u32 %v2773, 7
  %v2775 = vsub.s32 3, %v2774
  %v2776 = vrot.slane %v2759, %v2775
  %v2845 = vunpack.c.l.b16 %v2695
  %v2846 = vunpack.c.h.b16 %v2695
  %v2847 = vunpack.c.l.b16 %v2696
  %v2848 = vunpack.c.h.b16 %v2696
  %v2849 = vunpack.c.l.b16 %v2697
  %v2850 = vunpack.c.h.b16 %v2697
  %v2851 = vunpack.c.l.b16 %v2698
  %v2852 = vunpack.c.h.b16 %v2698
  %v2853 = vunpack.c.l.b16 %v2699
  %v2854 = vunpack.c.h.b16 %v2699
  %v2855 = vunpack.c.l.b16 %v2700
  %v2856 = vunpack.c.h.b16 %v2700
  %v2857 = vunpack.c.l.b16 %v2701
  %v2858 = vunpack.c.h.b16 %v2701
  %v2859 = vunpack.c.l.b16 %v2702
  %v2860 = vunpack.c.h.b16 %v2702
  %v2861 = vunpack.c.l.b16 %v2703
  %v2862 = vunpack.c.h.b16 %v2703
  %v2863 = vunpack.c.l.b16 %v2704
  %v2864 = vunpack.c.h.b16 %v2704
  %v2865 = vunpack.c.l.b16 %v2705
  %v2866 = vunpack.c.h.b16 %v2705
  %v2867 = vunpack.c.l.b16 %v2706
  %v2868 = vunpack.c.h.b16 %v2706
  %v2869 = vunpack.c.l.b16 %v2707
  %v2870 = vunpack.c.h.b16 %v2707
  %v2871 = vunpack.c.l.b16 %v2708
  %v2872 = vunpack.c.h.b16 %v2708
  %v2873 = vunpack.c.l.b16 %v2709
  %v2874 = vunpack.c.h.b16 %v2709
  %v2875 = vunpack.c.l.b16 %v2710
  %v2876 = vunpack.c.h.b16 %v2710
  %v2877 = vunpack.c.l.b16 %v2711
  %v2878 = vunpack.c.h.b16 %v2711
  %v2879 = vunpack.c.l.b16 %v2712
  %v2880 = vunpack.c.h.b16 %v2712
  %v2881 = vunpack.c.l.b16 %v2713
  %v2882 = vunpack.c.h.b16 %v2713
  %v2883 = vunpack.c.l.b16 %v2714
  %v2884 = vunpack.c.h.b16 %v2714
  %v2885 = vunpack.c.l.b16 %v2715
  %v2886 = vunpack.c.h.b16 %v2715
  %v2887 = vunpack.c.l.b16 %v2716
  %v2888 = vunpack.c.h.b16 %v2716
  %v2889 = vunpack.c.l.b16 %v2717
  %v2890 = vunpack.c.h.b16 %v2717
  %v2891 = vunpack.c.l.b16 %v2718
  %v2892 = vunpack.c.h.b16 %v2718
  %v2893 = vunpack.c.l.b16 %v2719
  %v2894 = vunpack.c.h.b16 %v2719
  %v2895 = vunpack.c.l.b16 %v2720
  %v2896 = vunpack.c.h.b16 %v2720
  %v2897 = vunpack.c.l.b16 %v2721
  %v2898 = vunpack.c.h.b16 %v2721
  %v2899 = vunpack.c.l.b16 %v2722
  %v2900 = vunpack.c.h.b16 %v2722
  %v2901 = vunpack.c.l.b16 %v2723
  %v2902 = vunpack.c.h.b16 %v2723
  %v2903 = vunpack.c.l.b16 %v2724
  %v2904 = vunpack.c.h.b16 %v2724
  %v2905 = vunpack.c.l.b16 %v2725
  %v2906 = vunpack.c.h.b16 %v2725
  %v2907 = vunpack.c.l.b16 %v2726
  %v2908 = vunpack.c.h.b16 %v2726
  %v2909 = vunpack.c.l.b16 %v2727
  %v2910 = vunpack.c.h.b16 %v2727
  %v2911 = vunpack.c.l.b16 %v2728
  %v2912 = vunpack.c.h.b16 %v2728
  %v2913 = vunpack.c.l.b16 %v2729
  %v2914 = vunpack.c.h.b16 %v2729
  %v2915 = vunpack.c.l.b16 %v2730
  %v2916 = vunpack.c.h.b16 %v2730
  %v2917 = vunpack.c.l.b16 %v2731
  %v2918 = vunpack.c.h.b16 %v2731
  %v2919 = vunpack.c.l.b16 %v2732
  %v2920 = vunpack.c.h.b16 %v2732
  %v2921 = vunpack.c.l.b16 %v2733
  %v2922 = vunpack.c.h.b16 %v2733
  %v2923 = vunpack.c.l.b16 %v2734
  %v2924 = vunpack.c.h.b16 %v2734
  %v2925 = vunpack.c.l.b16 %v2735
  %v2926 = vunpack.c.h.b16 %v2735
  %v2927 = vunpack.c.l.b16 %v2736
  %v2928 = vunpack.c.h.b16 %v2736
  %v2929 = vunpack.c.l.b16 %v2737
  %v2930 = vunpack.c.h.b16 %v2737
  %v2931 = vunpack.c.l.b16 %v2738
  %v2932 = vunpack.c.h.b16 %v2738
  %v2933 = vunpack.c.l.b16 %v2739
  %v2934 = vunpack.c.h.b16 %v2739
  %v2935 = vunpack.c.l.b16 %v2740
  %v2936 = vunpack.c.h.b16 %v2740
  %v2937 = vunpack.c.l.b16 %v2741
  %v2938 = vunpack.c.h.b16 %v2741
  %v2939 = vunpack.c.l.b16 %v2742
  %v2940 = vunpack.c.h.b16 %v2742
  %v2941 = vunpack.c.l.b16 %v2743
  %v2942 = vunpack.c.h.b16 %v2743
  %v2943 = vunpack.c.l.b16 %v2744
  %v2944 = vunpack.c.h.b16 %v2744
  %v2945 = vunpack.c.l.b16 %v2745
  %v2946 = vunpack.c.h.b16 %v2745
  %v2947 = vunpack.c.l.b16 %v2746
  %v2948 = vunpack.c.h.b16 %v2746
  %v2949 = vunpack.c.l.b16 %v2747
  %v2950 = vunpack.c.h.b16 %v2747
  %v2951 = vunpack.c.l.b16 %v2748
  %v2952 = vunpack.c.h.b16 %v2748
  %v2953 = vunpack.c.l.b16 %v2749
  %v2954 = vunpack.c.h.b16 %v2749
  %v2955 = vunpack.c.l.b16 %v2750
  %v2956 = vunpack.c.h.b16 %v2750
  %v2957 = vunpack.c.l.b16 %v2751
  %v2958 = vunpack.c.h.b16 %v2751
  %v2959 = vunpack.c.l.b16 %v2752
  %v2960 = vunpack.c.h.b16 %v2752
  %v2961 = vunpack.c.l.b16 %v2753
  %v2962 = vunpack.c.h.b16 %v2753
  %v2963 = vunpack.c.l.b16 %v2754
  %v2964 = vunpack.c.h.b16 %v2754
  %v2965 = vunpack.c.l.b16 %v2755
  %v2966 = vunpack.c.h.b16 %v2755
  %v2967 = vunpack.c.l.b16 %v2756
  %v2968 = vunpack.c.h.b16 %v2756
  %v2969 = vunpack.c.l.b16 %v2757
  %v2970 = vunpack.c.h.b16 %v2757
  %v2971 = vunpack.c.l.b16 %v2758
  %v2972 = vunpack.c.h.b16 %v2758
  %v2973 = vpack.c.b16 %v2849, %v2845
  %v2974 = vpack.c.b16 %v2850, %v2846
  %v2975 = vpack.c.b16 %v2851, %v2847
  %v2976 = vpack.c.b16 %v2852, %v2848
  %v2977 = vpack.c.b16 %v2857, %v2853
  %v2978 = vpack.c.b16 %v2858, %v2854
  %v2979 = vpack.c.b16 %v2859, %v2855
  %v2980 = vpack.c.b16 %v2860, %v2856
  %v2981 = vpack.c.b16 %v2865, %v2861
  %v2982 = vpack.c.b16 %v2866, %v2862
  %v2983 = vpack.c.b16 %v2867, %v2863
  %v2984 = vpack.c.b16 %v2868, %v2864
  %v2985 = vpack.c.b16 %v2873, %v2869
  %v2986 = vpack.c.b16 %v2874, %v2870
  %v2987 = vpack.c.b16 %v2875, %v2871
  %v2988 = vpack.c.b16 %v2876, %v2872
  %v2989 = vpack.c.b16 %v2881, %v2877
  %v2990 = vpack.c.b16 %v2882, %v2878
  %v2991 = vpack.c.b16 %v2883, %v2879
  %v2992 = vpack.c.b16 %v2884, %v2880
  %v2993 = vpack.c.b16 %v2889, %v2885
  %v2994 = vpack.c.b16 %v2890, %v2886
  %v2995 = vpack.c.b16 %v2891, %v2887
  %v2996 = vpack.c.b16 %v2892, %v2888
  %v2997 = vpack.c.b16 %v2897, %v2893
  %v2998 = vpack.c.b16 %v2898, %v2894
  %v2999 = vpack.c.b16 %v2899, %v2895
  %v3000 = vpack.c.b16 %v2900, %v2896
  %v3001 = vpack.c.b16 %v2905, %v2901
  %v3002 = vpack.c.b16 %v2906, %v2902
  %v3003 = vpack.c.b16 %v2907, %v2903
  %v3004 = vpack.c.b16 %v2908, %v2904
  %v3005 = vpack.c.b16 %v2913, %v2909
  %v3006 = vpack.c.b16 %v2914, %v2910
  %v3007 = vpack.c.b16 %v2915, %v2911
  %v3008 = vpack.c.b16 %v2916, %v2912
  %v3009 = vpack.c.b16 %v2921, %v2917
  %v3010 = vpack.c.b16 %v2922, %v2918
  %v3011 = vpack.c.b16 %v2923, %v2919
  %v3012 = vpack.c.b16 %v2924, %v2920
  %v3013 = vpack.c.b16 %v2929, %v2925
  %v3014 = vpack.c.b16 %v2930, %v2926
  %v3015 = vpack.c.b16 %v2931, %v2927
  %v3016 = vpack.c.b16 %v2932, %v2928
  %v3017 = vpack.c.b16 %v2937, %v2933
  %v3018 = vpack.c.b16 %v2938, %v2934
  %v3019 = vpack.c.b16 %v2939, %v2935
  %v3020 = vpack.c.b16 %v2940, %v2936
  %v3021 = vpack.c.b16 %v2945, %v2941
  %v3022 = vpack.c.b16 %v2946, %v2942
  %v3023 = vpack.c.b16 %v2947, %v2943
  %v3024 = vpack.c.b16 %v2948, %v2944
  %v3025 = vpack.c.b16 %v2953, %v2949
  %v3026 = vpack.c.b16 %v2954, %v2950
  %v3027 = vpack.c.b16 %v2955, %v2951
  %v3028 = vpack.c.b16 %v2956, %v2952
  %v3029 = vpack.c.b16 %v2961, %v2957
  %v3030 = vpack.c.b16 %v2962, %v2958
  %v3031 = vpack.c.b16 %v2963, %v2959
  %v3032 = vpack.c.b16 %v2964, %v2960
  %v3033 = vpack.c.b16 %v2969, %v2965
  %v3034 = vpack.c.b16 %v2970, %v2966
  %v3035 = vpack.c.b16 %v2971, %v2967
  %v3036 = vpack.c.b16 %v2972, %v2968
  %3101 = vmatprep.subr.bf16.mxu0 %v3002
  %3102 = vmatpush1.bf16.msra.mxu0 %v3001
  %3103 = vmatprep.subr.bf16.mxu0 %v2998
  %3104 = vmatpush1.bf16.msra.mxu0 %v2997
  %3105 = vmatprep.subr.bf16.mxu0 %v2994
  %3106 = vmatpush1.bf16.msra.mxu0 %v2993
  %3107 = vmatprep.subr.bf16.mxu0 %v2990
  %3108 = vmatpush1.bf16.msra.mxu0 %v2989
  %3109 = vmatprep.subr.bf16.mxu0 %v2986
  %3110 = vmatpush1.bf16.msra.mxu0 %v2985
  %3111 = vmatprep.subr.bf16.mxu0 %v2982
  %3112 = vmatpush1.bf16.msra.mxu0 %v2981
  %3113 = vmatprep.subr.bf16.mxu0 %v2978
  %3114 = vmatpush1.bf16.msra.mxu0 %v2977
  %3115 = vmatprep.subr.bf16.mxu0 %v2974
  %3116 = vmatpush1.bf16.msra.mxu0 %v2973
  %3117 = vmatprep.subr.bf16.mxu0 %v3034
  %3118 = vmatpush2.bf16.msra.mxu0 %v3033
  %3119 = vmatprep.subr.bf16.mxu0 %v3030
  %3120 = vmatpush2.bf16.msra.mxu0 %v3029
  %3121 = vmatprep.subr.bf16.mxu0 %v3026
  %3122 = vmatpush2.bf16.msra.mxu0 %v3025
  %3123 = vmatprep.subr.bf16.mxu0 %v3022
  %3124 = vmatpush2.bf16.msra.mxu0 %v3021
  %3125 = vmatprep.subr.bf16.mxu0 %v3018
  %3126 = vmatpush2.bf16.msra.mxu0 %v3017
  %3127 = vmatprep.subr.bf16.mxu0 %v3014
  %3128 = vmatpush2.bf16.msra.mxu0 %v3013
  %3129 = vmatprep.subr.bf16.mxu0 %v3010
  %3130 = vmatpush2.bf16.msra.mxu0 %v3009
  %3131 = vmatprep.subr.bf16.mxu0 %v3006
  %3132 = vmatpush2.bf16.msra.mxu0 %v3005
  %3133 = vmatprep.mubr.bf16.mxu0 %v2694
  %3134 = vmatmul.mubr.bf16.gmra.mxu0 %v2693
  %v3135 = vpop.f32.mrf.mxu0
  %v3136 = vadd.f32 %v2764, %v3135
  %v3137 = vpop.f32.mrf.mxu0
  %v3138 = vadd.f32 %v2768, %v3137
  %v3139 = vpop.f32.mrf.mxu0
  %v3140 = vpop.f32.mrf.mxu0
  %3141 = vdwg.mxu0
  %3142 = vmatprep.subr.bf16.mxu0 %v3004
  %3143 = vmatpush1.bf16.msra.mxu0 %v3003
  %3144 = vmatprep.subr.bf16.mxu0 %v3000
  %3145 = vmatpush1.bf16.msra.mxu0 %v2999
  %3146 = vmatprep.subr.bf16.mxu0 %v2996
  %3147 = vmatpush1.bf16.msra.mxu0 %v2995
  %3148 = vmatprep.subr.bf16.mxu0 %v2992
  %3149 = vmatpush1.bf16.msra.mxu0 %v2991
  %3150 = vmatprep.subr.bf16.mxu0 %v2988
  %3151 = vmatpush1.bf16.msra.mxu0 %v2987
  %3152 = vmatprep.subr.bf16.mxu0 %v2984
  %3153 = vmatpush1.bf16.msra.mxu0 %v2983
  %3154 = vmatprep.subr.bf16.mxu0 %v2980
  %3155 = vmatpush1.bf16.msra.mxu0 %v2979
  %3156 = vmatprep.subr.bf16.mxu0 %v2976
  %3157 = vmatpush1.bf16.msra.mxu0 %v2975
  %3158 = vmatprep.subr.bf16.mxu0 %v3036
  %3159 = vmatpush2.bf16.msra.mxu0 %v3035
  %3160 = vmatprep.subr.bf16.mxu0 %v3032
  %3161 = vmatpush2.bf16.msra.mxu0 %v3031
  %3162 = vmatprep.subr.bf16.mxu0 %v3028
  %3163 = vmatpush2.bf16.msra.mxu0 %v3027
  %3164 = vmatprep.subr.bf16.mxu0 %v3024
  %3165 = vmatpush2.bf16.msra.mxu0 %v3023
  %3166 = vmatprep.subr.bf16.mxu0 %v3020
  %3167 = vmatpush2.bf16.msra.mxu0 %v3019
  %3168 = vmatprep.subr.bf16.mxu0 %v3016
  %3169 = vmatpush2.bf16.msra.mxu0 %v3015
  %3170 = vmatprep.subr.bf16.mxu0 %v3012
  %3171 = vmatpush2.bf16.msra.mxu0 %v3011
  %3172 = vmatprep.subr.bf16.mxu0 %v3008
  %3173 = vmatpush2.bf16.msra.mxu0 %v3007
  %3174 = vmatprep.mubr.bf16.mxu0 %v2694
  %3175 = vmatmul.mubr.bf16.gmra.mxu0 %v2693
  %v3176 = vpop.f32.mrf.mxu0
  %v3177 = vadd.f32 %v2772, %v3176
  %v3178 = vpop.f32.mrf.mxu0
  %v3179 = vadd.f32 %v2776, %v3178
  %v3180 = vpop.f32.mrf.mxu0
  %v3181 = vpop.f32.mrf.mxu0
  %3182 = vdwg.mxu0
  %v3183 = vmax.f32 %v3136, 0.0
  %v3184 = vmax.f32 %v3138, 0.0
  %v3185 = vmax.f32 %v3177, 0.0
  %v3186 = vmax.f32 %v3179, 0.0
  %v3187 = vpack.c.bf16 %v3183, %v3183
  %v3188 = vpack.c.bf16 %v3184, %v3184
  %v3189 = vpack.c.bf16 %v3185, %v3185
  %v3190 = vpack.c.bf16 %v3186, %v3186
  %v3191 = vld [vmem:[%s9] sm:$0xff]
  %v3192 = vld [vmem:[%s9 + $0x8] sm:$0xff]
  %v3193 = vld [vmem:[%s9 + $0x10] sm:$0xff]
  %v3194 = vld [vmem:[%s9 + $0x18] sm:$0xff]
  %v3195 = vld [vmem:[%s9 + $0x20] sm:$0xff]
  %v3196 = vld [vmem:[%s9 + $0x28] sm:$0xff]
  %v3197 = vld [vmem:[%s9 + $0x30] sm:$0xff]
  %v3198 = vld [vmem:[%s9 + $0x38] sm:$0xff]
  %v3199 = vld [vmem:[%s9 + $0x40] sm:$0xff]
  %v3200 = vld [vmem:[%s9 + $0x48] sm:$0xff]
  %v3201 = vld [vmem:[%s9 + $0x50] sm:$0xff]
  %v3202 = vld [vmem:[%s9 + $0x58] sm:$0xff]
  %v3203 = vld [vmem:[%s9 + $0x60] sm:$0xff]
  %v3204 = vld [vmem:[%s9 + $0x68] sm:$0xff]
  %v3205 = vld [vmem:[%s9 + $0x70] sm:$0xff]
  %v3206 = vld [vmem:[%s9 + $0x78] sm:$0xff]
  %v3207 = vld [vmem:[%s9 + $0x80] sm:$0xff]
  %v3208 = vld [vmem:[%s9 + $0x88] sm:$0xff]
  %v3209 = vld [vmem:[%s9 + $0x90] sm:$0xff]
  %v3210 = vld [vmem:[%s9 + $0x98] sm:$0xff]
  %v3211 = vld [vmem:[%s9 + $0xa0] sm:$0xff]
  %v3212 = vld [vmem:[%s9 + $0xa8] sm:$0xff]
  %v3213 = vld [vmem:[%s9 + $0xb0] sm:$0xff]
  %v3214 = vld [vmem:[%s9 + $0xb8] sm:$0xff]
  %v3215 = vld [vmem:[%s9 + $0xc0] sm:$0xff]
  %v3216 = vld [vmem:[%s9 + $0xc8] sm:$0xff]
  %v3217 = vld [vmem:[%s9 + $0xd0] sm:$0xff]
  %v3218 = vld [vmem:[%s9 + $0xd8] sm:$0xff]
  %v3219 = vld [vmem:[%s9 + $0xe0] sm:$0xff]
  %v3220 = vld [vmem:[%s9 + $0xe8] sm:$0xff]
  %v3221 = vld [vmem:[%s9 + $0xf0] sm:$0xff]
  %v3222 = vld [vmem:[%s9 + $0xf8] sm:$0xff]
  %v3223 = vld [vmem:[%s9 + $0x100] sm:$0xff]
  %v3224 = vld [vmem:[%s9 + $0x108] sm:$0xff]
  %v3225 = vld [vmem:[%s9 + $0x110] sm:$0xff]
  %v3226 = vld [vmem:[%s9 + $0x118] sm:$0xff]
  %v3227 = vld [vmem:[%s9 + $0x120] sm:$0xff]
  %v3228 = vld [vmem:[%s9 + $0x128] sm:$0xff]
  %v3229 = vld [vmem:[%s9 + $0x130] sm:$0xff]
  %v3230 = vld [vmem:[%s9 + $0x138] sm:$0xff]
  %v3231 = vld [vmem:[%s9 + $0x140] sm:$0xff]
  %v3232 = vld [vmem:[%s9 + $0x148] sm:$0xff]
  %v3233 = vld [vmem:[%s9 + $0x150] sm:$0xff]
  %v3234 = vld [vmem:[%s9 + $0x158] sm:$0xff]
  %v3235 = vld [vmem:[%s9 + $0x160] sm:$0xff]
  %v3236 = vld [vmem:[%s9 + $0x168] sm:$0xff]
  %v3237 = vld [vmem:[%s9 + $0x170] sm:$0xff]
  %v3238 = vld [vmem:[%s9 + $0x178] sm:$0xff]
  %v3239 = vld [vmem:[%s9 + $0x180] sm:$0xff]
  %v3240 = vld [vmem:[%s9 + $0x188] sm:$0xff]
  %v3241 = vld [vmem:[%s9 + $0x190] sm:$0xff]
  %v3242 = vld [vmem:[%s9 + $0x198] sm:$0xff]
  %v3243 = vld [vmem:[%s9 + $0x1a0] sm:$0xff]
  %v3244 = vld [vmem:[%s9 + $0x1a8] sm:$0xff]
  %v3245 = vld [vmem:[%s9 + $0x1b0] sm:$0xff]
  %v3246 = vld [vmem:[%s9 + $0x1b8] sm:$0xff]
  %v3247 = vld [vmem:[%s9 + $0x1c0] sm:$0xff]
  %v3248 = vld [vmem:[%s9 + $0x1c8] sm:$0xff]
  %v3249 = vld [vmem:[%s9 + $0x1d0] sm:$0xff]
  %v3250 = vld [vmem:[%s9 + $0x1d8] sm:$0xff]
  %v3251 = vld [vmem:[%s9 + $0x1e0] sm:$0xff]
  %v3252 = vld [vmem:[%s9 + $0x1e8] sm:$0xff]
  %v3253 = vld [vmem:[%s9 + $0x1f0] sm:$0xff]
  %v3254 = vld [vmem:[%s9 + $0x1f8] sm:$0xff]
  %v3255 = vld [vmem:[%s9 + $0x200] sm:$0xff]
  %v3256 = vld [vmem:[%s9 + $0x208] sm:$0xff]
  %v3257 = vld [vmem:[%s9 + $0x210] sm:$0xff]
  %v3258 = vld [vmem:[%s9 + $0x218] sm:$0xff]
  %v3259 = vld [vmem:[%s9 + $0x220] sm:$0xff]
  %v3260 = vld [vmem:[%s9 + $0x228] sm:$0xff]
  %v3261 = vld [vmem:[%s9 + $0x230] sm:$0xff]
  %v3262 = vld [vmem:[%s9 + $0x238] sm:$0xff]
  %v3263 = vld [vmem:[%s9 + $0x240] sm:$0xff]
  %v3264 = vld [vmem:[%s9 + $0x248] sm:$0xff]
  %v3265 = vld [vmem:[%s9 + $0x250] sm:$0xff]
  %v3266 = vld [vmem:[%s9 + $0x258] sm:$0xff]
  %v3267 = vld [vmem:[%s9 + $0x260] sm:$0xff]
  %v3268 = vld [vmem:[%s9 + $0x268] sm:$0xff]
  %v3269 = vld [vmem:[%s9 + $0x270] sm:$0xff]
  %v3270 = vld [vmem:[%s9 + $0x278] sm:$0xff]
  %v3271 = vld [vmem:[%s9 + $0x280] sm:$0xff]
  %v3272 = vld [vmem:[%s9 + $0x288] sm:$0xff]
  %v3273 = vld [vmem:[%s9 + $0x290] sm:$0xff]
  %v3274 = vld [vmem:[%s9 + $0x298] sm:$0xff]
  %v3275 = vld [vmem:[%s9 + $0x2a0] sm:$0xff]
  %v3276 = vld [vmem:[%s9 + $0x2a8] sm:$0xff]
  %v3277 = vld [vmem:[%s9 + $0x2b0] sm:$0xff]
  %v3278 = vld [vmem:[%s9 + $0x2b8] sm:$0xff]
  %v3279 = vld [vmem:[%s9 + $0x2c0] sm:$0xff]
  %v3280 = vld [vmem:[%s9 + $0x2c8] sm:$0xff]
  %v3281 = vld [vmem:[%s9 + $0x2d0] sm:$0xff]
  %v3282 = vld [vmem:[%s9 + $0x2d8] sm:$0xff]
  %v3283 = vld [vmem:[%s9 + $0x2e0] sm:$0xff]
  %v3284 = vld [vmem:[%s9 + $0x2e8] sm:$0xff]
  %v3285 = vld [vmem:[%s9 + $0x2f0] sm:$0xff]
  %v3286 = vld [vmem:[%s9 + $0x2f8] sm:$0xff]
  %v3287 = vld [vmem:[%s9 + $0x300] sm:$0xff]
  %v3288 = vld [vmem:[%s9 + $0x308] sm:$0xff]
  %v3289 = vld [vmem:[%s9 + $0x310] sm:$0xff]
  %v3290 = vld [vmem:[%s9 + $0x318] sm:$0xff]
  %v3291 = vld [vmem:[%s9 + $0x320] sm:$0xff]
  %v3292 = vld [vmem:[%s9 + $0x328] sm:$0xff]
  %v3293 = vld [vmem:[%s9 + $0x330] sm:$0xff]
  %v3294 = vld [vmem:[%s9 + $0x338] sm:$0xff]
  %v3295 = vld [vmem:[%s9 + $0x340] sm:$0xff]
  %v3296 = vld [vmem:[%s9 + $0x348] sm:$0xff]
  %v3297 = vld [vmem:[%s9 + $0x350] sm:$0xff]
  %v3298 = vld [vmem:[%s9 + $0x358] sm:$0xff]
  %v3299 = vld [vmem:[%s9 + $0x360] sm:$0xff]
  %v3300 = vld [vmem:[%s9 + $0x368] sm:$0xff]
  %v3301 = vld [vmem:[%s9 + $0x370] sm:$0xff]
  %v3302 = vld [vmem:[%s9 + $0x378] sm:$0xff]
  %v3303 = vld [vmem:[%s9 + $0x380] sm:$0xff]
  %v3304 = vld [vmem:[%s9 + $0x388] sm:$0xff]
  %v3305 = vld [vmem:[%s9 + $0x390] sm:$0xff]
  %v3306 = vld [vmem:[%s9 + $0x398] sm:$0xff]
  %v3307 = vld [vmem:[%s9 + $0x3a0] sm:$0xff]
  %v3308 = vld [vmem:[%s9 + $0x3a8] sm:$0xff]
  %v3309 = vld [vmem:[%s9 + $0x3b0] sm:$0xff]
  %v3310 = vld [vmem:[%s9 + $0x3b8] sm:$0xff]
  %v3311 = vld [vmem:[%s9 + $0x3c0] sm:$0xff]
  %v3312 = vld [vmem:[%s9 + $0x3c8] sm:$0xff]
  %v3313 = vld [vmem:[%s9 + $0x3d0] sm:$0xff]
  %v3314 = vld [vmem:[%s9 + $0x3d8] sm:$0xff]
  %v3315 = vld [vmem:[%s9 + $0x3e0] sm:$0xff]
  %v3316 = vld [vmem:[%s9 + $0x3e8] sm:$0xff]
  %v3317 = vld [vmem:[%s9 + $0x3f0] sm:$0xff]
  %v3318 = vld [vmem:[%s9 + $0x3f8] sm:$0xff]
  %v3319 = vld [vmem:[%s9 + $0x400] sm:$0xff]
  %v3320 = vld [vmem:[%s9 + $0x408] sm:$0xff]
  %v3321 = vld [vmem:[%s9 + $0x410] sm:$0xff]
  %v3322 = vld [vmem:[%s9 + $0x418] sm:$0xff]
  %v3323 = vld [vmem:[%s9 + $0x420] sm:$0xff]
  %v3324 = vld [vmem:[%s9 + $0x428] sm:$0xff]
  %v3325 = vld [vmem:[%s9 + $0x430] sm:$0xff]
  %v3326 = vld [vmem:[%s9 + $0x438] sm:$0xff]
  %v3327 = vld [vmem:[%s9 + $0x440] sm:$0xff]
  %v3328 = vld [vmem:[%s9 + $0x448] sm:$0xff]
  %v3329 = vld [vmem:[%s9 + $0x450] sm:$0xff]
  %v3330 = vld [vmem:[%s9 + $0x458] sm:$0xff]
  %v3331 = vld [vmem:[%s9 + $0x460] sm:$0xff]
  %v3332 = vld [vmem:[%s9 + $0x468] sm:$0xff]
  %v3333 = vld [vmem:[%s9 + $0x470] sm:$0xff]
  %v3334 = vld [vmem:[%s9 + $0x478] sm:$0xff]
  %v3335 = vld [vmem:[%s9 + $0x480] sm:$0xff]
  %v3336 = vld [vmem:[%s9 + $0x488] sm:$0xff]
  %v3337 = vld [vmem:[%s9 + $0x490] sm:$0xff]
  %v3338 = vld [vmem:[%s9 + $0x498] sm:$0xff]
  %v3339 = vld [vmem:[%s9 + $0x4a0] sm:$0xff]
  %v3340 = vld [vmem:[%s9 + $0x4a8] sm:$0xff]
  %v3341 = vld [vmem:[%s9 + $0x4b0] sm:$0xff]
  %v3342 = vld [vmem:[%s9 + $0x4b8] sm:$0xff]
  %v3343 = vld [vmem:[%s9 + $0x4c0] sm:$0xff]
  %v3344 = vld [vmem:[%s9 + $0x4c8] sm:$0xff]
  %v3345 = vld [vmem:[%s9 + $0x4d0] sm:$0xff]
  %v3346 = vld [vmem:[%s9 + $0x4d8] sm:$0xff]
  %v3347 = vld [vmem:[%s9 + $0x4e0] sm:$0xff]
  %v3348 = vld [vmem:[%s9 + $0x4e8] sm:$0xff]
  %v3349 = vld [vmem:[%s9 + $0x4f0] sm:$0xff]
  %v3350 = vld [vmem:[%s9 + $0x4f8] sm:$0xff]
  %v3351 = vld [vmem:[%s9 + $0x500] sm:$0xff]
  %v3352 = vld [vmem:[%s9 + $0x508] sm:$0xff]
  %v3353 = vld [vmem:[%s9 + $0x510] sm:$0xff]
  %v3354 = vld [vmem:[%s9 + $0x518] sm:$0xff]
  %v3355 = vld [vmem:[%s9 + $0x520] sm:$0xff]
  %v3356 = vld [vmem:[%s9 + $0x528] sm:$0xff]
  %v3357 = vld [vmem:[%s9 + $0x530] sm:$0xff]
  %v3358 = vld [vmem:[%s9 + $0x538] sm:$0xff]
  %v3359 = vld [vmem:[%s9 + $0x540] sm:$0xff]
  %v3360 = vld [vmem:[%s9 + $0x548] sm:$0xff]
  %v3361 = vld [vmem:[%s9 + $0x550] sm:$0xff]
  %v3362 = vld [vmem:[%s9 + $0x558] sm:$0xff]
  %v3363 = vld [vmem:[%s9 + $0x560] sm:$0xff]
  %v3364 = vld [vmem:[%s9 + $0x568] sm:$0xff]
  %v3365 = vld [vmem:[%s9 + $0x570] sm:$0xff]
  %v3366 = vld [vmem:[%s9 + $0x578] sm:$0xff]
  %v3367 = vld [vmem:[%s9 + $0x580] sm:$0xff]
  %v3368 = vld [vmem:[%s9 + $0x588] sm:$0xff]
  %v3369 = vld [vmem:[%s9 + $0x590] sm:$0xff]
  %v3370 = vld [vmem:[%s9 + $0x598] sm:$0xff]
  %v3371 = vld [vmem:[%s9 + $0x5a0] sm:$0xff]
  %v3372 = vld [vmem:[%s9 + $0x5a8] sm:$0xff]
  %v3373 = vld [vmem:[%s9 + $0x5b0] sm:$0xff]
  %v3374 = vld [vmem:[%s9 + $0x5b8] sm:$0xff]
  %v3375 = vld [vmem:[%s9 + $0x5c0] sm:$0xff]
  %v3376 = vld [vmem:[%s9 + $0x5c8] sm:$0xff]
  %v3377 = vld [vmem:[%s9 + $0x5d0] sm:$0xff]
  %v3378 = vld [vmem:[%s9 + $0x5d8] sm:$0xff]
  %v3379 = vld [vmem:[%s9 + $0x5e0] sm:$0xff]
  %v3380 = vld [vmem:[%s9 + $0x5e8] sm:$0xff]
  %v3381 = vld [vmem:[%s9 + $0x5f0] sm:$0xff]
  %v3382 = vld [vmem:[%s9 + $0x5f8] sm:$0xff]
  %v3383 = vld [vmem:[%s9 + $0x600] sm:$0xff]
  %v3384 = vld [vmem:[%s9 + $0x608] sm:$0xff]
  %v3385 = vld [vmem:[%s9 + $0x610] sm:$0xff]
  %v3386 = vld [vmem:[%s9 + $0x618] sm:$0xff]
  %v3387 = vld [vmem:[%s9 + $0x620] sm:$0xff]
  %v3388 = vld [vmem:[%s9 + $0x628] sm:$0xff]
  %v3389 = vld [vmem:[%s9 + $0x630] sm:$0xff]
  %v3390 = vld [vmem:[%s9 + $0x638] sm:$0xff]
  %v3391 = vld [vmem:[%s9 + $0x640] sm:$0xff]
  %v3392 = vld [vmem:[%s9 + $0x648] sm:$0xff]
  %v3393 = vld [vmem:[%s9 + $0x650] sm:$0xff]
  %v3394 = vld [vmem:[%s9 + $0x658] sm:$0xff]
  %v3395 = vld [vmem:[%s9 + $0x660] sm:$0xff]
  %v3396 = vld [vmem:[%s9 + $0x668] sm:$0xff]
  %v3397 = vld [vmem:[%s9 + $0x670] sm:$0xff]
  %v3398 = vld [vmem:[%s9 + $0x678] sm:$0xff]
  %v3399 = vld [vmem:[%s9 + $0x680] sm:$0xff]
  %v3400 = vld [vmem:[%s9 + $0x688] sm:$0xff]
  %v3401 = vld [vmem:[%s9 + $0x690] sm:$0xff]
  %v3402 = vld [vmem:[%s9 + $0x698] sm:$0xff]
  %v3403 = vld [vmem:[%s9 + $0x6a0] sm:$0xff]
  %v3404 = vld [vmem:[%s9 + $0x6a8] sm:$0xff]
  %v3405 = vld [vmem:[%s9 + $0x6b0] sm:$0xff]
  %v3406 = vld [vmem:[%s9 + $0x6b8] sm:$0xff]
  %v3407 = vld [vmem:[%s9 + $0x6c0] sm:$0xff]
  %v3408 = vld [vmem:[%s9 + $0x6c8] sm:$0xff]
  %v3409 = vld [vmem:[%s9 + $0x6d0] sm:$0xff]
  %v3410 = vld [vmem:[%s9 + $0x6d8] sm:$0xff]
  %v3411 = vld [vmem:[%s9 + $0x6e0] sm:$0xff]
  %v3412 = vld [vmem:[%s9 + $0x6e8] sm:$0xff]
  %v3413 = vld [vmem:[%s9 + $0x6f0] sm:$0xff]
  %v3414 = vld [vmem:[%s9 + $0x6f8] sm:$0xff]
  %v3415 = vld [vmem:[%s9 + $0x700] sm:$0xff]
  %v3416 = vld [vmem:[%s9 + $0x708] sm:$0xff]
  %v3417 = vld [vmem:[%s9 + $0x710] sm:$0xff]
  %v3418 = vld [vmem:[%s9 + $0x718] sm:$0xff]
  %v3419 = vld [vmem:[%s9 + $0x720] sm:$0xff]
  %v3420 = vld [vmem:[%s9 + $0x728] sm:$0xff]
  %v3421 = vld [vmem:[%s9 + $0x730] sm:$0xff]
  %v3422 = vld [vmem:[%s9 + $0x738] sm:$0xff]
  %v3423 = vld [vmem:[%s9 + $0x740] sm:$0xff]
  %v3424 = vld [vmem:[%s9 + $0x748] sm:$0xff]
  %v3425 = vld [vmem:[%s9 + $0x750] sm:$0xff]
  %v3426 = vld [vmem:[%s9 + $0x758] sm:$0xff]
  %v3427 = vld [vmem:[%s9 + $0x760] sm:$0xff]
  %v3428 = vld [vmem:[%s9 + $0x768] sm:$0xff]
  %v3429 = vld [vmem:[%s9 + $0x770] sm:$0xff]
  %v3430 = vld [vmem:[%s9 + $0x778] sm:$0xff]
  %v3431 = vld [vmem:[%s9 + $0x780] sm:$0xff]
  %v3432 = vld [vmem:[%s9 + $0x788] sm:$0xff]
  %v3433 = vld [vmem:[%s9 + $0x790] sm:$0xff]
  %v3434 = vld [vmem:[%s9 + $0x798] sm:$0xff]
  %v3435 = vld [vmem:[%s9 + $0x7a0] sm:$0xff]
  %v3436 = vld [vmem:[%s9 + $0x7a8] sm:$0xff]
  %v3437 = vld [vmem:[%s9 + $0x7b0] sm:$0xff]
  %v3438 = vld [vmem:[%s9 + $0x7b8] sm:$0xff]
  %v3439 = vld [vmem:[%s9 + $0x7c0] sm:$0xff]
  %v3440 = vld [vmem:[%s9 + $0x7c8] sm:$0xff]
  %v3441 = vld [vmem:[%s9 + $0x7d0] sm:$0xff]
  %v3442 = vld [vmem:[%s9 + $0x7d8] sm:$0xff]
  %v3443 = vld [vmem:[%s9 + $0x7e0] sm:$0xff]
  %v3444 = vld [vmem:[%s9 + $0x7e8] sm:$0xff]
  %v3445 = vld [vmem:[%s9 + $0x7f0] sm:$0xff]
  %v3446 = vld [vmem:[%s9 + $0x7f8] sm:$0xff]
  %v3447 = vld [vmem:[%s10] sm:$0xff]
  %v3449 = vlaneseq
  %v3450 = vshrl.u32 %v3449, 7
  %v3451 = vsub.s32 0, %v3450
  %v3452 = vrot.slane %v3447, %v3451
  %v3453 = vlaneseq
  %v3454 = vshrl.u32 %v3453, 7
  %v3455 = vsub.s32 1, %v3454
  %v3456 = vrot.slane %v3447, %v3455
  %v3457 = vlaneseq
  %v3458 = vshrl.u32 %v3457, 7
  %v3459 = vsub.s32 2, %v3458
  %v3460 = vrot.slane %v3447, %v3459
  %v3461 = vlaneseq
  %v3462 = vshrl.u32 %v3461, 7
  %v3463 = vsub.s32 3, %v3462
  %v3464 = vrot.slane %v3447, %v3463
  %v3465 = vlaneseq
  %v3466 = vshrl.u32 %v3465, 7
  %v3467 = vsub.s32 4, %v3466
  %v3468 = vrot.slane %v3447, %v3467
  %v3469 = vlaneseq
  %v3470 = vshrl.u32 %v3469, 7
  %v3471 = vsub.s32 5, %v3470
  %v3472 = vrot.slane %v3447, %v3471
  %v3473 = vlaneseq
  %v3474 = vshrl.u32 %v3473, 7
  %v3475 = vsub.s32 6, %v3474
  %v3476 = vrot.slane %v3447, %v3475
  %v3477 = vlaneseq
  %v3478 = vshrl.u32 %v3477, 7
  %v3479 = vsub.s32 7, %v3478
  %v3480 = vrot.slane %v3447, %v3479
  %v3745 = vunpack.c.l.b16 %v3191
  %v3746 = vunpack.c.h.b16 %v3191
  %v3747 = vunpack.c.l.b16 %v3192
  %v3748 = vunpack.c.h.b16 %v3192
  %v3749 = vunpack.c.l.b16 %v3193
  %v3750 = vunpack.c.h.b16 %v3193
  %v3751 = vunpack.c.l.b16 %v3194
  %v3752 = vunpack.c.h.b16 %v3194
  %v3753 = vunpack.c.l.b16 %v3195
  %v3754 = vunpack.c.h.b16 %v3195
  %v3755 = vunpack.c.l.b16 %v3196
  %v3756 = vunpack.c.h.b16 %v3196
  %v3757 = vunpack.c.l.b16 %v3197
  %v3758 = vunpack.c.h.b16 %v3197
  %v3759 = vunpack.c.l.b16 %v3198
  %v3760 = vunpack.c.h.b16 %v3198
  %v3761 = vunpack.c.l.b16 %v3199
  %v3762 = vunpack.c.h.b16 %v3199
  %v3763 = vunpack.c.l.b16 %v3200
  %v3764 = vunpack.c.h.b16 %v3200
  %v3765 = vunpack.c.l.b16 %v3201
  %v3766 = vunpack.c.h.b16 %v3201
  %v3767 = vunpack.c.l.b16 %v3202
  %v3768 = vunpack.c.h.b16 %v3202
  %v3769 = vunpack.c.l.b16 %v3203
  %v3770 = vunpack.c.h.b16 %v3203
  %v3771 = vunpack.c.l.b16 %v3204
  %v3772 = vunpack.c.h.b16 %v3204
  %v3773 = vunpack.c.l.b16 %v3205
  %v3774 = vunpack.c.h.b16 %v3205
  %v3775 = vunpack.c.l.b16 %v3206
  %v3776 = vunpack.c.h.b16 %v3206
  %v3777 = vunpack.c.l.b16 %v3207
  %v3778 = vunpack.c.h.b16 %v3207
  %v3779 = vunpack.c.l.b16 %v3208
  %v3780 = vunpack.c.h.b16 %v3208
  %v3781 = vunpack.c.l.b16 %v3209
  %v3782 = vunpack.c.h.b16 %v3209
  %v3783 = vunpack.c.l.b16 %v3210
  %v3784 = vunpack.c.h.b16 %v3210
  %v3785 = vunpack.c.l.b16 %v3211
  %v3786 = vunpack.c.h.b16 %v3211
  %v3787 = vunpack.c.l.b16 %v3212
  %v3788 = vunpack.c.h.b16 %v3212
  %v3789 = vunpack.c.l.b16 %v3213
  %v3790 = vunpack.c.h.b16 %v3213
  %v3791 = vunpack.c.l.b16 %v3214
  %v3792 = vunpack.c.h.b16 %v3214
  %v3793 = vunpack.c.l.b16 %v3215
  %v3794 = vunpack.c.h.b16 %v3215
  %v3795 = vunpack.c.l.b16 %v3216
  %v3796 = vunpack.c.h.b16 %v3216
  %v3797 = vunpack.c.l.b16 %v3217
  %v3798 = vunpack.c.h.b16 %v3217
  %v3799 = vunpack.c.l.b16 %v3218
  %v3800 = vunpack.c.h.b16 %v3218
  %v3801 = vunpack.c.l.b16 %v3219
  %v3802 = vunpack.c.h.b16 %v3219
  %v3803 = vunpack.c.l.b16 %v3220
  %v3804 = vunpack.c.h.b16 %v3220
  %v3805 = vunpack.c.l.b16 %v3221
  %v3806 = vunpack.c.h.b16 %v3221
  %v3807 = vunpack.c.l.b16 %v3222
  %v3808 = vunpack.c.h.b16 %v3222
  %v3809 = vunpack.c.l.b16 %v3223
  %v3810 = vunpack.c.h.b16 %v3223
  %v3811 = vunpack.c.l.b16 %v3224
  %v3812 = vunpack.c.h.b16 %v3224
  %v3813 = vunpack.c.l.b16 %v3225
  %v3814 = vunpack.c.h.b16 %v3225
  %v3815 = vunpack.c.l.b16 %v3226
  %v3816 = vunpack.c.h.b16 %v3226
  %v3817 = vunpack.c.l.b16 %v3227
  %v3818 = vunpack.c.h.b16 %v3227
  %v3819 = vunpack.c.l.b16 %v3228
  %v3820 = vunpack.c.h.b16 %v3228
  %v3821 = vunpack.c.l.b16 %v3229
  %v3822 = vunpack.c.h.b16 %v3229
  %v3823 = vunpack.c.l.b16 %v3230
  %v3824 = vunpack.c.h.b16 %v3230
  %v3825 = vunpack.c.l.b16 %v3231
  %v3826 = vunpack.c.h.b16 %v3231
  %v3827 = vunpack.c.l.b16 %v3232
  %v3828 = vunpack.c.h.b16 %v3232
  %v3829 = vunpack.c.l.b16 %v3233
  %v3830 = vunpack.c.h.b16 %v3233
  %v3831 = vunpack.c.l.b16 %v3234
  %v3832 = vunpack.c.h.b16 %v3234
  %v3833 = vunpack.c.l.b16 %v3235
  %v3834 = vunpack.c.h.b16 %v3235
  %v3835 = vunpack.c.l.b16 %v3236
  %v3836 = vunpack.c.h.b16 %v3236
  %v3837 = vunpack.c.l.b16 %v3237
  %v3838 = vunpack.c.h.b16 %v3237
  %v3839 = vunpack.c.l.b16 %v3238
  %v3840 = vunpack.c.h.b16 %v3238
  %v3841 = vunpack.c.l.b16 %v3239
  %v3842 = vunpack.c.h.b16 %v3239
  %v3843 = vunpack.c.l.b16 %v3240
  %v3844 = vunpack.c.h.b16 %v3240
  %v3845 = vunpack.c.l.b16 %v3241
  %v3846 = vunpack.c.h.b16 %v3241
  %v3847 = vunpack.c.l.b16 %v3242
  %v3848 = vunpack.c.h.b16 %v3242
  %v3849 = vunpack.c.l.b16 %v3243
  %v3850 = vunpack.c.h.b16 %v3243
  %v3851 = vunpack.c.l.b16 %v3244
  %v3852 = vunpack.c.h.b16 %v3244
  %v3853 = vunpack.c.l.b16 %v3245
  %v3854 = vunpack.c.h.b16 %v3245
  %v3855 = vunpack.c.l.b16 %v3246
  %v3856 = vunpack.c.h.b16 %v3246
  %v3857 = vunpack.c.l.b16 %v3247
  %v3858 = vunpack.c.h.b16 %v3247
  %v3859 = vunpack.c.l.b16 %v3248
  %v3860 = vunpack.c.h.b16 %v3248
  %v3861 = vunpack.c.l.b16 %v3249
  %v3862 = vunpack.c.h.b16 %v3249
  %v3863 = vunpack.c.l.b16 %v3250
  %v3864 = vunpack.c.h.b16 %v3250
  %v3865 = vunpack.c.l.b16 %v3251
  %v3866 = vunpack.c.h.b16 %v3251
  %v3867 = vunpack.c.l.b16 %v3252
  %v3868 = vunpack.c.h.b16 %v3252
  %v3869 = vunpack.c.l.b16 %v3253
  %v3870 = vunpack.c.h.b16 %v3253
  %v3871 = vunpack.c.l.b16 %v3254
  %v3872 = vunpack.c.h.b16 %v3254
  %v3873 = vunpack.c.l.b16 %v3255
  %v3874 = vunpack.c.h.b16 %v3255
  %v3875 = vunpack.c.l.b16 %v3256
  %v3876 = vunpack.c.h.b16 %v3256
  %v3877 = vunpack.c.l.b16 %v3257
  %v3878 = vunpack.c.h.b16 %v3257
  %v3879 = vunpack.c.l.b16 %v3258
  %v3880 = vunpack.c.h.b16 %v3258
  %v3881 = vunpack.c.l.b16 %v3259
  %v3882 = vunpack.c.h.b16 %v3259
  %v3883 = vunpack.c.l.b16 %v3260
  %v3884 = vunpack.c.h.b16 %v3260
  %v3885 = vunpack.c.l.b16 %v3261
  %v3886 = vunpack.c.h.b16 %v3261
  %v3887 = vunpack.c.l.b16 %v3262
  %v3888 = vunpack.c.h.b16 %v3262
  %v3889 = vunpack.c.l.b16 %v3263
  %v3890 = vunpack.c.h.b16 %v3263
  %v3891 = vunpack.c.l.b16 %v3264
  %v3892 = vunpack.c.h.b16 %v3264
  %v3893 = vunpack.c.l.b16 %v3265
  %v3894 = vunpack.c.h.b16 %v3265
  %v3895 = vunpack.c.l.b16 %v3266
  %v3896 = vunpack.c.h.b16 %v3266
  %v3897 = vunpack.c.l.b16 %v3267
  %v3898 = vunpack.c.h.b16 %v3267
  %v3899 = vunpack.c.l.b16 %v3268
  %v3900 = vunpack.c.h.b16 %v3268
  %v3901 = vunpack.c.l.b16 %v3269
  %v3902 = vunpack.c.h.b16 %v3269
  %v3903 = vunpack.c.l.b16 %v3270
  %v3904 = vunpack.c.h.b16 %v3270
  %v3905 = vunpack.c.l.b16 %v3271
  %v3906 = vunpack.c.h.b16 %v3271
  %v3907 = vunpack.c.l.b16 %v3272
  %v3908 = vunpack.c.h.b16 %v3272
  %v3909 = vunpack.c.l.b16 %v3273
  %v3910 = vunpack.c.h.b16 %v3273
  %v3911 = vunpack.c.l.b16 %v3274
  %v3912 = vunpack.c.h.b16 %v3274
  %v3913 = vunpack.c.l.b16 %v3275
  %v3914 = vunpack.c.h.b16 %v3275
  %v3915 = vunpack.c.l.b16 %v3276
  %v3916 = vunpack.c.h.b16 %v3276
  %v3917 = vunpack.c.l.b16 %v3277
  %v3918 = vunpack.c.h.b16 %v3277
  %v3919 = vunpack.c.l.b16 %v3278
  %v3920 = vunpack.c.h.b16 %v3278
  %v3921 = vunpack.c.l.b16 %v3279
  %v3922 = vunpack.c.h.b16 %v3279
  %v3923 = vunpack.c.l.b16 %v3280
  %v3924 = vunpack.c.h.b16 %v3280
  %v3925 = vunpack.c.l.b16 %v3281
  %v3926 = vunpack.c.h.b16 %v3281
  %v3927 = vunpack.c.l.b16 %v3282
  %v3928 = vunpack.c.h.b16 %v3282
  %v3929 = vunpack.c.l.b16 %v3283
  %v3930 = vunpack.c.h.b16 %v3283
  %v3931 = vunpack.c.l.b16 %v3284
  %v3932 = vunpack.c.h.b16 %v3284
  %v3933 = vunpack.c.l.b16 %v3285
  %v3934 = vunpack.c.h.b16 %v3285
  %v3935 = vunpack.c.l.b16 %v3286
  %v3936 = vunpack.c.h.b16 %v3286
  %v3937 = vunpack.c.l.b16 %v3287
  %v3938 = vunpack.c.h.b16 %v3287
  %v3939 = vunpack.c.l.b16 %v3288
  %v3940 = vunpack.c.h.b16 %v3288
  %v3941 = vunpack.c.l.b16 %v3289
  %v3942 = vunpack.c.h.b16 %v3289
  %v3943 = vunpack.c.l.b16 %v3290
  %v3944 = vunpack.c.h.b16 %v3290
  %v3945 = vunpack.c.l.b16 %v3291
  %v3946 = vunpack.c.h.b16 %v3291
  %v3947 = vunpack.c.l.b16 %v3292
  %v3948 = vunpack.c.h.b16 %v3292
  %v3949 = vunpack.c.l.b16 %v3293
  %v3950 = vunpack.c.h.b16 %v3293
  %v3951 = vunpack.c.l.b16 %v3294
  %v3952 = vunpack.c.h.b16 %v3294
  %v3953 = vunpack.c.l.b16 %v3295
  %v3954 = vunpack.c.h.b16 %v3295
  %v3955 = vunpack.c.l.b16 %v3296
  %v3956 = vunpack.c.h.b16 %v3296
  %v3957 = vunpack.c.l.b16 %v3297
  %v3958 = vunpack.c.h.b16 %v3297
  %v3959 = vunpack.c.l.b16 %v3298
  %v3960 = vunpack.c.h.b16 %v3298
  %v3961 = vunpack.c.l.b16 %v3299
  %v3962 = vunpack.c.h.b16 %v3299
  %v3963 = vunpack.c.l.b16 %v3300
  %v3964 = vunpack.c.h.b16 %v3300
  %v3965 = vunpack.c.l.b16 %v3301
  %v3966 = vunpack.c.h.b16 %v3301
  %v3967 = vunpack.c.l.b16 %v3302
  %v3968 = vunpack.c.h.b16 %v3302
  %v3969 = vunpack.c.l.b16 %v3303
  %v3970 = vunpack.c.h.b16 %v3303
  %v3971 = vunpack.c.l.b16 %v3304
  %v3972 = vunpack.c.h.b16 %v3304
  %v3973 = vunpack.c.l.b16 %v3305
  %v3974 = vunpack.c.h.b16 %v3305
  %v3975 = vunpack.c.l.b16 %v3306
  %v3976 = vunpack.c.h.b16 %v3306
  %v3977 = vunpack.c.l.b16 %v3307
  %v3978 = vunpack.c.h.b16 %v3307
  %v3979 = vunpack.c.l.b16 %v3308
  %v3980 = vunpack.c.h.b16 %v3308
  %v3981 = vunpack.c.l.b16 %v3309
  %v3982 = vunpack.c.h.b16 %v3309
  %v3983 = vunpack.c.l.b16 %v3310
  %v3984 = vunpack.c.h.b16 %v3310
  %v3985 = vunpack.c.l.b16 %v3311
  %v3986 = vunpack.c.h.b16 %v3311
  %v3987 = vunpack.c.l.b16 %v3312
  %v3988 = vunpack.c.h.b16 %v3312
  %v3989 = vunpack.c.l.b16 %v3313
  %v3990 = vunpack.c.h.b16 %v3313
  %v3991 = vunpack.c.l.b16 %v3314
  %v3992 = vunpack.c.h.b16 %v3314
  %v3993 = vunpack.c.l.b16 %v3315
  %v3994 = vunpack.c.h.b16 %v3315
  %v3995 = vunpack.c.l.b16 %v3316
  %v3996 = vunpack.c.h.b16 %v3316
  %v3997 = vunpack.c.l.b16 %v3317
  %v3998 = vunpack.c.h.b16 %v3317
  %v3999 = vunpack.c.l.b16 %v3318
  %v4000 = vunpack.c.h.b16 %v3318
  %v4001 = vunpack.c.l.b16 %v3319
  %v4002 = vunpack.c.h.b16 %v3319
  %v4003 = vunpack.c.l.b16 %v3320
  %v4004 = vunpack.c.h.b16 %v3320
  %v4005 = vunpack.c.l.b16 %v3321
  %v4006 = vunpack.c.h.b16 %v3321
  %v4007 = vunpack.c.l.b16 %v3322
  %v4008 = vunpack.c.h.b16 %v3322
  %v4009 = vunpack.c.l.b16 %v3323
  %v4010 = vunpack.c.h.b16 %v3323
  %v4011 = vunpack.c.l.b16 %v3324
  %v4012 = vunpack.c.h.b16 %v3324
  %v4013 = vunpack.c.l.b16 %v3325
  %v4014 = vunpack.c.h.b16 %v3325
  %v4015 = vunpack.c.l.b16 %v3326
  %v4016 = vunpack.c.h.b16 %v3326
  %v4017 = vunpack.c.l.b16 %v3327
  %v4018 = vunpack.c.h.b16 %v3327
  %v4019 = vunpack.c.l.b16 %v3328
  %v4020 = vunpack.c.h.b16 %v3328
  %v4021 = vunpack.c.l.b16 %v3329
  %v4022 = vunpack.c.h.b16 %v3329
  %v4023 = vunpack.c.l.b16 %v3330
  %v4024 = vunpack.c.h.b16 %v3330
  %v4025 = vunpack.c.l.b16 %v3331
  %v4026 = vunpack.c.h.b16 %v3331
  %v4027 = vunpack.c.l.b16 %v3332
  %v4028 = vunpack.c.h.b16 %v3332
  %v4029 = vunpack.c.l.b16 %v3333
  %v4030 = vunpack.c.h.b16 %v3333
  %v4031 = vunpack.c.l.b16 %v3334
  %v4032 = vunpack.c.h.b16 %v3334
  %v4033 = vunpack.c.l.b16 %v3335
  %v4034 = vunpack.c.h.b16 %v3335
  %v4035 = vunpack.c.l.b16 %v3336
  %v4036 = vunpack.c.h.b16 %v3336
  %v4037 = vunpack.c.l.b16 %v3337
  %v4038 = vunpack.c.h.b16 %v3337
  %v4039 = vunpack.c.l.b16 %v3338
  %v4040 = vunpack.c.h.b16 %v3338
  %v4041 = vunpack.c.l.b16 %v3339
  %v4042 = vunpack.c.h.b16 %v3339
  %v4043 = vunpack.c.l.b16 %v3340
  %v4044 = vunpack.c.h.b16 %v3340
  %v4045 = vunpack.c.l.b16 %v3341
  %v4046 = vunpack.c.h.b16 %v3341
  %v4047 = vunpack.c.l.b16 %v3342
  %v4048 = vunpack.c.h.b16 %v3342
  %v4049 = vunpack.c.l.b16 %v3343
  %v4050 = vunpack.c.h.b16 %v3343
  %v4051 = vunpack.c.l.b16 %v3344
  %v4052 = vunpack.c.h.b16 %v3344
  %v4053 = vunpack.c.l.b16 %v3345
  %v4054 = vunpack.c.h.b16 %v3345
  %v4055 = vunpack.c.l.b16 %v3346
  %v4056 = vunpack.c.h.b16 %v3346
  %v4057 = vunpack.c.l.b16 %v3347
  %v4058 = vunpack.c.h.b16 %v3347
  %v4059 = vunpack.c.l.b16 %v3348
  %v4060 = vunpack.c.h.b16 %v3348
  %v4061 = vunpack.c.l.b16 %v3349
  %v4062 = vunpack.c.h.b16 %v3349
  %v4063 = vunpack.c.l.b16 %v3350
  %v4064 = vunpack.c.h.b16 %v3350
  %v4065 = vunpack.c.l.b16 %v3351
  %v4066 = vunpack.c.h.b16 %v3351
  %v4067 = vunpack.c.l.b16 %v3352
  %v4068 = vunpack.c.h.b16 %v3352
  %v4069 = vunpack.c.l.b16 %v3353
  %v4070 = vunpack.c.h.b16 %v3353
  %v4071 = vunpack.c.l.b16 %v3354
  %v4072 = vunpack.c.h.b16 %v3354
  %v4073 = vunpack.c.l.b16 %v3355
  %v4074 = vunpack.c.h.b16 %v3355
  %v4075 = vunpack.c.l.b16 %v3356
  %v4076 = vunpack.c.h.b16 %v3356
  %v4077 = vunpack.c.l.b16 %v3357
  %v4078 = vunpack.c.h.b16 %v3357
  %v4079 = vunpack.c.l.b16 %v3358
  %v4080 = vunpack.c.h.b16 %v3358
  %v4081 = vunpack.c.l.b16 %v3359
  %v4082 = vunpack.c.h.b16 %v3359
  %v4083 = vunpack.c.l.b16 %v3360
  %v4084 = vunpack.c.h.b16 %v3360
  %v4085 = vunpack.c.l.b16 %v3361
  %v4086 = vunpack.c.h.b16 %v3361
  %v4087 = vunpack.c.l.b16 %v3362
  %v4088 = vunpack.c.h.b16 %v3362
  %v4089 = vunpack.c.l.b16 %v3363
  %v4090 = vunpack.c.h.b16 %v3363
  %v4091 = vunpack.c.l.b16 %v3364
  %v4092 = vunpack.c.h.b16 %v3364
  %v4093 = vunpack.c.l.b16 %v3365
  %v4094 = vunpack.c.h.b16 %v3365
  %v4095 = vunpack.c.l.b16 %v3366
  %v4096 = vunpack.c.h.b16 %v3366
  %v4097 = vunpack.c.l.b16 %v3367
  %v4098 = vunpack.c.h.b16 %v3367
  %v4099 = vunpack.c.l.b16 %v3368
  %v4100 = vunpack.c.h.b16 %v3368
  %v4101 = vunpack.c.l.b16 %v3369
  %v4102 = vunpack.c.h.b16 %v3369
  %v4103 = vunpack.c.l.b16 %v3370
  %v4104 = vunpack.c.h.b16 %v3370
  %v4105 = vunpack.c.l.b16 %v3371
  %v4106 = vunpack.c.h.b16 %v3371
  %v4107 = vunpack.c.l.b16 %v3372
  %v4108 = vunpack.c.h.b16 %v3372
  %v4109 = vunpack.c.l.b16 %v3373
  %v4110 = vunpack.c.h.b16 %v3373
  %v4111 = vunpack.c.l.b16 %v3374
  %v4112 = vunpack.c.h.b16 %v3374
  %v4113 = vunpack.c.l.b16 %v3375
  %v4114 = vunpack.c.h.b16 %v3375
  %v4115 = vunpack.c.l.b16 %v3376
  %v4116 = vunpack.c.h.b16 %v3376
  %v4117 = vunpack.c.l.b16 %v3377
  %v4118 = vunpack.c.h.b16 %v3377
  %v4119 = vunpack.c.l.b16 %v3378
  %v4120 = vunpack.c.h.b16 %v3378
  %v4121 = vunpack.c.l.b16 %v3379
  %v4122 = vunpack.c.h.b16 %v3379
  %v4123 = vunpack.c.l.b16 %v3380
  %v4124 = vunpack.c.h.b16 %v3380
  %v4125 = vunpack.c.l.b16 %v3381
  %v4126 = vunpack.c.h.b16 %v3381
  %v4127 = vunpack.c.l.b16 %v3382
  %v4128 = vunpack.c.h.b16 %v3382
  %v4129 = vunpack.c.l.b16 %v3383
  %v4130 = vunpack.c.h.b16 %v3383
  %v4131 = vunpack.c.l.b16 %v3384
  %v4132 = vunpack.c.h.b16 %v3384
  %v4133 = vunpack.c.l.b16 %v3385
  %v4134 = vunpack.c.h.b16 %v3385
  %v4135 = vunpack.c.l.b16 %v3386
  %v4136 = vunpack.c.h.b16 %v3386
  %v4137 = vunpack.c.l.b16 %v3387
  %v4138 = vunpack.c.h.b16 %v3387
  %v4139 = vunpack.c.l.b16 %v3388
  %v4140 = vunpack.c.h.b16 %v3388
  %v4141 = vunpack.c.l.b16 %v3389
  %v4142 = vunpack.c.h.b16 %v3389
  %v4143 = vunpack.c.l.b16 %v3390
  %v4144 = vunpack.c.h.b16 %v3390
  %v4145 = vunpack.c.l.b16 %v3391
  %v4146 = vunpack.c.h.b16 %v3391
  %v4147 = vunpack.c.l.b16 %v3392
  %v4148 = vunpack.c.h.b16 %v3392
  %v4149 = vunpack.c.l.b16 %v3393
  %v4150 = vunpack.c.h.b16 %v3393
  %v4151 = vunpack.c.l.b16 %v3394
  %v4152 = vunpack.c.h.b16 %v3394
  %v4153 = vunpack.c.l.b16 %v3395
  %v4154 = vunpack.c.h.b16 %v3395
  %v4155 = vunpack.c.l.b16 %v3396
  %v4156 = vunpack.c.h.b16 %v3396
  %v4157 = vunpack.c.l.b16 %v3397
  %v4158 = vunpack.c.h.b16 %v3397
  %v4159 = vunpack.c.l.b16 %v3398
  %v4160 = vunpack.c.h.b16 %v3398
  %v4161 = vunpack.c.l.b16 %v3399
  %v4162 = vunpack.c.h.b16 %v3399
  %v4163 = vunpack.c.l.b16 %v3400
  %v4164 = vunpack.c.h.b16 %v3400
  %v4165 = vunpack.c.l.b16 %v3401
  %v4166 = vunpack.c.h.b16 %v3401
  %v4167 = vunpack.c.l.b16 %v3402
  %v4168 = vunpack.c.h.b16 %v3402
  %v4169 = vunpack.c.l.b16 %v3403
  %v4170 = vunpack.c.h.b16 %v3403
  %v4171 = vunpack.c.l.b16 %v3404
  %v4172 = vunpack.c.h.b16 %v3404
  %v4173 = vunpack.c.l.b16 %v3405
  %v4174 = vunpack.c.h.b16 %v3405
  %v4175 = vunpack.c.l.b16 %v3406
  %v4176 = vunpack.c.h.b16 %v3406
  %v4177 = vunpack.c.l.b16 %v3407
  %v4178 = vunpack.c.h.b16 %v3407
  %v4179 = vunpack.c.l.b16 %v3408
  %v4180 = vunpack.c.h.b16 %v3408
  %v4181 = vunpack.c.l.b16 %v3409
  %v4182 = vunpack.c.h.b16 %v3409
  %v4183 = vunpack.c.l.b16 %v3410
  %v4184 = vunpack.c.h.b16 %v3410
  %v4185 = vunpack.c.l.b16 %v3411
  %v4186 = vunpack.c.h.b16 %v3411
  %v4187 = vunpack.c.l.b16 %v3412
  %v4188 = vunpack.c.h.b16 %v3412
  %v4189 = vunpack.c.l.b16 %v3413
  %v4190 = vunpack.c.h.b16 %v3413
  %v4191 = vunpack.c.l.b16 %v3414
  %v4192 = vunpack.c.h.b16 %v3414
  %v4193 = vunpack.c.l.b16 %v3415
  %v4194 = vunpack.c.h.b16 %v3415
  %v4195 = vunpack.c.l.b16 %v3416
  %v4196 = vunpack.c.h.b16 %v3416
  %v4197 = vunpack.c.l.b16 %v3417
  %v4198 = vunpack.c.h.b16 %v3417
  %v4199 = vunpack.c.l.b16 %v3418
  %v4200 = vunpack.c.h.b16 %v3418
  %v4201 = vunpack.c.l.b16 %v3419
  %v4202 = vunpack.c.h.b16 %v3419
  %v4203 = vunpack.c.l.b16 %v3420
  %v4204 = vunpack.c.h.b16 %v3420
  %v4205 = vunpack.c.l.b16 %v3421
  %v4206 = vunpack.c.h.b16 %v3421
  %v4207 = vunpack.c.l.b16 %v3422
  %v4208 = vunpack.c.h.b16 %v3422
  %v4209 = vunpack.c.l.b16 %v3423
  %v4210 = vunpack.c.h.b16 %v3423
  %v4211 = vunpack.c.l.b16 %v3424
  %v4212 = vunpack.c.h.b16 %v3424
  %v4213 = vunpack.c.l.b16 %v3425
  %v4214 = vunpack.c.h.b16 %v3425
  %v4215 = vunpack.c.l.b16 %v3426
  %v4216 = vunpack.c.h.b16 %v3426
  %v4217 = vunpack.c.l.b16 %v3427
  %v4218 = vunpack.c.h.b16 %v3427
  %v4219 = vunpack.c.l.b16 %v3428
  %v4220 = vunpack.c.h.b16 %v3428
  %v4221 = vunpack.c.l.b16 %v3429
  %v4222 = vunpack.c.h.b16 %v3429
  %v4223 = vunpack.c.l.b16 %v3430
  %v4224 = vunpack.c.h.b16 %v3430
  %v4225 = vunpack.c.l.b16 %v3431
  %v4226 = vunpack.c.h.b16 %v3431
  %v4227 = vunpack.c.l.b16 %v3432
  %v4228 = vunpack.c.h.b16 %v3432
  %v4229 = vunpack.c.l.b16 %v3433
  %v4230 = vunpack.c.h.b16 %v3433
  %v4231 = vunpack.c.l.b16 %v3434
  %v4232 = vunpack.c.h.b16 %v3434
  %v4233 = vunpack.c.l.b16 %v3435
  %v4234 = vunpack.c.h.b16 %v3435
  %v4235 = vunpack.c.l.b16 %v3436
  %v4236 = vunpack.c.h.b16 %v3436
  %v4237 = vunpack.c.l.b16 %v3437
  %v4238 = vunpack.c.h.b16 %v3437
  %v4239 = vunpack.c.l.b16 %v3438
  %v4240 = vunpack.c.h.b16 %v3438
  %v4241 = vunpack.c.l.b16 %v3439
  %v4242 = vunpack.c.h.b16 %v3439
  %v4243 = vunpack.c.l.b16 %v3440
  %v4244 = vunpack.c.h.b16 %v3440
  %v4245 = vunpack.c.l.b16 %v3441
  %v4246 = vunpack.c.h.b16 %v3441
  %v4247 = vunpack.c.l.b16 %v3442
  %v4248 = vunpack.c.h.b16 %v3442
  %v4249 = vunpack.c.l.b16 %v3443
  %v4250 = vunpack.c.h.b16 %v3443
  %v4251 = vunpack.c.l.b16 %v3444
  %v4252 = vunpack.c.h.b16 %v3444
  %v4253 = vunpack.c.l.b16 %v3445
  %v4254 = vunpack.c.h.b16 %v3445
  %v4255 = vunpack.c.l.b16 %v3446
  %v4256 = vunpack.c.h.b16 %v3446
  %v4257 = vpack.c.b16 %v3753, %v3745
  %v4258 = vpack.c.b16 %v3754, %v3746
  %v4259 = vpack.c.b16 %v3755, %v3747
  %v4260 = vpack.c.b16 %v3756, %v3748
  %v4261 = vpack.c.b16 %v3757, %v3749
  %v4262 = vpack.c.b16 %v3758, %v3750
  %v4263 = vpack.c.b16 %v3759, %v3751
  %v4264 = vpack.c.b16 %v3760, %v3752
  %v4265 = vpack.c.b16 %v3769, %v3761
  %v4266 = vpack.c.b16 %v3770, %v3762
  %v4267 = vpack.c.b16 %v3771, %v3763
  %v4268 = vpack.c.b16 %v3772, %v3764
  %v4269 = vpack.c.b16 %v3773, %v3765
  %v4270 = vpack.c.b16 %v3774, %v3766
  %v4271 = vpack.c.b16 %v3775, %v3767
  %v4272 = vpack.c.b16 %v3776, %v3768
  %v4273 = vpack.c.b16 %v3785, %v3777
  %v4274 = vpack.c.b16 %v3786, %v3778
  %v4275 = vpack.c.b16 %v3787, %v3779
  %v4276 = vpack.c.b16 %v3788, %v3780
  %v4277 = vpack.c.b16 %v3789, %v3781
  %v4278 = vpack.c.b16 %v3790, %v3782
  %v4279 = vpack.c.b16 %v3791, %v3783
  %v4280 = vpack.c.b16 %v3792, %v3784
  %v4281 = vpack.c.b16 %v3801, %v3793
  %v4282 = vpack.c.b16 %v3802, %v3794
  %v4283 = vpack.c.b16 %v3803, %v3795
  %v4284 = vpack.c.b16 %v3804, %v3796
  %v4285 = vpack.c.b16 %v3805, %v3797
  %v4286 = vpack.c.b16 %v3806, %v3798
  %v4287 = vpack.c.b16 %v3807, %v3799
  %v4288 = vpack.c.b16 %v3808, %v3800
  %v4289 = vpack.c.b16 %v3817, %v3809
  %v4290 = vpack.c.b16 %v3818, %v3810
  %v4291 = vpack.c.b16 %v3819, %v3811
  %v4292 = vpack.c.b16 %v3820, %v3812
  %v4293 = vpack.c.b16 %v3821, %v3813
  %v4294 = vpack.c.b16 %v3822, %v3814
  %v4295 = vpack.c.b16 %v3823, %v3815
  %v4296 = vpack.c.b16 %v3824, %v3816
  %v4297 = vpack.c.b16 %v3833, %v3825
  %v4298 = vpack.c.b16 %v3834, %v3826
  %v4299 = vpack.c.b16 %v3835, %v3827
  %v4300 = vpack.c.b16 %v3836, %v3828
  %v4301 = vpack.c.b16 %v3837, %v3829
  %v4302 = vpack.c.b16 %v3838, %v3830
  %v4303 = vpack.c.b16 %v3839, %v3831
  %v4304 = vpack.c.b16 %v3840, %v3832
  %v4305 = vpack.c.b16 %v3849, %v3841
  %v4306 = vpack.c.b16 %v3850, %v3842
  %v4307 = vpack.c.b16 %v3851, %v3843
  %v4308 = vpack.c.b16 %v3852, %v3844
  %v4309 = vpack.c.b16 %v3853, %v3845
  %v4310 = vpack.c.b16 %v3854, %v3846
  %v4311 = vpack.c.b16 %v3855, %v3847
  %v4312 = vpack.c.b16 %v3856, %v3848
  %v4313 = vpack.c.b16 %v3865, %v3857
  %v4314 = vpack.c.b16 %v3866, %v3858
  %v4315 = vpack.c.b16 %v3867, %v3859
  %v4316 = vpack.c.b16 %v3868, %v3860
  %v4317 = vpack.c.b16 %v3869, %v3861
  %v4318 = vpack.c.b16 %v3870, %v3862
  %v4319 = vpack.c.b16 %v3871, %v3863
  %v4320 = vpack.c.b16 %v3872, %v3864
  %v4321 = vpack.c.b16 %v3881, %v3873
  %v4322 = vpack.c.b16 %v3882, %v3874
  %v4323 = vpack.c.b16 %v3883, %v3875
  %v4324 = vpack.c.b16 %v3884, %v3876
  %v4325 = vpack.c.b16 %v3885, %v3877
  %v4326 = vpack.c.b16 %v3886, %v3878
  %v4327 = vpack.c.b16 %v3887, %v3879
  %v4328 = vpack.c.b16 %v3888, %v3880
  %v4329 = vpack.c.b16 %v3897, %v3889
  %v4330 = vpack.c.b16 %v3898, %v3890
  %v4331 = vpack.c.b16 %v3899, %v3891
  %v4332 = vpack.c.b16 %v3900, %v3892
  %v4333 = vpack.c.b16 %v3901, %v3893
  %v4334 = vpack.c.b16 %v3902, %v3894
  %v4335 = vpack.c.b16 %v3903, %v3895
  %v4336 = vpack.c.b16 %v3904, %v3896
  %v4337 = vpack.c.b16 %v3913, %v3905
  %v4338 = vpack.c.b16 %v3914, %v3906
  %v4339 = vpack.c.b16 %v3915, %v3907
  %v4340 = vpack.c.b16 %v3916, %v3908
  %v4341 = vpack.c.b16 %v3917, %v3909
  %v4342 = vpack.c.b16 %v3918, %v3910
  %v4343 = vpack.c.b16 %v3919, %v3911
  %v4344 = vpack.c.b16 %v3920, %v3912
  %v4345 = vpack.c.b16 %v3929, %v3921
  %v4346 = vpack.c.b16 %v3930, %v3922
  %v4347 = vpack.c.b16 %v3931, %v3923
  %v4348 = vpack.c.b16 %v3932, %v3924
  %v4349 = vpack.c.b16 %v3933, %v3925
  %v4350 = vpack.c.b16 %v3934, %v3926
  %v4351 = vpack.c.b16 %v3935, %v3927
  %v4352 = vpack.c.b16 %v3936, %v3928
  %v4353 = vpack.c.b16 %v3945, %v3937
  %v4354 = vpack.c.b16 %v3946, %v3938
  %v4355 = vpack.c.b16 %v3947, %v3939
  %v4356 = vpack.c.b16 %v3948, %v3940
  %v4357 = vpack.c.b16 %v3949, %v3941
  %v4358 = vpack.c.b16 %v3950, %v3942
  %v4359 = vpack.c.b16 %v3951, %v3943
  %v4360 = vpack.c.b16 %v3952, %v3944
  %v4361 = vpack.c.b16 %v3961, %v3953
  %v4362 = vpack.c.b16 %v3962, %v3954
  %v4363 = vpack.c.b16 %v3963, %v3955
  %v4364 = vpack.c.b16 %v3964, %v3956
  %v4365 = vpack.c.b16 %v3965, %v3957
  %v4366 = vpack.c.b16 %v3966, %v3958
  %v4367 = vpack.c.b16 %v3967, %v3959
  %v4368 = vpack.c.b16 %v3968, %v3960
  %v4369 = vpack.c.b16 %v3977, %v3969
  %v4370 = vpack.c.b16 %v3978, %v3970
  %v4371 = vpack.c.b16 %v3979, %v3971
  %v4372 = vpack.c.b16 %v3980, %v3972
  %v4373 = vpack.c.b16 %v3981, %v3973
  %v4374 = vpack.c.b16 %v3982, %v3974
  %v4375 = vpack.c.b16 %v3983, %v3975
  %v4376 = vpack.c.b16 %v3984, %v3976
  %v4377 = vpack.c.b16 %v3993, %v3985
  %v4378 = vpack.c.b16 %v3994, %v3986
  %v4379 = vpack.c.b16 %v3995, %v3987
  %v4380 = vpack.c.b16 %v3996, %v3988
  %v4381 = vpack.c.b16 %v3997, %v3989
  %v4382 = vpack.c.b16 %v3998, %v3990
  %v4383 = vpack.c.b16 %v3999, %v3991
  %v4384 = vpack.c.b16 %v4000, %v3992
  %v4385 = vpack.c.b16 %v4009, %v4001
  %v4386 = vpack.c.b16 %v4010, %v4002
  %v4387 = vpack.c.b16 %v4011, %v4003
  %v4388 = vpack.c.b16 %v4012, %v4004
  %v4389 = vpack.c.b16 %v4013, %v4005
  %v4390 = vpack.c.b16 %v4014, %v4006
  %v4391 = vpack.c.b16 %v4015, %v4007
  %v4392 = vpack.c.b16 %v4016, %v4008
  %v4393 = vpack.c.b16 %v4025, %v4017
  %v4394 = vpack.c.b16 %v4026, %v4018
  %v4395 = vpack.c.b16 %v4027, %v4019
  %v4396 = vpack.c.b16 %v4028, %v4020
  %v4397 = vpack.c.b16 %v4029, %v4021
  %v4398 = vpack.c.b16 %v4030, %v4022
  %v4399 = vpack.c.b16 %v4031, %v4023
  %v4400 = vpack.c.b16 %v4032, %v4024
  %v4401 = vpack.c.b16 %v4041, %v4033
  %v4402 = vpack.c.b16 %v4042, %v4034
  %v4403 = vpack.c.b16 %v4043, %v4035
  %v4404 = vpack.c.b16 %v4044, %v4036
  %v4405 = vpack.c.b16 %v4045, %v4037
  %v4406 = vpack.c.b16 %v4046, %v4038
  %v4407 = vpack.c.b16 %v4047, %v4039
  %v4408 = vpack.c.b16 %v4048, %v4040
  %v4409 = vpack.c.b16 %v4057, %v4049
  %v4410 = vpack.c.b16 %v4058, %v4050
  %v4411 = vpack.c.b16 %v4059, %v4051
  %v4412 = vpack.c.b16 %v4060, %v4052
  %v4413 = vpack.c.b16 %v4061, %v4053
  %v4414 = vpack.c.b16 %v4062, %v4054
  %v4415 = vpack.c.b16 %v4063, %v4055
  %v4416 = vpack.c.b16 %v4064, %v4056
  %v4417 = vpack.c.b16 %v4073, %v4065
  %v4418 = vpack.c.b16 %v4074, %v4066
  %v4419 = vpack.c.b16 %v4075, %v4067
  %v4420 = vpack.c.b16 %v4076, %v4068
  %v4421 = vpack.c.b16 %v4077, %v4069
  %v4422 = vpack.c.b16 %v4078, %v4070
  %v4423 = vpack.c.b16 %v4079, %v4071
  %v4424 = vpack.c.b16 %v4080, %v4072
  %v4425 = vpack.c.b16 %v4089, %v4081
  %v4426 = vpack.c.b16 %v4090, %v4082
  %v4427 = vpack.c.b16 %v4091, %v4083
  %v4428 = vpack.c.b16 %v4092, %v4084
  %v4429 = vpack.c.b16 %v4093, %v4085
  %v4430 = vpack.c.b16 %v4094, %v4086
  %v4431 = vpack.c.b16 %v4095, %v4087
  %v4432 = vpack.c.b16 %v4096, %v4088
  %v4433 = vpack.c.b16 %v4105, %v4097
  %v4434 = vpack.c.b16 %v4106, %v4098
  %v4435 = vpack.c.b16 %v4107, %v4099
  %v4436 = vpack.c.b16 %v4108, %v4100
  %v4437 = vpack.c.b16 %v4109, %v4101
  %v4438 = vpack.c.b16 %v4110, %v4102
  %v4439 = vpack.c.b16 %v4111, %v4103
  %v4440 = vpack.c.b16 %v4112, %v4104
  %v4441 = vpack.c.b16 %v4121, %v4113
  %v4442 = vpack.c.b16 %v4122, %v4114
  %v4443 = vpack.c.b16 %v4123, %v4115
  %v4444 = vpack.c.b16 %v4124, %v4116
  %v4445 = vpack.c.b16 %v4125, %v4117
  %v4446 = vpack.c.b16 %v4126, %v4118
  %v4447 = vpack.c.b16 %v4127, %v4119
  %v4448 = vpack.c.b16 %v4128, %v4120
  %v4449 = vpack.c.b16 %v4137, %v4129
  %v4450 = vpack.c.b16 %v4138, %v4130
  %v4451 = vpack.c.b16 %v4139, %v4131
  %v4452 = vpack.c.b16 %v4140, %v4132
  %v4453 = vpack.c.b16 %v4141, %v4133
  %v4454 = vpack.c.b16 %v4142, %v4134
  %v4455 = vpack.c.b16 %v4143, %v4135
  %v4456 = vpack.c.b16 %v4144, %v4136
  %v4457 = vpack.c.b16 %v4153, %v4145
  %v4458 = vpack.c.b16 %v4154, %v4146
  %v4459 = vpack.c.b16 %v4155, %v4147
  %v4460 = vpack.c.b16 %v4156, %v4148
  %v4461 = vpack.c.b16 %v4157, %v4149
  %v4462 = vpack.c.b16 %v4158, %v4150
  %v4463 = vpack.c.b16 %v4159, %v4151
  %v4464 = vpack.c.b16 %v4160, %v4152
  %v4465 = vpack.c.b16 %v4169, %v4161
  %v4466 = vpack.c.b16 %v4170, %v4162
  %v4467 = vpack.c.b16 %v4171, %v4163
  %v4468 = vpack.c.b16 %v4172, %v4164
  %v4469 = vpack.c.b16 %v4173, %v4165
  %v4470 = vpack.c.b16 %v4174, %v4166
  %v4471 = vpack.c.b16 %v4175, %v4167
  %v4472 = vpack.c.b16 %v4176, %v4168
  %v4473 = vpack.c.b16 %v4185, %v4177
  %v4474 = vpack.c.b16 %v4186, %v4178
  %v4475 = vpack.c.b16 %v4187, %v4179
  %v4476 = vpack.c.b16 %v4188, %v4180
  %v4477 = vpack.c.b16 %v4189, %v4181
  %v4478 = vpack.c.b16 %v4190, %v4182
  %v4479 = vpack.c.b16 %v4191, %v4183
  %v4480 = vpack.c.b16 %v4192, %v4184
  %v4481 = vpack.c.b16 %v4201, %v4193
  %v4482 = vpack.c.b16 %v4202, %v4194
  %v4483 = vpack.c.b16 %v4203, %v4195
  %v4484 = vpack.c.b16 %v4204, %v4196
  %v4485 = vpack.c.b16 %v4205, %v4197
  %v4486 = vpack.c.b16 %v4206, %v4198
  %v4487 = vpack.c.b16 %v4207, %v4199
  %v4488 = vpack.c.b16 %v4208, %v4200
  %v4489 = vpack.c.b16 %v4217, %v4209
  %v4490 = vpack.c.b16 %v4218, %v4210
  %v4491 = vpack.c.b16 %v4219, %v4211
  %v4492 = vpack.c.b16 %v4220, %v4212
  %v4493 = vpack.c.b16 %v4221, %v4213
  %v4494 = vpack.c.b16 %v4222, %v4214
  %v4495 = vpack.c.b16 %v4223, %v4215
  %v4496 = vpack.c.b16 %v4224, %v4216
  %v4497 = vpack.c.b16 %v4233, %v4225
  %v4498 = vpack.c.b16 %v4234, %v4226
  %v4499 = vpack.c.b16 %v4235, %v4227
  %v4500 = vpack.c.b16 %v4236, %v4228
  %v4501 = vpack.c.b16 %v4237, %v4229
  %v4502 = vpack.c.b16 %v4238, %v4230
  %v4503 = vpack.c.b16 %v4239, %v4231
  %v4504 = vpack.c.b16 %v4240, %v4232
  %v4505 = vpack.c.b16 %v4249, %v4241
  %v4506 = vpack.c.b16 %v4250, %v4242
  %v4507 = vpack.c.b16 %v4251, %v4243
  %v4508 = vpack.c.b16 %v4252, %v4244
  %v4509 = vpack.c.b16 %v4253, %v4245
  %v4510 = vpack.c.b16 %v4254, %v4246
  %v4511 = vpack.c.b16 %v4255, %v4247
  %v4512 = vpack.c.b16 %v4256, %v4248
  %4769 = vmatprep.subr.bf16.mxu0 %v4314
  %4770 = vmatpush1.bf16.msra.mxu0 %v4313
  %4771 = vmatprep.subr.bf16.mxu0 %v4306
  %4772 = vmatpush1.bf16.msra.mxu0 %v4305
  %4773 = vmatprep.subr.bf16.mxu0 %v4298
  %4774 = vmatpush1.bf16.msra.mxu0 %v4297
  %4775 = vmatprep.subr.bf16.mxu0 %v4290
  %4776 = vmatpush1.bf16.msra.mxu0 %v4289
  %4777 = vmatprep.subr.bf16.mxu0 %v4282
  %4778 = vmatpush1.bf16.msra.mxu0 %v4281
  %4779 = vmatprep.subr.bf16.mxu0 %v4274
  %4780 = vmatpush1.bf16.msra.mxu0 %v4273
  %4781 = vmatprep.subr.bf16.mxu0 %v4266
  %4782 = vmatpush1.bf16.msra.mxu0 %v4265
  %4783 = vmatprep.subr.bf16.mxu0 %v4258
  %4784 = vmatpush1.bf16.msra.mxu0 %v4257
  %4785 = vmatprep.subr.bf16.mxu0 %v4378
  %4786 = vmatpush2.bf16.msra.mxu0 %v4377
  %4787 = vmatprep.subr.bf16.mxu0 %v4370
  %4788 = vmatpush2.bf16.msra.mxu0 %v4369
  %4789 = vmatprep.subr.bf16.mxu0 %v4362
  %4790 = vmatpush2.bf16.msra.mxu0 %v4361
  %4791 = vmatprep.subr.bf16.mxu0 %v4354
  %4792 = vmatpush2.bf16.msra.mxu0 %v4353
  %4793 = vmatprep.subr.bf16.mxu0 %v4346
  %4794 = vmatpush2.bf16.msra.mxu0 %v4345
  %4795 = vmatprep.subr.bf16.mxu0 %v4338
  %4796 = vmatpush2.bf16.msra.mxu0 %v4337
  %4797 = vmatprep.subr.bf16.mxu0 %v4330
  %4798 = vmatpush2.bf16.msra.mxu0 %v4329
  %4799 = vmatprep.subr.bf16.mxu0 %v4322
  %4800 = vmatpush2.bf16.msra.mxu0 %v4321
  %4801 = vmatprep.mubr.bf16.mxu0 %v3188
  %4802 = vmatmul.mubr.bf16.gmra.mxu0 %v3187
  %v4803 = vpop.f32.mrf.mxu0
  %v4804 = vadd.f32 %v3452, %v4803
  %v4805 = vpop.f32.mrf.mxu0
  %v4806 = vadd.f32 %v3456, %v4805
  %v4807 = vpop.f32.mrf.mxu0
  %v4808 = vpop.f32.mrf.mxu0
  %4809 = vdwg.mxu0
  %4810 = vmatprep.subr.bf16.mxu0 %v4442
  %4811 = vmatpush1.bf16.msra.mxu0 %v4441
  %4812 = vmatprep.subr.bf16.mxu0 %v4434
  %4813 = vmatpush1.bf16.msra.mxu0 %v4433
  %4814 = vmatprep.subr.bf16.mxu0 %v4426
  %4815 = vmatpush1.bf16.msra.mxu0 %v4425
  %4816 = vmatprep.subr.bf16.mxu0 %v4418
  %4817 = vmatpush1.bf16.msra.mxu0 %v4417
  %4818 = vmatprep.subr.bf16.mxu0 %v4410
  %4819 = vmatpush1.bf16.msra.mxu0 %v4409
  %4820 = vmatprep.subr.bf16.mxu0 %v4402
  %4821 = vmatpush1.bf16.msra.mxu0 %v4401
  %4822 = vmatprep.subr.bf16.mxu0 %v4394
  %4823 = vmatpush1.bf16.msra.mxu0 %v4393
  %4824 = vmatprep.subr.bf16.mxu0 %v4386
  %4825 = vmatpush1.bf16.msra.mxu0 %v4385
  %4826 = vmatprep.subr.bf16.mxu0 %v4506
  %4827 = vmatpush2.bf16.msra.mxu0 %v4505
  %4828 = vmatprep.subr.bf16.mxu0 %v4498
  %4829 = vmatpush2.bf16.msra.mxu0 %v4497
  %4830 = vmatprep.subr.bf16.mxu0 %v4490
  %4831 = vmatpush2.bf16.msra.mxu0 %v4489
  %4832 = vmatprep.subr.bf16.mxu0 %v4482
  %4833 = vmatpush2.bf16.msra.mxu0 %v4481
  %4834 = vmatprep.subr.bf16.mxu0 %v4474
  %4835 = vmatpush2.bf16.msra.mxu0 %v4473
  %4836 = vmatprep.subr.bf16.mxu0 %v4466
  %4837 = vmatpush2.bf16.msra.mxu0 %v4465
  %4838 = vmatprep.subr.bf16.mxu0 %v4458
  %4839 = vmatpush2.bf16.msra.mxu0 %v4457
  %4840 = vmatprep.subr.bf16.mxu0 %v4450
  %4841 = vmatpush2.bf16.msra.mxu0 %v4449
  %4842 = vmatprep.mubr.bf16.mxu0 %v3190
  %4843 = vmatmul.mubr.bf16.gmra.mxu0 %v3189
  %v4844 = vpop.f32.mrf.mxu0
  %v4845 = vadd.f32 %v4804, %v4844
  %v4846 = vpop.f32.mrf.mxu0
  %v4847 = vadd.f32 %v4806, %v4846
  %v4848 = vpop.f32.mrf.mxu0
  %v4849 = vpop.f32.mrf.mxu0
  %4850 = vdwg.mxu0
  %4851 = vmatprep.subr.bf16.mxu0 %v4316
  %4852 = vmatpush1.bf16.msra.mxu0 %v4315
  %4853 = vmatprep.subr.bf16.mxu0 %v4308
  %4854 = vmatpush1.bf16.msra.mxu0 %v4307
  %4855 = vmatprep.subr.bf16.mxu0 %v4300
  %4856 = vmatpush1.bf16.msra.mxu0 %v4299
  %4857 = vmatprep.subr.bf16.mxu0 %v4292
  %4858 = vmatpush1.bf16.msra.mxu0 %v4291
  %4859 = vmatprep.subr.bf16.mxu0 %v4284
  %4860 = vmatpush1.bf16.msra.mxu0 %v4283
  %4861 = vmatprep.subr.bf16.mxu0 %v4276
  %4862 = vmatpush1.bf16.msra.mxu0 %v4275
  %4863 = vmatprep.subr.bf16.mxu0 %v4268
  %4864 = vmatpush1.bf16.msra.mxu0 %v4267
  %4865 = vmatprep.subr.bf16.mxu0 %v4260
  %4866 = vmatpush1.bf16.msra.mxu0 %v4259
  %4867 = vmatprep.subr.bf16.mxu0 %v4380
  %4868 = vmatpush2.bf16.msra.mxu0 %v4379
  %4869 = vmatprep.subr.bf16.mxu0 %v4372
  %4870 = vmatpush2.bf16.msra.mxu0 %v4371
  %4871 = vmatprep.subr.bf16.mxu0 %v4364
  %4872 = vmatpush2.bf16.msra.mxu0 %v4363
  %4873 = vmatprep.subr.bf16.mxu0 %v4356
  %4874 = vmatpush2.bf16.msra.mxu0 %v4355
  %4875 = vmatprep.subr.bf16.mxu0 %v4348
  %4876 = vmatpush2.bf16.msra.mxu0 %v4347
  %4877 = vmatprep.subr.bf16.mxu0 %v4340
  %4878 = vmatpush2.bf16.msra.mxu0 %v4339
  %4879 = vmatprep.subr.bf16.mxu0 %v4332
  %4880 = vmatpush2.bf16.msra.mxu0 %v4331
  %4881 = vmatprep.subr.bf16.mxu0 %v4324
  %4882 = vmatpush2.bf16.msra.mxu0 %v4323
  %4883 = vmatprep.mubr.bf16.mxu0 %v3188
  %4884 = vmatmul.mubr.bf16.gmra.mxu0 %v3187
  %v4885 = vpop.f32.mrf.mxu0
  %v4886 = vadd.f32 %v3460, %v4885
  %v4887 = vpop.f32.mrf.mxu0
  %v4888 = vadd.f32 %v3464, %v4887
  %v4889 = vpop.f32.mrf.mxu0
  %v4890 = vpop.f32.mrf.mxu0
  %4891 = vdwg.mxu0
  %4892 = vmatprep.subr.bf16.mxu0 %v4444
  %4893 = vmatpush1.bf16.msra.mxu0 %v4443
  %4894 = vmatprep.subr.bf16.mxu0 %v4436
  %4895 = vmatpush1.bf16.msra.mxu0 %v4435
  %4896 = vmatprep.subr.bf16.mxu0 %v4428
  %4897 = vmatpush1.bf16.msra.mxu0 %v4427
  %4898 = vmatprep.subr.bf16.mxu0 %v4420
  %4899 = vmatpush1.bf16.msra.mxu0 %v4419
  %4900 = vmatprep.subr.bf16.mxu0 %v4412
  %4901 = vmatpush1.bf16.msra.mxu0 %v4411
  %4902 = vmatprep.subr.bf16.mxu0 %v4404
  %4903 = vmatpush1.bf16.msra.mxu0 %v4403
  %4904 = vmatprep.subr.bf16.mxu0 %v4396
  %4905 = vmatpush1.bf16.msra.mxu0 %v4395
  %4906 = vmatprep.subr.bf16.mxu0 %v4388
  %4907 = vmatpush1.bf16.msra.mxu0 %v4387
  %4908 = vmatprep.subr.bf16.mxu0 %v4508
  %4909 = vmatpush2.bf16.msra.mxu0 %v4507
  %4910 = vmatprep.subr.bf16.mxu0 %v4500
  %4911 = vmatpush2.bf16.msra.mxu0 %v4499
  %4912 = vmatprep.subr.bf16.mxu0 %v4492
  %4913 = vmatpush2.bf16.msra.mxu0 %v4491
  %4914 = vmatprep.subr.bf16.mxu0 %v4484
  %4915 = vmatpush2.bf16.msra.mxu0 %v4483
  %4916 = vmatprep.subr.bf16.mxu0 %v4476
  %4917 = vmatpush2.bf16.msra.mxu0 %v4475
  %4918 = vmatprep.subr.bf16.mxu0 %v4468
  %4919 = vmatpush2.bf16.msra.mxu0 %v4467
  %4920 = vmatprep.subr.bf16.mxu0 %v4460
  %4921 = vmatpush2.bf16.msra.mxu0 %v4459
  %4922 = vmatprep.subr.bf16.mxu0 %v4452
  %4923 = vmatpush2.bf16.msra.mxu0 %v4451
  %4924 = vmatprep.mubr.bf16.mxu0 %v3190
  %4925 = vmatmul.mubr.bf16.gmra.mxu0 %v3189
  %v4926 = vpop.f32.mrf.mxu0
  %v4927 = vadd.f32 %v4886, %v4926
  %v4928 = vpop.f32.mrf.mxu0
  %v4929 = vadd.f32 %v4888, %v4928
  %v4930 = vpop.f32.mrf.mxu0
  %v4931 = vpop.f32.mrf.mxu0
  %4932 = vdwg.mxu0
  %4933 = vmatprep.subr.bf16.mxu0 %v4318
  %4934 = vmatpush1.bf16.msra.mxu0 %v4317
  %4935 = vmatprep.subr.bf16.mxu0 %v4310
  %4936 = vmatpush1.bf16.msra.mxu0 %v4309
  %4937 = vmatprep.subr.bf16.mxu0 %v4302
  %4938 = vmatpush1.bf16.msra.mxu0 %v4301
  %4939 = vmatprep.subr.bf16.mxu0 %v4294
  %4940 = vmatpush1.bf16.msra.mxu0 %v4293
  %4941 = vmatprep.subr.bf16.mxu0 %v4286
  %4942 = vmatpush1.bf16.msra.mxu0 %v4285
  %4943 = vmatprep.subr.bf16.mxu0 %v4278
  %4944 = vmatpush1.bf16.msra.mxu0 %v4277
  %4945 = vmatprep.subr.bf16.mxu0 %v4270
  %4946 = vmatpush1.bf16.msra.mxu0 %v4269
  %4947 = vmatprep.subr.bf16.mxu0 %v4262
  %4948 = vmatpush1.bf16.msra.mxu0 %v4261
  %4949 = vmatprep.subr.bf16.mxu0 %v4382
  %4950 = vmatpush2.bf16.msra.mxu0 %v4381
  %4951 = vmatprep.subr.bf16.mxu0 %v4374
  %4952 = vmatpush2.bf16.msra.mxu0 %v4373
  %4953 = vmatprep.subr.bf16.mxu0 %v4366
  %4954 = vmatpush2.bf16.msra.mxu0 %v4365
  %4955 = vmatprep.subr.bf16.mxu0 %v4358
  %4956 = vmatpush2.bf16.msra.mxu0 %v4357
  %4957 = vmatprep.subr.bf16.mxu0 %v4350
  %4958 = vmatpush2.bf16.msra.mxu0 %v4349
  %4959 = vmatprep.subr.bf16.mxu0 %v4342
  %4960 = vmatpush2.bf16.msra.mxu0 %v4341
  %4961 = vmatprep.subr.bf16.mxu0 %v4334
  %4962 = vmatpush2.bf16.msra.mxu0 %v4333
  %4963 = vmatprep.subr.bf16.mxu0 %v4326
  %4964 = vmatpush2.bf16.msra.mxu0 %v4325
  %4965 = vmatprep.mubr.bf16.mxu0 %v3188
  %4966 = vmatmul.mubr.bf16.gmra.mxu0 %v3187
  %v4967 = vpop.f32.mrf.mxu0
  %v4968 = vadd.f32 %v3468, %v4967
  %v4969 = vpop.f32.mrf.mxu0
  %v4970 = vadd.f32 %v3472, %v4969
  %v4971 = vpop.f32.mrf.mxu0
  %v4972 = vpop.f32.mrf.mxu0
  %4973 = vdwg.mxu0
  %4974 = vmatprep.subr.bf16.mxu0 %v4446
  %4975 = vmatpush1.bf16.msra.mxu0 %v4445
  %4976 = vmatprep.subr.bf16.mxu0 %v4438
  %4977 = vmatpush1.bf16.msra.mxu0 %v4437
  %4978 = vmatprep.subr.bf16.mxu0 %v4430
  %4979 = vmatpush1.bf16.msra.mxu0 %v4429
  %4980 = vmatprep.subr.bf16.mxu0 %v4422
  %4981 = vmatpush1.bf16.msra.mxu0 %v4421
  %4982 = vmatprep.subr.bf16.mxu0 %v4414
  %4983 = vmatpush1.bf16.msra.mxu0 %v4413
  %4984 = vmatprep.subr.bf16.mxu0 %v4406
  %4985 = vmatpush1.bf16.msra.mxu0 %v4405
  %4986 = vmatprep.subr.bf16.mxu0 %v4398
  %4987 = vmatpush1.bf16.msra.mxu0 %v4397
  %4988 = vmatprep.subr.bf16.mxu0 %v4390
  %4989 = vmatpush1.bf16.msra.mxu0 %v4389
  %4990 = vmatprep.subr.bf16.mxu0 %v4510
  %4991 = vmatpush2.bf16.msra.mxu0 %v4509
  %4992 = vmatprep.subr.bf16.mxu0 %v4502
  %4993 = vmatpush2.bf16.msra.mxu0 %v4501
  %4994 = vmatprep.subr.bf16.mxu0 %v4494
  %4995 = vmatpush2.bf16.msra.mxu0 %v4493
  %4996 = vmatprep.subr.bf16.mxu0 %v4486
  %4997 = vmatpush2.bf16.msra.mxu0 %v4485
  %4998 = vmatprep.subr.bf16.mxu0 %v4478
  %4999 = vmatpush2.bf16.msra.mxu0 %v4477
  %5000 = vmatprep.subr.bf16.mxu0 %v4470
  %5001 = vmatpush2.bf16.msra.mxu0 %v4469
  %5002 = vmatprep.subr.bf16.mxu0 %v4462
  %5003 = vmatpush2.bf16.msra.mxu0 %v4461
  %5004 = vmatprep.subr.bf16.mxu0 %v4454
  %5005 = vmatpush2.bf16.msra.mxu0 %v4453
  %5006 = vmatprep.mubr.bf16.mxu0 %v3190
  %5007 = vmatmul.mubr.bf16.gmra.mxu0 %v3189
  %v5008 = vpop.f32.mrf.mxu0
  %v5009 = vadd.f32 %v4968, %v5008
  %v5010 = vpop.f32.mrf.mxu0
  %v5011 = vadd.f32 %v4970, %v5010
  %v5012 = vpop.f32.mrf.mxu0
  %v5013 = vpop.f32.mrf.mxu0
  %5014 = vdwg.mxu0
  %5015 = vmatprep.subr.bf16.mxu0 %v4320
  %5016 = vmatpush1.bf16.msra.mxu0 %v4319
  %5017 = vmatprep.subr.bf16.mxu0 %v4312
  %5018 = vmatpush1.bf16.msra.mxu0 %v4311
  %5019 = vmatprep.subr.bf16.mxu0 %v4304
  %5020 = vmatpush1.bf16.msra.mxu0 %v4303
  %5021 = vmatprep.subr.bf16.mxu0 %v4296
  %5022 = vmatpush1.bf16.msra.mxu0 %v4295
  %5023 = vmatprep.subr.bf16.mxu0 %v4288
  %5024 = vmatpush1.bf16.msra.mxu0 %v4287
  %5025 = vmatprep.subr.bf16.mxu0 %v4280
  %5026 = vmatpush1.bf16.msra.mxu0 %v4279
  %5027 = vmatprep.subr.bf16.mxu0 %v4272
  %5028 = vmatpush1.bf16.msra.mxu0 %v4271
  %5029 = vmatprep.subr.bf16.mxu0 %v4264
  %5030 = vmatpush1.bf16.msra.mxu0 %v4263
  %5031 = vmatprep.subr.bf16.mxu0 %v4384
  %5032 = vmatpush2.bf16.msra.mxu0 %v4383
  %5033 = vmatprep.subr.bf16.mxu0 %v4376
  %5034 = vmatpush2.bf16.msra.mxu0 %v4375
  %5035 = vmatprep.subr.bf16.mxu0 %v4368
  %5036 = vmatpush2.bf16.msra.mxu0 %v4367
  %5037 = vmatprep.subr.bf16.mxu0 %v4360
  %5038 = vmatpush2.bf16.msra.mxu0 %v4359
  %5039 = vmatprep.subr.bf16.mxu0 %v4352
  %5040 = vmatpush2.bf16.msra.mxu0 %v4351
  %5041 = vmatprep.subr.bf16.mxu0 %v4344
  %5042 = vmatpush2.bf16.msra.mxu0 %v4343
  %5043 = vmatprep.subr.bf16.mxu0 %v4336
  %5044 = vmatpush2.bf16.msra.mxu0 %v4335
  %5045 = vmatprep.subr.bf16.mxu0 %v4328
  %5046 = vmatpush2.bf16.msra.mxu0 %v4327
  %5047 = vmatprep.mubr.bf16.mxu0 %v3188
  %5048 = vmatmul.mubr.bf16.gmra.mxu0 %v3187
  %v5049 = vpop.f32.mrf.mxu0
  %v5050 = vadd.f32 %v3476, %v5049
  %v5051 = vpop.f32.mrf.mxu0
  %v5052 = vadd.f32 %v3480, %v5051
  %v5053 = vpop.f32.mrf.mxu0
  %v5054 = vpop.f32.mrf.mxu0
  %5055 = vdwg.mxu0
  %5056 = vmatprep.subr.bf16.mxu0 %v4448
  %5057 = vmatpush1.bf16.msra.mxu0 %v4447
  %5058 = vmatprep.subr.bf16.mxu0 %v4440
  %5059 = vmatpush1.bf16.msra.mxu0 %v4439
  %5060 = vmatprep.subr.bf16.mxu0 %v4432
  %5061 = vmatpush1.bf16.msra.mxu0 %v4431
  %5062 = vmatprep.subr.bf16.mxu0 %v4424
  %5063 = vmatpush1.bf16.msra.mxu0 %v4423
  %5064 = vmatprep.subr.bf16.mxu0 %v4416
  %5065 = vmatpush1.bf16.msra.mxu0 %v4415
  %5066 = vmatprep.subr.bf16.mxu0 %v4408
  %5067 = vmatpush1.bf16.msra.mxu0 %v4407
  %5068 = vmatprep.subr.bf16.mxu0 %v4400
  %5069 = vmatpush1.bf16.msra.mxu0 %v4399
  %5070 = vmatprep.subr.bf16.mxu0 %v4392
  %5071 = vmatpush1.bf16.msra.mxu0 %v4391
  %5072 = vmatprep.subr.bf16.mxu0 %v4512
  %5073 = vmatpush2.bf16.msra.mxu0 %v4511
  %5074 = vmatprep.subr.bf16.mxu0 %v4504
  %5075 = vmatpush2.bf16.msra.mxu0 %v4503
  %5076 = vmatprep.subr.bf16.mxu0 %v4496
  %5077 = vmatpush2.bf16.msra.mxu0 %v4495
  %5078 = vmatprep.subr.bf16.mxu0 %v4488
  %5079 = vmatpush2.bf16.msra.mxu0 %v4487
  %5080 = vmatprep.subr.bf16.mxu0 %v4480
  %5081 = vmatpush2.bf16.msra.mxu0 %v4479
  %5082 = vmatprep.subr.bf16.mxu0 %v4472
  %5083 = vmatpush2.bf16.msra.mxu0 %v4471
  %5084 = vmatprep.subr.bf16.mxu0 %v4464
  %5085 = vmatpush2.bf16.msra.mxu0 %v4463
  %5086 = vmatprep.subr.bf16.mxu0 %v4456
  %5087 = vmatpush2.bf16.msra.mxu0 %v4455
  %5088 = vmatprep.mubr.bf16.mxu0 %v3190
  %5089 = vmatmul.mubr.bf16.gmra.mxu0 %v3189
  %v5090 = vpop.f32.mrf.mxu0
  %v5091 = vadd.f32 %v5050, %v5090
  %v5092 = vpop.f32.mrf.mxu0
  %v5093 = vadd.f32 %v5052, %v5092
  %v5094 = vpop.f32.mrf.mxu0
  %v5095 = vpop.f32.mrf.mxu0
  %5096 = vdwg.mxu0
  %v5097 = vmul.f32 %v4845, 0.5
  %v5098 = vmul.f32 %v4847, 0.5
  %v5099 = vmul.f32 %v4927, 0.5
  %v5100 = vmul.f32 %v4929, 0.5
  %v5101 = vmul.f32 %v5009, 0.5
  %v5102 = vmul.f32 %v5011, 0.5
  %v5103 = vmul.f32 %v5091, 0.5
  %v5104 = vmul.f32 %v5093, 0.5
  %v5105 = vtanh.pop %v5097
  %v5106 = vtanh.pop %v5098
  %v5107 = vtanh.pop %v5099
  %v5108 = vtanh.pop %v5100
  %v5109 = vtanh.pop %v5101
  %v5110 = vtanh.pop %v5102
  %v5111 = vtanh.pop %v5103
  %v5112 = vtanh.pop %v5104
  %v5113 = vmul.f32 %v5105, 0.5
  %v5114 = vmul.f32 %v5106, 0.5
  %v5115 = vmul.f32 %v5107, 0.5
  %v5116 = vmul.f32 %v5108, 0.5
  %v5117 = vmul.f32 %v5109, 0.5
  %v5118 = vmul.f32 %v5110, 0.5
  %v5119 = vmul.f32 %v5111, 0.5
  %v5120 = vmul.f32 %v5112, 0.5
  %v5121 = vadd.f32 %v5113, 0.5
  %v5122 = vadd.f32 %v5114, 0.5
  %v5123 = vadd.f32 %v5115, 0.5
  %v5124 = vadd.f32 %v5116, 0.5
  %v5125 = vadd.f32 %v5117, 0.5
  %v5126 = vadd.f32 %v5118, 0.5
  %v5127 = vadd.f32 %v5119, 0.5
  %v5128 = vadd.f32 %v5120, 0.5
  %5129 = vst [vmem:[%s11] sm:$0xff] %v5121
  %5130 = vst [vmem:[%s11 + $0x8] sm:$0xff] %v5122
  %5131 = vst [vmem:[%s11 + $0x10] sm:$0xff] %v5123
  %5132 = vst [vmem:[%s11 + $0x18] sm:$0xff] %v5124
  %5133 = vst [vmem:[%s11 + $0x20] sm:$0xff] %v5125
  %5134 = vst [vmem:[%s11 + $0x28] sm:$0xff] %v5126
  %5135 = vst [vmem:[%s11 + $0x30] sm:$0xff] %v5127
  %5136 = vst [vmem:[%s11 + $0x38] sm:$0xff] %v5128
  // Predicated region
  $region46: #{_forward_impl.1} parent=0 // pred_check
    _
  $region47: #{_forward_impl.1} parent=0 // pred_check_branch
    %5138 = sbr.rel (0) target = $region49
  $region48: #{_forward_impl.1} parent=0 // pred_region
    _
  $region49: #{_forward_impl.1} parent=0 // pred_fallthru
    _
  // Predicated region
  $region50: #{_forward_impl.1} parent=0 // pred_check
    _
  $region51: #{_forward_impl.1} parent=0 // pred_check_branch
    %5140 = sbr.rel (0) target = $region53
  $region52: #{_forward_impl.1} parent=0 // pred_region
    _
  $region53: #{_forward_impl.1} parent=0 // pred_fallthru
    _

</llo_original>
